<compile_context>
chip_gen: v7x
topology: tpu7x:2x2x1
jax: 0.10.0
libtpu: 0.0.40
codegen_flags: <defaults>
</compile_context>

<pallas_src>
import functools

import jax
import jax.numpy as jnp
from jax.experimental import pallas as pl
from jax.experimental.pallas import tpu as pltpu

NEG_INF = -1e30  # python float -> jaxpr literal (never a captured constant)


# ----------------------------------------------------------------------------
# Generation detection (tile targets / VMEM caps / bf16 score path)
# ----------------------------------------------------------------------------
def _device_kind():
    try:
        return jax.devices()[0].device_kind.lower()
    except Exception:
        return ""


_KIND = _device_kind()
_IS_V7 = ("v7" in _KIND) or ("7x" in _KIND)
# packed-bf16 VALU only exists on v6e / v7x; keep f32 scores elsewhere (v5e, v4, ...).
_BF16_SCORES = _IS_V7 or ("v6" in _KIND)


def _round_up(x, m):
    return ((x + m - 1) // m) * m


def _pick_dst_tile(n):
    """Generation-aware dst-row tile; always yields >= 2 tiles when n allows (megacore)."""
    target = 256 if _IS_V7 else 512              # v5e/v6e: bigger tiles amortize grid overhead
    budget = (40 if _IS_V7 else 80) << 20        # keep ~6 f32 [T, N] temporaries inside VMEM
    t_mem = max(8, (budget // (24 * max(n, 1))) // 8 * 8)
    t = max(8, min(target, t_mem, _round_up(n, 8)))
    if n > 8 and pl.cdiv(n, t) < 2:              # single-tile grid forfeits v7x megacore
        t = _round_up(pl.cdiv(n, 2), 8)
    return t


def _vmem_limit(t, n, hd, adj_bytes):
    """Estimate the real VMEM need (double-buffered blocks + temporaries), cap per-gen."""
    need = 2 * t * n * adj_bytes                 # adj-bias stream (double buffered)
    need += 2 * 4 * hd * (t + 2 * n)             # xr / xl / xl^T blocks
    need += 6 * 4 * t * n                        # in-kernel e/p/score temporaries
    need += 2 * 4 * t * hd + (1 << 20)
    need = int(1.5 * need)
    cap = (48 if _IS_V7 else 100) << 20          # v7x VMEM is 64 MiB total: leave headroom
    return min(max(need, 32 << 20), cap)


# ----------------------------------------------------------------------------
# Pallas kernels
# ----------------------------------------------------------------------------
def _gatv2_tile_body(att_ref, xr_ref, xl_ref, xlt_ref, adjb_ref, bias_ref, *,
                     heads, out_ch, negative_slope, concat, score_dtype):
    """All GATv2 heads for one dst-row tile; returns the [T, W] per-node output.

    att_ref : SMEM [H, D]      attention vectors (scalar reads)
    xr_ref  : VMEM [T, H*D]    lin_r(x) for this dst tile
    xl_ref  : VMEM [N, H*D]    lin_l(x) for all source nodes
    xlt_ref : VMEM [H*D, N]    lin_l(x) transposed (src nodes on lanes)
    adjb_ref: VMEM [T, N]      additive edge mask: 0 on edges, -1e30 elsewhere
    bias_ref: VMEM [1, W]      conv bias (W = H*D if concat else D)
    """
    adj_bias = adjb_ref[...].astype(jnp.float32)     # convert the (maybe bf16) mask once
    xr = xr_ref[...]
    xl = xl_ref[...]
    xlt = xlt_ref[...]
    k = negative_slope

    head_outs = []
    for h in range(heads):                           # heads unrolled (H is small)
        c0 = h * out_ch
        # LeakyReLU(s) = k*s + (1-k)*relu(s)  =>
        #   e_ij = k*(a.xr_i + a.xl_j) + (1-k) * sum_d a_d * relu(xr_id + xl_jd)
        # Rank-1 slope term lives on tiny [T,1]/[1,N] vectors; the wide [T,N] loop is
        # 4 VPU ops / element / channel (add, max-relu, mul, accumulate).
        r = None                                     # [T,1]  k * (a . xr_i)
        c = None                                     # [1,N]  k * (a . xl_j)
        acc_s = None                                 # [T,N]  (1-k) * relu part
        for d in range(out_ch):
            a_d = att_ref[h, d]                      # f32 scalar from SMEM
            col32 = xr[:, c0 + d:c0 + d + 1]         # [T,1]  dst values (sublanes)
            row32 = xlt[c0 + d:c0 + d + 1, :]        # [1,N]  src values (lanes)
            rv = (k * a_d) * col32
            cv = (k * a_d) * row32
            r = rv if r is None else r + rv
            c = cv if c is None else c + cv
            # wide part (packed bf16 on v6e/v7x, f32 on v5e)
            col = col32.astype(score_dtype)
            row = row32.astype(score_dtype)
            s = jnp.maximum(col + row, 0.0)          # relu in max-form
            term = ((1.0 - k) * a_d).astype(score_dtype) * s
            acc_s = term if acc_s is None else acc_s + term

        e = (r + c) + adj_bias + acc_s.astype(jnp.float32)     # [T, N]
        m = jnp.max(e, axis=-1, keepdims=True)                 # finite: self-loops present
        p = jnp.exp(e - m)                                     # non-edges underflow to 0
        denom = jnp.maximum(jnp.sum(p, axis=-1, keepdims=True), 1e-20)
        # TODO(synk): attention dropout omitted (eval-mode forward).
        agg = jnp.dot(p, xl[:, c0:c0 + out_ch], preferred_element_type=jnp.float32)
        head_outs.append(agg * (1.0 / denom))                  # exact normalization

    if concat:
        out = jnp.concatenate(head_outs, axis=-1)              # [T, H*D]
    else:
        summed = head_outs[0]
        for ho in head_outs[1:]:
            summed = summed + ho
        out = summed * (1.0 / heads)                           # [T, D]
    return out + bias_ref[...]


def _gatv2_kernel(att_ref, xr_ref, xl_ref, xlt_ref, adjb_ref, bias_ref, o_ref, *,
                  heads, out_ch, negative_slope, concat, score_dtype):
    o_ref[...] = _gatv2_tile_body(
        att_ref, xr_ref, xl_ref, xlt_ref, adjb_ref, bias_ref,
        heads=heads, out_ch=out_ch, negative_slope=negative_slope,
        concat=concat, score_dtype=score_dtype)


def _gatv2_pool_kernel(att_ref, xr_ref, xl_ref, xlt_ref, adjb_ref, bias_ref, gid_ref,
                       o_ref, *, heads, out_ch, negative_slope, concat, score_dtype,
                       num_graphs):
    """GATv2 heads + fused partial global_max_pool for one dst tile.

    Emits this tile's per-graph running max (block [1, B, W]); the tiny
    [n_tiles, B, W] result is reduced across tiles in the classifier kernel, so the
    narrow [N, W] per-node conv2 output never round-trips HBM.
    """
    out = _gatv2_tile_body(
        att_ref, xr_ref, xl_ref, xlt_ref, adjb_ref, bias_ref,
        heads=heads, out_ch=out_ch, negative_slope=negative_slope,
        concat=concat, score_dtype=score_dtype)                # [T, W]
    gid = gid_ref[...]                                         # [T, 1] int32 (-1 = padding)
    rows = [jnp.max(jnp.where(gid == g, out, NEG_INF), axis=0, keepdims=True)
            for g in range(num_graphs)]
    o_ref[0] = jnp.concatenate(rows, axis=0)                   # [B, W] partial max


def _classifier_kernel(parts_ref, w1_ref, b1_ref, w2_ref, b2_ref, o_ref):
    """max over per-tile partials -> Linear -> ReLU -> Linear (Dropout = identity in eval)."""
    pooled = jnp.max(parts_ref[...], axis=0)                   # [B, hidden]
    h = jnp.dot(pooled, w1_ref[...], preferred_element_type=jnp.float32) + b1_ref[...]
    h = jnp.maximum(h, 0.0)
    # TODO(synk): classifier Dropout omitted (eval-mode identity).
    o_ref[...] = jnp.dot(h, w2_ref[...], preferred_element_type=jnp.float32) + b2_ref[...]


# ----------------------------------------------------------------------------
# Layer wrappers (thin JAX glue; hot paths inside pallas_call)
# ----------------------------------------------------------------------------
def gatv2_conv(x, adj_bias, p, *, heads, out_ch, concat, dst_tile, score_dtype,
               vmem_limit, negative_slope=0.2, pool_batch=None, num_graphs=None):
    n = x.shape[0]
    hd = heads * out_ch
    t = dst_tile
    n_tiles = n // t
    out_w = hd if concat else out_ch

    # Fused lin_l/lin_r projection. MXU-trivial at these K/N sizes -> plain XLA
    # (removes two pallas_call launches + the separate xl.T HBM round trip).
    w_all = jnp.concatenate([p["w_l"], p["w_r"]], axis=1)      # [F_in, 2*H*D]
    b_all = jnp.concatenate([p["b_l"], p["b_r"]])
    xlr = x @ w_all + b_all
    xl = xlr[:, :hd]                                           # source-transformed features
    xr = xlr[:, hd:]                                           # target-transformed features
    xl_t = xl.T                                                # [H*D, N] (src on lanes)

    bias = p["bias"].reshape(1, out_w)
    att = p["att"]                                             # [H, D]

    adj_bytes = jnp.dtype(adj_bias.dtype).itemsize
    cost = pl.CostEstimate(
        flops=heads * (4 * n * n * out_ch + 8 * n * n),
        transcendentals=heads * n * n,
        bytes_accessed=adj_bytes * n * n + 4 * (3 * n * hd + n * out_w),
    )

    in_specs = [
        pl.BlockSpec(memory_space=pltpu.MemorySpace.SMEM),     # att [H, D] scalar reads
        pl.BlockSpec((t, hd), lambda i: (i, 0)),               # xr (dst tile)
        pl.BlockSpec((n, hd), lambda i: (0, 0)),               # xl (all sources, const block)
        pl.BlockSpec((hd, n), lambda i: (0, 0)),               # xl^T (const block)
        pl.BlockSpec((t, n), lambda i: (i, 0)),                # additive edge mask stream
        pl.BlockSpec((1, out_w), lambda i: (0, 0)),            # conv bias (const block)
    ]
    body_kw = dict(heads=heads, out_ch=out_ch, negative_slope=negative_slope,
                   concat=concat, score_dtype=score_dtype)
    cparams = pltpu.CompilerParams(
        dimension_semantics=("parallel",),                     # dst tiles are independent
        vmem_limit_bytes=vmem_limit,
    )

    if pool_batch is None:
        return pl.pallas_call(
            functools.partial(_gatv2_kernel, **body_kw),
            out_shape=jax.ShapeDtypeStruct((n, out_w), jnp.float32),
            grid=(n_tiles,),
            in_specs=in_specs,
            out_specs=pl.BlockSpec((t, out_w), lambda i: (i, 0)),
            compiler_params=cparams,
            cost_estimate=cost,
        )(att, xr, xl, xl_t, adj_bias, bias)

    # conv + fused partial global_max_pool (per-tile, per-graph running max)
    return pl.pallas_call(
        functools.partial(_gatv2_pool_kernel, num_graphs=num_graphs, **body_kw),
        out_shape=jax.ShapeDtypeStruct((n_tiles, num_graphs, out_w), jnp.float32),
        grid=(n_tiles,),
        in_specs=in_specs + [pl.BlockSpec((t, 1), lambda i: (i, 0))],
        out_specs=pl.BlockSpec((1, num_graphs, out_w), lambda i: (i, 0, 0)),
        compiler_params=cparams,
        cost_estimate=cost,
    )(att, xr, xl, xl_t, adj_bias, bias, pool_batch)


def classify(pooled_parts, params):
    num_graphs = pooled_parts.shape[1]
    hidden = params["cls_w1"].shape[1]
    out_ch = params["cls_w2"].shape[1]
    return pl.pallas_call(
        _classifier_kernel,
        out_shape=jax.ShapeDtypeStruct((num_graphs, out_ch), jnp.float32),
    )(pooled_parts, params["cls_w1"], params["cls_b1"].reshape(1, hidden),
      params["cls_w2"], params["cls_b2"].reshape(1, out_ch))


def gat_forward(params, x, adj, batch, *, heads, hidden, num_graphs, dst_tile=None):
    n = x.shape[0]
    t = dst_tile if dst_tile is not None else _pick_dst_tile(n)
    assert t % 8 == 0, "dst tile must be a multiple of 8 sublanes"

    # Pad N up to a tile multiple (instead of a single-step-grid fallback): padded nodes
    # get zero features, a self-loop (keeps their softmax finite) and batch id -1 so
    # they can never win the max pool.
    n_pad = _round_up(n, t)
    batch = batch.astype(jnp.int32)
    if n_pad != n:
        pad = n_pad - n
        x = jnp.pad(x, ((0, pad), (0, 0)))
        adj = jnp.pad(adj, ((0, pad), (0, pad)))
        rng = jnp.arange(n, n_pad)
        adj = adj.at[rng, rng].set(1.0)
        batch = jnp.concatenate([batch, jnp.full((pad,), -1, jnp.int32)])

    # Additive edge mask (0 on edges, -1e30 elsewhere). Streamed as bf16 when the dst
    # tile respects bf16 sublane tiling: halves the dominant adj HBM traffic.
    adj_dtype = jnp.bfloat16 if t % 16 == 0 else jnp.float32
    adj_bias = ((adj - 1.0) * 1e30).astype(adj_dtype)
    batch_col = batch.reshape(n_pad, 1)

    score_dtype = jnp.bfloat16 if _BF16_SCORES else jnp.float32
    hd = heads * hidden
    vmem_limit = _vmem_limit(t, n_pad, hd, jnp.dtype(adj_dtype).itemsize)

    # TODO(synk): for very large N, add a second ("arbitrary") grid axis over source
    # tiles with online-softmax scratch so VMEM scales as T_dst x T_src, not T x N.

    # conv1: concat heads -> [N_pad, heads*hidden]
    x1 = gatv2_conv(x, adj_bias, params["conv1"], heads=heads, out_ch=hidden,
                    concat=True, dst_tile=t, score_dtype=score_dtype,
                    vmem_limit=vmem_limit)
    # conv2 (mean over heads) fused with global_max_pool -> [n_tiles, B, hidden]
    pooled_parts = gatv2_conv(x1, adj_bias, params["conv2"], heads=heads,
                              out_ch=hidden, concat=False, dst_tile=t,
                              score_dtype=score_dtype, vmem_limit=vmem_limit,
                              pool_batch=batch_col, num_graphs=num_graphs)
    # finish the max across tiles + MLP classifier
    return classify(pooled_parts, params)


# ----------------------------------------------------------------------------
# Deterministic parameter init (glorot-uniform-ish, synthetic weights)
# ----------------------------------------------------------------------------
def glorot(key, shape):
    fan_in, fan_out = shape[0], shape[-1]
    limit = jnp.sqrt(6.0 / (fan_in + fan_out))
    return jax.random.uniform(key, shape, jnp.float32, -limit, limit)


def init_params(key, in_ch, hidden, out_ch, heads):
    ks = jax.random.split(key, 12)
    return {
        "conv1": {
            "w_l": glorot(ks[0], (in_ch, heads * hidden)),
            "b_l": jnp.zeros((heads * hidden,), jnp.float32),
            "w_r": glorot(ks[1], (in_ch, heads * hidden)),
            "b_r": jnp.zeros((heads * hidden,), jnp.float32),
            "att": glorot(ks[2], (heads, hidden)),
            "bias": jnp.zeros((heads * hidden,), jnp.float32),    # concat=True
        },
        "conv2": {
            "w_l": glorot(ks[3], (heads * hidden, heads * hidden)),
            "b_l": jnp.zeros((heads * hidden,), jnp.float32),
            "w_r": glorot(ks[4], (heads * hidden, heads * hidden)),
            "b_r": jnp.zeros((heads * hidden,), jnp.float32),
            "att": glorot(ks[5], (heads, hidden)),
            "bias": jnp.zeros((hidden,), jnp.float32),            # concat=False
        },
        "cls_w1": glorot(ks[6], (hidden, hidden)),
        "cls_b1": jnp.zeros((hidden,), jnp.float32),
        "cls_w2": glorot(ks[7], (hidden, out_ch)),
        "cls_b2": jnp.zeros((out_ch,), jnp.float32),
    }


# ----------------------------------------------------------------------------
if __name__ == "__main__":
    key = jax.random.PRNGKey(0)
    in_ch, hidden, out_classes, heads = 8, 8, 4, 2
    nodes_per_graph, num_graphs = 16, 2
    n_nodes = nodes_per_graph * num_graphs

    k_x, k_p = jax.random.split(key)
    x = jax.random.normal(k_x, (n_nodes, in_ch), jnp.float32)

    # Deterministic graph: bidirectional ring inside each of the 2 graphs.
    src, dst = [], []
    for g in range(num_graphs):
        for i in range(nodes_per_graph):
            u = g * nodes_per_graph + i
            v = g * nodes_per_graph + (i + 1) % nodes_per_graph
            src += [u, v]
            dst += [v, u]
    edge_index = jnp.array([src, dst], dtype=jnp.int32)              # [2, E]
    batch = jnp.repeat(jnp.arange(num_graphs, dtype=jnp.int32), nodes_per_graph)

    # Dense adjacency mask adj[dst, src] + self-loops (GATv2Conv add_self_loops=True).
    adj = jnp.zeros((n_nodes, n_nodes), jnp.float32)
    adj = adj.at[edge_index[1], edge_index[0]].set(1.0)
    adj = adj.at[jnp.arange(n_nodes), jnp.arange(n_nodes)].set(1.0)

    params = init_params(k_p, in_ch, hidden, out_classes, heads)

    fwd = jax.jit(functools.partial(
        gat_forward, heads=heads, hidden=hidden, num_graphs=num_graphs,
        dst_tile=16))  # 2 dst tiles -> exercises the tiled/parallel grid + bf16 adj stream
    out = fwd(params, x, adj, batch)
    jax.block_until_ready(out)
    assert out.shape == (num_graphs, out_classes)
    print("KERNEL_OK")
</pallas_src>

<mosaic_0001>
module attributes {stable_mosaic.version = 11 : i64} {
  func.func @_gatv2_pool_kernel(%arg0: i32, %arg1: memref<2x8xf32, #tpu.memory_space<smem>>, %arg2: memref<16x16xf32, #tpu.memory_space<vmem>>, %arg3: memref<32x16xf32, #tpu.memory_space<vmem>>, %arg4: memref<16x32xf32, #tpu.memory_space<vmem>>, %arg5: memref<16x32xbf16, #tpu.memory_space<vmem>>, %arg6: memref<1x8xf32, #tpu.memory_space<vmem>>, %arg7: memref<16x1xi32, #tpu.memory_space<vmem>>, %arg8: memref<1x2x8xf32, #tpu.memory_space<vmem>>) attributes {dimension_semantics = [#tpu.dimension_semantics<parallel>], iteration_bounds = array<i64: 2>, scalar_prefetch = 0 : i64, scratch_operands = 0 : i64, tpu.core_type = #tpu.core_type<tc>, window_params = [{transform_indices = @transform_0, window_bounds = array<i64: 2, 8>}, {transform_indices = @transform_1, window_bounds = array<i64: 16, 16>}, {pipeline_mode = #tpu.pipeline_mode<synchronous>, transform_indices = @transform_2, window_bounds = array<i64: 32, 16>}, {pipeline_mode = #tpu.pipeline_mode<synchronous>, transform_indices = @transform_3, window_bounds = array<i64: 16, 32>}, {transform_indices = @transform_4, window_bounds = array<i64: 16, 32>}, {pipeline_mode = #tpu.pipeline_mode<synchronous>, transform_indices = @transform_5, window_bounds = array<i64: 1, 8>}, {transform_indices = @transform_6, window_bounds = array<i64: 16, 1>}, {transform_indices = @transform_7, window_bounds = array<i64: 1, 2, 8>}]} {
    %c0 = arith.constant 0 : index
    %c0_0 = arith.constant 0 : index
    %0 = vector.load %arg5[%c0, %c0_0] : memref<16x32xbf16, #tpu.memory_space<vmem>>, vector<16x32xbf16>
    %1 = arith.extf %0 : vector<16x32xbf16> to vector<16x32xf32>
    %c0_1 = arith.constant 0 : index
    %c0_2 = arith.constant 0 : index
    %2 = vector.load %arg2[%c0_1, %c0_2] : memref<16x16xf32, #tpu.memory_space<vmem>>, vector<16x16xf32>
    %c0_3 = arith.constant 0 : index
    %c0_4 = arith.constant 0 : index
    %3 = vector.load %arg3[%c0_3, %c0_4] : memref<32x16xf32, #tpu.memory_space<vmem>>, vector<32x16xf32>
    %c0_5 = arith.constant 0 : index
    %c0_6 = arith.constant 0 : index
    %4 = vector.load %arg4[%c0_5, %c0_6] : memref<16x32xf32, #tpu.memory_space<vmem>>, vector<16x32xf32>
    %c0_7 = arith.constant 0 : index
    %c0_8 = arith.constant 0 : index
    %5 = memref.load %arg1[%c0_7, %c0_8] : memref<2x8xf32, #tpu.memory_space<smem>>
    %6 = vector.extract_strided_slice %2 {offsets = [0, 0], sizes = [16, 1], strides = [1, 1]} : vector<16x16xf32> to vector<16x1xf32>
    %7 = vector.extract_strided_slice %4 {offsets = [0, 0], sizes = [1, 32], strides = [1, 1]} : vector<16x32xf32> to vector<1x32xf32>
    %cst = arith.constant 2.000000e-01 : f32
    %8 = arith.mulf %cst, %5 : f32
    %9 = vector.broadcast %8 : f32 to vector<16x1xf32>
    %10 = arith.mulf %9, %6 : vector<16x1xf32>
    %cst_9 = arith.constant 2.000000e-01 : f32
    %11 = arith.mulf %cst_9, %5 : f32
    %12 = vector.broadcast %11 : f32 to vector<1x32xf32>
    %13 = arith.mulf %12, %7 : vector<1x32xf32>
    %14 = vector.broadcast %6 : vector<16x1xf32> to vector<16x32xf32>
    %15 = vector.broadcast %7 : vector<1x32xf32> to vector<16x32xf32>
    %16 = arith.addf %14, %15 : vector<16x32xf32>
    %cst_10 = arith.constant 0.000000e+00 : f32
    %17 = vector.broadcast %cst_10 : f32 to vector<16x32xf32>
    %18 = arith.maximumf %16, %17 : vector<16x32xf32>
    %cst_11 = arith.constant 8.000000e-01 : f32
    %19 = arith.mulf %cst_11, %5 : f32
    %20 = vector.broadcast %19 : f32 to vector<16x32xf32>
    %21 = arith.mulf %20, %18 : vector<16x32xf32>
    %c0_12 = arith.constant 0 : index
    %c1 = arith.constant 1 : index
    %22 = memref.load %arg1[%c0_12, %c1] : memref<2x8xf32, #tpu.memory_space<smem>>
    %23 = vector.extract_strided_slice %2 {offsets = [0, 1], sizes = [16, 1], strides = [1, 1]} : vector<16x16xf32> to vector<16x1xf32>
    %24 = vector.extract_strided_slice %4 {offsets = [1, 0], sizes = [1, 32], strides = [1, 1]} : vector<16x32xf32> to vector<1x32xf32>
    %cst_13 = arith.constant 2.000000e-01 : f32
    %25 = arith.mulf %cst_13, %22 : f32
    %26 = vector.broadcast %25 : f32 to vector<16x1xf32>
    %27 = arith.mulf %26, %23 : vector<16x1xf32>
    %cst_14 = arith.constant 2.000000e-01 : f32
    %28 = arith.mulf %cst_14, %22 : f32
    %29 = vector.broadcast %28 : f32 to vector<1x32xf32>
    %30 = arith.mulf %29, %24 : vector<1x32xf32>
    %31 = arith.addf %10, %27 : vector<16x1xf32>
    %32 = arith.addf %13, %30 : vector<1x32xf32>
    %33 = vector.broadcast %23 : vector<16x1xf32> to vector<16x32xf32>
    %34 = vector.broadcast %24 : vector<1x32xf32> to vector<16x32xf32>
    %35 = arith.addf %33, %34 : vector<16x32xf32>
    %cst_15 = arith.constant 0.000000e+00 : f32
    %36 = vector.broadcast %cst_15 : f32 to vector<16x32xf32>
    %37 = arith.maximumf %35, %36 : vector<16x32xf32>
    %cst_16 = arith.constant 8.000000e-01 : f32
    %38 = arith.mulf %cst_16, %22 : f32
    %39 = vector.broadcast %38 : f32 to vector<16x32xf32>
    %40 = arith.mulf %39, %37 : vector<16x32xf32>
    %41 = arith.addf %21, %40 : vector<16x32xf32>
    %c0_17 = arith.constant 0 : index
    %c2 = arith.constant 2 : index
    %42 = memref.load %arg1[%c0_17, %c2] : memref<2x8xf32, #tpu.memory_space<smem>>
    %43 = vector.extract_strided_slice %2 {offsets = [0, 2], sizes = [16, 1], strides = [1, 1]} : vector<16x16xf32> to vector<16x1xf32>
    %44 = vector.extract_strided_slice %4 {offsets = [2, 0], sizes = [1, 32], strides = [1, 1]} : vector<16x32xf32> to vector<1x32xf32>
    %cst_18 = arith.constant 2.000000e-01 : f32
    %45 = arith.mulf %cst_18, %42 : f32
    %46 = vector.broadcast %45 : f32 to vector<16x1xf32>
    %47 = arith.mulf %46, %43 : vector<16x1xf32>
    %cst_19 = arith.constant 2.000000e-01 : f32
    %48 = arith.mulf %cst_19, %42 : f32
    %49 = vector.broadcast %48 : f32 to vector<1x32xf32>
    %50 = arith.mulf %49, %44 : vector<1x32xf32>
    %51 = arith.addf %31, %47 : vector<16x1xf32>
    %52 = arith.addf %32, %50 : vector<1x32xf32>
    %53 = vector.broadcast %43 : vector<16x1xf32> to vector<16x32xf32>
    %54 = vector.broadcast %44 : vector<1x32xf32> to vector<16x32xf32>
    %55 = arith.addf %53, %54 : vector<16x32xf32>
    %cst_20 = arith.constant 0.000000e+00 : f32
    %56 = vector.broadcast %cst_20 : f32 to vector<16x32xf32>
    %57 = arith.maximumf %55, %56 : vector<16x32xf32>
    %cst_21 = arith.constant 8.000000e-01 : f32
    %58 = arith.mulf %cst_21, %42 : f32
    %59 = vector.broadcast %58 : f32 to vector<16x32xf32>
    %60 = arith.mulf %59, %57 : vector<16x32xf32>
    %61 = arith.addf %41, %60 : vector<16x32xf32>
    %c0_22 = arith.constant 0 : index
    %c3 = arith.constant 3 : index
    %62 = memref.load %arg1[%c0_22, %c3] : memref<2x8xf32, #tpu.memory_space<smem>>
    %63 = vector.extract_strided_slice %2 {offsets = [0, 3], sizes = [16, 1], strides = [1, 1]} : vector<16x16xf32> to vector<16x1xf32>
    %64 = vector.extract_strided_slice %4 {offsets = [3, 0], sizes = [1, 32], strides = [1, 1]} : vector<16x32xf32> to vector<1x32xf32>
    %cst_23 = arith.constant 2.000000e-01 : f32
    %65 = arith.mulf %cst_23, %62 : f32
    %66 = vector.broadcast %65 : f32 to vector<16x1xf32>
    %67 = arith.mulf %66, %63 : vector<16x1xf32>
    %cst_24 = arith.constant 2.000000e-01 : f32
    %68 = arith.mulf %cst_24, %62 : f32
    %69 = vector.broadcast %68 : f32 to vector<1x32xf32>
    %70 = arith.mulf %69, %64 : vector<1x32xf32>
    %71 = arith.addf %51, %67 : vector<16x1xf32>
    %72 = arith.addf %52, %70 : vector<1x32xf32>
    %73 = vector.broadcast %63 : vector<16x1xf32> to vector<16x32xf32>
    %74 = vector.broadcast %64 : vector<1x32xf32> to vector<16x32xf32>
    %75 = arith.addf %73, %74 : vector<16x32xf32>
    %cst_25 = arith.constant 0.000000e+00 : f32
    %76 = vector.broadcast %cst_25 : f32 to vector<16x32xf32>
    %77 = arith.maximumf %75, %76 : vector<16x32xf32>
    %cst_26 = arith.constant 8.000000e-01 : f32
    %78 = arith.mulf %cst_26, %62 : f32
    %79 = vector.broadcast %78 : f32 to vector<16x32xf32>
    %80 = arith.mulf %79, %77 : vector<16x32xf32>
    %81 = arith.addf %61, %80 : vector<16x32xf32>
    %c0_27 = arith.constant 0 : index
    %c4 = arith.constant 4 : index
    %82 = memref.load %arg1[%c0_27, %c4] : memref<2x8xf32, #tpu.memory_space<smem>>
    %83 = vector.extract_strided_slice %2 {offsets = [0, 4], sizes = [16, 1], strides = [1, 1]} : vector<16x16xf32> to vector<16x1xf32>
    %84 = vector.extract_strided_slice %4 {offsets = [4, 0], sizes = [1, 32], strides = [1, 1]} : vector<16x32xf32> to vector<1x32xf32>
    %cst_28 = arith.constant 2.000000e-01 : f32
    %85 = arith.mulf %cst_28, %82 : f32
    %86 = vector.broadcast %85 : f32 to vector<16x1xf32>
    %87 = arith.mulf %86, %83 : vector<16x1xf32>
    %cst_29 = arith.constant 2.000000e-01 : f32
    %88 = arith.mulf %cst_29, %82 : f32
    %89 = vector.broadcast %88 : f32 to vector<1x32xf32>
    %90 = arith.mulf %89, %84 : vector<1x32xf32>
    %91 = arith.addf %71, %87 : vector<16x1xf32>
    %92 = arith.addf %72, %90 : vector<1x32xf32>
    %93 = vector.broadcast %83 : vector<16x1xf32> to vector<16x32xf32>
    %94 = vector.broadcast %84 : vector<1x32xf32> to vector<16x32xf32>
    %95 = arith.addf %93, %94 : vector<16x32xf32>
    %cst_30 = arith.constant 0.000000e+00 : f32
    %96 = vector.broadcast %cst_30 : f32 to vector<16x32xf32>
    %97 = arith.maximumf %95, %96 : vector<16x32xf32>
    %cst_31 = arith.constant 8.000000e-01 : f32
    %98 = arith.mulf %cst_31, %82 : f32
    %99 = vector.broadcast %98 : f32 to vector<16x32xf32>
    %100 = arith.mulf %99, %97 : vector<16x32xf32>
    %101 = arith.addf %81, %100 : vector<16x32xf32>
    %c0_32 = arith.constant 0 : index
    %c5 = arith.constant 5 : index
    %102 = memref.load %arg1[%c0_32, %c5] : memref<2x8xf32, #tpu.memory_space<smem>>
    %103 = vector.extract_strided_slice %2 {offsets = [0, 5], sizes = [16, 1], strides = [1, 1]} : vector<16x16xf32> to vector<16x1xf32>
    %104 = vector.extract_strided_slice %4 {offsets = [5, 0], sizes = [1, 32], strides = [1, 1]} : vector<16x32xf32> to vector<1x32xf32>
    %cst_33 = arith.constant 2.000000e-01 : f32
    %105 = arith.mulf %cst_33, %102 : f32
    %106 = vector.broadcast %105 : f32 to vector<16x1xf32>
    %107 = arith.mulf %106, %103 : vector<16x1xf32>
    %cst_34 = arith.constant 2.000000e-01 : f32
    %108 = arith.mulf %cst_34, %102 : f32
    %109 = vector.broadcast %108 : f32 to vector<1x32xf32>
    %110 = arith.mulf %109, %104 : vector<1x32xf32>
    %111 = arith.addf %91, %107 : vector<16x1xf32>
    %112 = arith.addf %92, %110 : vector<1x32xf32>
    %113 = vector.broadcast %103 : vector<16x1xf32> to vector<16x32xf32>
    %114 = vector.broadcast %104 : vector<1x32xf32> to vector<16x32xf32>
    %115 = arith.addf %113, %114 : vector<16x32xf32>
    %cst_35 = arith.constant 0.000000e+00 : f32
    %116 = vector.broadcast %cst_35 : f32 to vector<16x32xf32>
    %117 = arith.maximumf %115, %116 : vector<16x32xf32>
    %cst_36 = arith.constant 8.000000e-01 : f32
    %118 = arith.mulf %cst_36, %102 : f32
    %119 = vector.broadcast %118 : f32 to vector<16x32xf32>
    %120 = arith.mulf %119, %117 : vector<16x32xf32>
    %121 = arith.addf %101, %120 : vector<16x32xf32>
    %c0_37 = arith.constant 0 : index
    %c6 = arith.constant 6 : index
    %122 = memref.load %arg1[%c0_37, %c6] : memref<2x8xf32, #tpu.memory_space<smem>>
    %123 = vector.extract_strided_slice %2 {offsets = [0, 6], sizes = [16, 1], strides = [1, 1]} : vector<16x16xf32> to vector<16x1xf32>
    %124 = vector.extract_strided_slice %4 {offsets = [6, 0], sizes = [1, 32], strides = [1, 1]} : vector<16x32xf32> to vector<1x32xf32>
    %cst_38 = arith.constant 2.000000e-01 : f32
    %125 = arith.mulf %cst_38, %122 : f32
    %126 = vector.broadcast %125 : f32 to vector<16x1xf32>
    %127 = arith.mulf %126, %123 : vector<16x1xf32>
    %cst_39 = arith.constant 2.000000e-01 : f32
    %128 = arith.mulf %cst_39, %122 : f32
    %129 = vector.broadcast %128 : f32 to vector<1x32xf32>
    %130 = arith.mulf %129, %124 : vector<1x32xf32>
    %131 = arith.addf %111, %127 : vector<16x1xf32>
    %132 = arith.addf %112, %130 : vector<1x32xf32>
    %133 = vector.broadcast %123 : vector<16x1xf32> to vector<16x32xf32>
    %134 = vector.broadcast %124 : vector<1x32xf32> to vector<16x32xf32>
    %135 = arith.addf %133, %134 : vector<16x32xf32>
    %cst_40 = arith.constant 0.000000e+00 : f32
    %136 = vector.broadcast %cst_40 : f32 to vector<16x32xf32>
    %137 = arith.maximumf %135, %136 : vector<16x32xf32>
    %cst_41 = arith.constant 8.000000e-01 : f32
    %138 = arith.mulf %cst_41, %122 : f32
    %139 = vector.broadcast %138 : f32 to vector<16x32xf32>
    %140 = arith.mulf %139, %137 : vector<16x32xf32>
    %141 = arith.addf %121, %140 : vector<16x32xf32>
    %c0_42 = arith.constant 0 : index
    %c7 = arith.constant 7 : index
    %142 = memref.load %arg1[%c0_42, %c7] : memref<2x8xf32, #tpu.memory_space<smem>>
    %143 = vector.extract_strided_slice %2 {offsets = [0, 7], sizes = [16, 1], strides = [1, 1]} : vector<16x16xf32> to vector<16x1xf32>
    %144 = vector.extract_strided_slice %4 {offsets = [7, 0], sizes = [1, 32], strides = [1, 1]} : vector<16x32xf32> to vector<1x32xf32>
    %cst_43 = arith.constant 2.000000e-01 : f32
    %145 = arith.mulf %cst_43, %142 : f32
    %146 = vector.broadcast %145 : f32 to vector<16x1xf32>
    %147 = arith.mulf %146, %143 : vector<16x1xf32>
    %cst_44 = arith.constant 2.000000e-01 : f32
    %148 = arith.mulf %cst_44, %142 : f32
    %149 = vector.broadcast %148 : f32 to vector<1x32xf32>
    %150 = arith.mulf %149, %144 : vector<1x32xf32>
    %151 = arith.addf %131, %147 : vector<16x1xf32>
    %152 = arith.addf %132, %150 : vector<1x32xf32>
    %153 = vector.broadcast %143 : vector<16x1xf32> to vector<16x32xf32>
    %154 = vector.broadcast %144 : vector<1x32xf32> to vector<16x32xf32>
    %155 = arith.addf %153, %154 : vector<16x32xf32>
    %cst_45 = arith.constant 0.000000e+00 : f32
    %156 = vector.broadcast %cst_45 : f32 to vector<16x32xf32>
    %157 = arith.maximumf %155, %156 : vector<16x32xf32>
    %cst_46 = arith.constant 8.000000e-01 : f32
    %158 = arith.mulf %cst_46, %142 : f32
    %159 = vector.broadcast %158 : f32 to vector<16x32xf32>
    %160 = arith.mulf %159, %157 : vector<16x32xf32>
    %161 = arith.addf %141, %160 : vector<16x32xf32>
    %162 = vector.broadcast %151 : vector<16x1xf32> to vector<16x32xf32>
    %163 = vector.broadcast %152 : vector<1x32xf32> to vector<16x32xf32>
    %164 = arith.addf %162, %163 : vector<16x32xf32>
    %165 = arith.addf %164, %1 : vector<16x32xf32>
    %166 = arith.addf %165, %161 : vector<16x32xf32>
    %cst_47 = arith.constant dense<0xFF800000> : vector<16xf32>
    %167 = vector.multi_reduction <maximumf>, %166, %cst_47 [1] : vector<16x32xf32> to vector<16xf32>
    %168 = vector.shape_cast %167 : vector<16xf32> to vector<16x1xf32>
    %169 = vector.broadcast %168 : vector<16x1xf32> to vector<16x32xf32>
    %170 = arith.subf %166, %169 : vector<16x32xf32>
    %171 = math.exp %170 : vector<16x32xf32>
    %cst_48 = arith.constant dense<0.000000e+00> : vector<16xf32>
    %172 = vector.multi_reduction <add>, %171, %cst_48 [1] : vector<16x32xf32> to vector<16xf32>
    %173 = vector.shape_cast %172 : vector<16xf32> to vector<16x1xf32>
    %cst_49 = arith.constant 9.99999968E-21 : f32
    %174 = vector.broadcast %cst_49 : f32 to vector<16x1xf32>
    %175 = arith.maximumf %173, %174 : vector<16x1xf32>
    %176 = vector.extract_strided_slice %3 {offsets = [0, 0], sizes = [32, 8], strides = [1, 1]} : vector<32x16xf32> to vector<32x8xf32>
    %cst_50 = arith.constant dense<0.000000e+00> : vector<16x8xf32>
    %177 = tpu.matmul %171, %176, %cst_50 {dimension_numbers = #tpu.dot_dimension_numbers<[1], [0], [0], [1], [0, 0, 1, 1], [], []>} : vector<16x32xf32>, vector<32x8xf32>, vector<16x8xf32> -> vector<16x8xf32>
    %cst_51 = arith.constant 1.000000e+00 : f32
    %178 = vector.broadcast %cst_51 : f32 to vector<16x1xf32>
    %179 = arith.divf %178, %175 : vector<16x1xf32>
    %180 = vector.broadcast %179 : vector<16x1xf32> to vector<16x8xf32>
    %181 = arith.mulf %177, %180 : vector<16x8xf32>
    %c1_52 = arith.constant 1 : index
    %c0_53 = arith.constant 0 : index
    %182 = memref.load %arg1[%c1_52, %c0_53] : memref<2x8xf32, #tpu.memory_space<smem>>
    %183 = vector.extract_strided_slice %2 {offsets = [0, 8], sizes = [16, 1], strides = [1, 1]} : vector<16x16xf32> to vector<16x1xf32>
    %184 = vector.extract_strided_slice %4 {offsets = [8, 0], sizes = [1, 32], strides = [1, 1]} : vector<16x32xf32> to vector<1x32xf32>
    %cst_54 = arith.constant 2.000000e-01 : f32
    %185 = arith.mulf %cst_54, %182 : f32
    %186 = vector.broadcast %185 : f32 to vector<16x1xf32>
    %187 = arith.mulf %186, %183 : vector<16x1xf32>
    %cst_55 = arith.constant 2.000000e-01 : f32
    %188 = arith.mulf %cst_55, %182 : f32
    %189 = vector.broadcast %188 : f32 to vector<1x32xf32>
    %190 = arith.mulf %189, %184 : vector<1x32xf32>
    %191 = vector.broadcast %183 : vector<16x1xf32> to vector<16x32xf32>
    %192 = vector.broadcast %184 : vector<1x32xf32> to vector<16x32xf32>
    %193 = arith.addf %191, %192 : vector<16x32xf32>
    %cst_56 = arith.constant 0.000000e+00 : f32
    %194 = vector.broadcast %cst_56 : f32 to vector<16x32xf32>
    %195 = arith.maximumf %193, %194 : vector<16x32xf32>
    %cst_57 = arith.constant 8.000000e-01 : f32
    %196 = arith.mulf %cst_57, %182 : f32
    %197 = vector.broadcast %196 : f32 to vector<16x32xf32>
    %198 = arith.mulf %197, %195 : vector<16x32xf32>
    %c1_58 = arith.constant 1 : index
    %c1_59 = arith.constant 1 : index
    %199 = memref.load %arg1[%c1_58, %c1_59] : memref<2x8xf32, #tpu.memory_space<smem>>
    %200 = vector.extract_strided_slice %2 {offsets = [0, 9], sizes = [16, 1], strides = [1, 1]} : vector<16x16xf32> to vector<16x1xf32>
    %201 = vector.extract_strided_slice %4 {offsets = [9, 0], sizes = [1, 32], strides = [1, 1]} : vector<16x32xf32> to vector<1x32xf32>
    %cst_60 = arith.constant 2.000000e-01 : f32
    %202 = arith.mulf %cst_60, %199 : f32
    %203 = vector.broadcast %202 : f32 to vector<16x1xf32>
    %204 = arith.mulf %203, %200 : vector<16x1xf32>
    %cst_61 = arith.constant 2.000000e-01 : f32
    %205 = arith.mulf %cst_61, %199 : f32
    %206 = vector.broadcast %205 : f32 to vector<1x32xf32>
    %207 = arith.mulf %206, %201 : vector<1x32xf32>
    %208 = arith.addf %187, %204 : vector<16x1xf32>
    %209 = arith.addf %190, %207 : vector<1x32xf32>
    %210 = vector.broadcast %200 : vector<16x1xf32> to vector<16x32xf32>
    %211 = vector.broadcast %201 : vector<1x32xf32> to vector<16x32xf32>
    %212 = arith.addf %210, %211 : vector<16x32xf32>
    %cst_62 = arith.constant 0.000000e+00 : f32
    %213 = vector.broadcast %cst_62 : f32 to vector<16x32xf32>
    %214 = arith.maximumf %212, %213 : vector<16x32xf32>
    %cst_63 = arith.constant 8.000000e-01 : f32
    %215 = arith.mulf %cst_63, %199 : f32
    %216 = vector.broadcast %215 : f32 to vector<16x32xf32>
    %217 = arith.mulf %216, %214 : vector<16x32xf32>
    %218 = arith.addf %198, %217 : vector<16x32xf32>
    %c1_64 = arith.constant 1 : index
    %c2_65 = arith.constant 2 : index
    %219 = memref.load %arg1[%c1_64, %c2_65] : memref<2x8xf32, #tpu.memory_space<smem>>
    %220 = vector.extract_strided_slice %2 {offsets = [0, 10], sizes = [16, 1], strides = [1, 1]} : vector<16x16xf32> to vector<16x1xf32>
    %221 = vector.extract_strided_slice %4 {offsets = [10, 0], sizes = [1, 32], strides = [1, 1]} : vector<16x32xf32> to vector<1x32xf32>
    %cst_66 = arith.constant 2.000000e-01 : f32
    %222 = arith.mulf %cst_66, %219 : f32
    %223 = vector.broadcast %222 : f32 to vector<16x1xf32>
    %224 = arith.mulf %223, %220 : vector<16x1xf32>
    %cst_67 = arith.constant 2.000000e-01 : f32
    %225 = arith.mulf %cst_67, %219 : f32
    %226 = vector.broadcast %225 : f32 to vector<1x32xf32>
    %227 = arith.mulf %226, %221 : vector<1x32xf32>
    %228 = arith.addf %208, %224 : vector<16x1xf32>
    %229 = arith.addf %209, %227 : vector<1x32xf32>
    %230 = vector.broadcast %220 : vector<16x1xf32> to vector<16x32xf32>
    %231 = vector.broadcast %221 : vector<1x32xf32> to vector<16x32xf32>
    %232 = arith.addf %230, %231 : vector<16x32xf32>
    %cst_68 = arith.constant 0.000000e+00 : f32
    %233 = vector.broadcast %cst_68 : f32 to vector<16x32xf32>
    %234 = arith.maximumf %232, %233 : vector<16x32xf32>
    %cst_69 = arith.constant 8.000000e-01 : f32
    %235 = arith.mulf %cst_69, %219 : f32
    %236 = vector.broadcast %235 : f32 to vector<16x32xf32>
    %237 = arith.mulf %236, %234 : vector<16x32xf32>
    %238 = arith.addf %218, %237 : vector<16x32xf32>
    %c1_70 = arith.constant 1 : index
    %c3_71 = arith.constant 3 : index
    %239 = memref.load %arg1[%c1_70, %c3_71] : memref<2x8xf32, #tpu.memory_space<smem>>
    %240 = vector.extract_strided_slice %2 {offsets = [0, 11], sizes = [16, 1], strides = [1, 1]} : vector<16x16xf32> to vector<16x1xf32>
    %241 = vector.extract_strided_slice %4 {offsets = [11, 0], sizes = [1, 32], strides = [1, 1]} : vector<16x32xf32> to vector<1x32xf32>
    %cst_72 = arith.constant 2.000000e-01 : f32
    %242 = arith.mulf %cst_72, %239 : f32
    %243 = vector.broadcast %242 : f32 to vector<16x1xf32>
    %244 = arith.mulf %243, %240 : vector<16x1xf32>
    %cst_73 = arith.constant 2.000000e-01 : f32
    %245 = arith.mulf %cst_73, %239 : f32
    %246 = vector.broadcast %245 : f32 to vector<1x32xf32>
    %247 = arith.mulf %246, %241 : vector<1x32xf32>
    %248 = arith.addf %228, %244 : vector<16x1xf32>
    %249 = arith.addf %229, %247 : vector<1x32xf32>
    %250 = vector.broadcast %240 : vector<16x1xf32> to vector<16x32xf32>
    %251 = vector.broadcast %241 : vector<1x32xf32> to vector<16x32xf32>
    %252 = arith.addf %250, %251 : vector<16x32xf32>
    %cst_74 = arith.constant 0.000000e+00 : f32
    %253 = vector.broadcast %cst_74 : f32 to vector<16x32xf32>
    %254 = arith.maximumf %252, %253 : vector<16x32xf32>
    %cst_75 = arith.constant 8.000000e-01 : f32
    %255 = arith.mulf %cst_75, %239 : f32
    %256 = vector.broadcast %255 : f32 to vector<16x32xf32>
    %257 = arith.mulf %256, %254 : vector<16x32xf32>
    %258 = arith.addf %238, %257 : vector<16x32xf32>
    %c1_76 = arith.constant 1 : index
    %c4_77 = arith.constant 4 : index
    %259 = memref.load %arg1[%c1_76, %c4_77] : memref<2x8xf32, #tpu.memory_space<smem>>
    %260 = vector.extract_strided_slice %2 {offsets = [0, 12], sizes = [16, 1], strides = [1, 1]} : vector<16x16xf32> to vector<16x1xf32>
    %261 = vector.extract_strided_slice %4 {offsets = [12, 0], sizes = [1, 32], strides = [1, 1]} : vector<16x32xf32> to vector<1x32xf32>
    %cst_78 = arith.constant 2.000000e-01 : f32
    %262 = arith.mulf %cst_78, %259 : f32
    %263 = vector.broadcast %262 : f32 to vector<16x1xf32>
    %264 = arith.mulf %263, %260 : vector<16x1xf32>
    %cst_79 = arith.constant 2.000000e-01 : f32
    %265 = arith.mulf %cst_79, %259 : f32
    %266 = vector.broadcast %265 : f32 to vector<1x32xf32>
    %267 = arith.mulf %266, %261 : vector<1x32xf32>
    %268 = arith.addf %248, %264 : vector<16x1xf32>
    %269 = arith.addf %249, %267 : vector<1x32xf32>
    %270 = vector.broadcast %260 : vector<16x1xf32> to vector<16x32xf32>
    %271 = vector.broadcast %261 : vector<1x32xf32> to vector<16x32xf32>
    %272 = arith.addf %270, %271 : vector<16x32xf32>
    %cst_80 = arith.constant 0.000000e+00 : f32
    %273 = vector.broadcast %cst_80 : f32 to vector<16x32xf32>
    %274 = arith.maximumf %272, %273 : vector<16x32xf32>
    %cst_81 = arith.constant 8.000000e-01 : f32
    %275 = arith.mulf %cst_81, %259 : f32
    %276 = vector.broadcast %275 : f32 to vector<16x32xf32>
    %277 = arith.mulf %276, %274 : vector<16x32xf32>
    %278 = arith.addf %258, %277 : vector<16x32xf32>
    %c1_82 = arith.constant 1 : index
    %c5_83 = arith.constant 5 : index
    %279 = memref.load %arg1[%c1_82, %c5_83] : memref<2x8xf32, #tpu.memory_space<smem>>
    %280 = vector.extract_strided_slice %2 {offsets = [0, 13], sizes = [16, 1], strides = [1, 1]} : vector<16x16xf32> to vector<16x1xf32>
    %281 = vector.extract_strided_slice %4 {offsets = [13, 0], sizes = [1, 32], strides = [1, 1]} : vector<16x32xf32> to vector<1x32xf32>
    %cst_84 = arith.constant 2.000000e-01 : f32
    %282 = arith.mulf %cst_84, %279 : f32
    %283 = vector.broadcast %282 : f32 to vector<16x1xf32>
    %284 = arith.mulf %283, %280 : vector<16x1xf32>
    %cst_85 = arith.constant 2.000000e-01 : f32
    %285 = arith.mulf %cst_85, %279 : f32
    %286 = vector.broadcast %285 : f32 to vector<1x32xf32>
    %287 = arith.mulf %286, %281 : vector<1x32xf32>
    %288 = arith.addf %268, %284 : vector<16x1xf32>
    %289 = arith.addf %269, %287 : vector<1x32xf32>
    %290 = vector.broadcast %280 : vector<16x1xf32> to vector<16x32xf32>
    %291 = vector.broadcast %281 : vector<1x32xf32> to vector<16x32xf32>
    %292 = arith.addf %290, %291 : vector<16x32xf32>
    %cst_86 = arith.constant 0.000000e+00 : f32
    %293 = vector.broadcast %cst_86 : f32 to vector<16x32xf32>
    %294 = arith.maximumf %292, %293 : vector<16x32xf32>
    %cst_87 = arith.constant 8.000000e-01 : f32
    %295 = arith.mulf %cst_87, %279 : f32
    %296 = vector.broadcast %295 : f32 to vector<16x32xf32>
    %297 = arith.mulf %296, %294 : vector<16x32xf32>
    %298 = arith.addf %278, %297 : vector<16x32xf32>
    %c1_88 = arith.constant 1 : index
    %c6_89 = arith.constant 6 : index
    %299 = memref.load %arg1[%c1_88, %c6_89] : memref<2x8xf32, #tpu.memory_space<smem>>
    %300 = vector.extract_strided_slice %2 {offsets = [0, 14], sizes = [16, 1], strides = [1, 1]} : vector<16x16xf32> to vector<16x1xf32>
    %301 = vector.extract_strided_slice %4 {offsets = [14, 0], sizes = [1, 32], strides = [1, 1]} : vector<16x32xf32> to vector<1x32xf32>
    %cst_90 = arith.constant 2.000000e-01 : f32
    %302 = arith.mulf %cst_90, %299 : f32
    %303 = vector.broadcast %302 : f32 to vector<16x1xf32>
    %304 = arith.mulf %303, %300 : vector<16x1xf32>
    %cst_91 = arith.constant 2.000000e-01 : f32
    %305 = arith.mulf %cst_91, %299 : f32
    %306 = vector.broadcast %305 : f32 to vector<1x32xf32>
    %307 = arith.mulf %306, %301 : vector<1x32xf32>
    %308 = arith.addf %288, %304 : vector<16x1xf32>
    %309 = arith.addf %289, %307 : vector<1x32xf32>
    %310 = vector.broadcast %300 : vector<16x1xf32> to vector<16x32xf32>
    %311 = vector.broadcast %301 : vector<1x32xf32> to vector<16x32xf32>
    %312 = arith.addf %310, %311 : vector<16x32xf32>
    %cst_92 = arith.constant 0.000000e+00 : f32
    %313 = vector.broadcast %cst_92 : f32 to vector<16x32xf32>
    %314 = arith.maximumf %312, %313 : vector<16x32xf32>
    %cst_93 = arith.constant 8.000000e-01 : f32
    %315 = arith.mulf %cst_93, %299 : f32
    %316 = vector.broadcast %315 : f32 to vector<16x32xf32>
    %317 = arith.mulf %316, %314 : vector<16x32xf32>
    %318 = arith.addf %298, %317 : vector<16x32xf32>
    %c1_94 = arith.constant 1 : index
    %c7_95 = arith.constant 7 : index
    %319 = memref.load %arg1[%c1_94, %c7_95] : memref<2x8xf32, #tpu.memory_space<smem>>
    %320 = vector.extract_strided_slice %2 {offsets = [0, 15], sizes = [16, 1], strides = [1, 1]} : vector<16x16xf32> to vector<16x1xf32>
    %321 = vector.extract_strided_slice %4 {offsets = [15, 0], sizes = [1, 32], strides = [1, 1]} : vector<16x32xf32> to vector<1x32xf32>
    %cst_96 = arith.constant 2.000000e-01 : f32
    %322 = arith.mulf %cst_96, %319 : f32
    %323 = vector.broadcast %322 : f32 to vector<16x1xf32>
    %324 = arith.mulf %323, %320 : vector<16x1xf32>
    %cst_97 = arith.constant 2.000000e-01 : f32
    %325 = arith.mulf %cst_97, %319 : f32
    %326 = vector.broadcast %325 : f32 to vector<1x32xf32>
    %327 = arith.mulf %326, %321 : vector<1x32xf32>
    %328 = arith.addf %308, %324 : vector<16x1xf32>
    %329 = arith.addf %309, %327 : vector<1x32xf32>
    %330 = vector.broadcast %320 : vector<16x1xf32> to vector<16x32xf32>
    %331 = vector.broadcast %321 : vector<1x32xf32> to vector<16x32xf32>
    %332 = arith.addf %330, %331 : vector<16x32xf32>
    %cst_98 = arith.constant 0.000000e+00 : f32
    %333 = vector.broadcast %cst_98 : f32 to vector<16x32xf32>
    %334 = arith.maximumf %332, %333 : vector<16x32xf32>
    %cst_99 = arith.constant 8.000000e-01 : f32
    %335 = arith.mulf %cst_99, %319 : f32
    %336 = vector.broadcast %335 : f32 to vector<16x32xf32>
    %337 = arith.mulf %336, %334 : vector<16x32xf32>
    %338 = arith.addf %318, %337 : vector<16x32xf32>
    %339 = vector.broadcast %328 : vector<16x1xf32> to vector<16x32xf32>
    %340 = vector.broadcast %329 : vector<1x32xf32> to vector<16x32xf32>
    %341 = arith.addf %339, %340 : vector<16x32xf32>
    %342 = arith.addf %341, %1 : vector<16x32xf32>
    %343 = arith.addf %342, %338 : vector<16x32xf32>
    %cst_100 = arith.constant dense<0xFF800000> : vector<16xf32>
    %344 = vector.multi_reduction <maximumf>, %343, %cst_100 [1] : vector<16x32xf32> to vector<16xf32>
    %345 = vector.shape_cast %344 : vector<16xf32> to vector<16x1xf32>
    %346 = vector.broadcast %345 : vector<16x1xf32> to vector<16x32xf32>
    %347 = arith.subf %343, %346 : vector<16x32xf32>
    %348 = math.exp %347 : vector<16x32xf32>
    %cst_101 = arith.constant dense<0.000000e+00> : vector<16xf32>
    %349 = vector.multi_reduction <add>, %348, %cst_101 [1] : vector<16x32xf32> to vector<16xf32>
    %350 = vector.shape_cast %349 : vector<16xf32> to vector<16x1xf32>
    %cst_102 = arith.constant 9.99999968E-21 : f32
    %351 = vector.broadcast %cst_102 : f32 to vector<16x1xf32>
    %352 = arith.maximumf %350, %351 : vector<16x1xf32>
    %353 = vector.extract_strided_slice %3 {offsets = [0, 8], sizes = [32, 8], strides = [1, 1]} : vector<32x16xf32> to vector<32x8xf32>
    %cst_103 = arith.constant dense<0.000000e+00> : vector<16x8xf32>
    %354 = tpu.matmul %348, %353, %cst_103 {dimension_numbers = #tpu.dot_dimension_numbers<[1], [0], [0], [1], [0, 0, 1, 1], [], []>} : vector<16x32xf32>, vector<32x8xf32>, vector<16x8xf32> -> vector<16x8xf32>
    %cst_104 = arith.constant 1.000000e+00 : f32
    %355 = vector.broadcast %cst_104 : f32 to vector<16x1xf32>
    %356 = arith.divf %355, %352 : vector<16x1xf32>
    %357 = vector.broadcast %356 : vector<16x1xf32> to vector<16x8xf32>
    %358 = arith.mulf %354, %357 : vector<16x8xf32>
    %359 = arith.addf %181, %358 : vector<16x8xf32>
    %cst_105 = arith.constant 5.000000e-01 : f32
    %360 = vector.broadcast %cst_105 : f32 to vector<16x8xf32>
    %361 = arith.mulf %359, %360 : vector<16x8xf32>
    %c0_106 = arith.constant 0 : index
    %c0_107 = arith.constant 0 : index
    %362 = vector.load %arg6[%c0_106, %c0_107] : memref<1x8xf32, #tpu.memory_space<vmem>>, vector<1x8xf32>
    %363 = vector.broadcast %362 : vector<1x8xf32> to vector<16x8xf32>
    %364 = arith.addf %361, %363 : vector<16x8xf32>
    %c0_108 = arith.constant 0 : index
    %c0_109 = arith.constant 0 : index
    %365 = vector.load %arg7[%c0_108, %c0_109] : memref<16x1xi32, #tpu.memory_space<vmem>>, vector<16x1xi32>
    %c0_i32 = arith.constant 0 : i32
    %366 = vector.broadcast %c0_i32 : i32 to vector<16x1xi32>
    %367 = arith.cmpi eq, %365, %366 : vector<16x1xi32>
    %cst_110 = arith.constant -1.000000e+30 : f32
    %368 = vector.shape_cast %367 : vector<16x1xi1> to vector<16x1xi1>
    %369 = vector.broadcast %368 : vector<16x1xi1> to vector<16x8xi1>
    %370 = vector.broadcast %cst_110 : f32 to vector<16x8xf32>
    %371 = arith.select %369, %364, %370 : vector<16x8xi1>, vector<16x8xf32>
    %cst_111 = arith.constant dense<0xFF800000> : vector<8xf32>
    %372 = vector.multi_reduction <maximumf>, %371, %cst_111 [0] : vector<16x8xf32> to vector<8xf32>
    %373 = vector.shape_cast %372 : vector<8xf32> to vector<1x8xf32>
    %c1_i32 = arith.constant 1 : i32
    %374 = vector.broadcast %c1_i32 : i32 to vector<16x1xi32>
    %375 = arith.cmpi eq, %365, %374 : vector<16x1xi32>
    %cst_112 = arith.constant -1.000000e+30 : f32
    %376 = vector.shape_cast %375 : vector<16x1xi1> to vector<16x1xi1>
    %377 = vector.broadcast %376 : vector<16x1xi1> to vector<16x8xi1>
    %378 = vector.broadcast %cst_112 : f32 to vector<16x8xf32>
    %379 = arith.select %377, %364, %378 : vector<16x8xi1>, vector<16x8xf32>
    %cst_113 = arith.constant dense<0xFF800000> : vector<8xf32>
    %380 = vector.multi_reduction <maximumf>, %379, %cst_113 [0] : vector<16x8xf32> to vector<8xf32>
    %381 = vector.shape_cast %380 : vector<8xf32> to vector<1x8xf32>
    %382 = tpu.concatenate %373, %381 in 0 : vector<1x8xf32>, vector<1x8xf32> -> vector<2x8xf32>
    %c0_114 = arith.constant 0 : index
    %c0_115 = arith.constant 0 : index
    %c0_116 = arith.constant 0 : index
    %383 = vector.load %arg8[%c0_114, %c0_115, %c0_116] : memref<1x2x8xf32, #tpu.memory_space<vmem>>, vector<1x2x8xf32>
    %384 = vector.shape_cast %383 : vector<1x2x8xf32> to vector<2x8xf32>
    %385 = vector.shape_cast %382 : vector<2x8xf32> to vector<1x2x8xf32>
    tpu.vector_store %arg8[%c0_114, %c0_115, %c0_116], %385 {strides = array<i32>} : memref<1x2x8xf32, #tpu.memory_space<vmem>>, vector<1x2x8xf32>,
    return
  }
  func.func @transform_0(%arg0: i32) -> (i32, i32) {
    %c0_i32 = arith.constant 0 : i32
    %c0_i32_0 = arith.constant 0 : i32
    %c0_i32_1 = arith.constant 0 : i32
    return %c0_i32, %c0_i32_0 : i32, i32
  }
  func.func @transform_1(%arg0: i32) -> (i32, i32) {
    %c0_i32 = arith.constant 0 : i32
    %c0_i32_0 = arith.constant 0 : i32
    return %arg0, %c0_i32 : i32, i32
  }
  func.func @transform_2(%arg0: i32) -> (i32, i32) {
    %c0_i32 = arith.constant 0 : i32
    %c0_i32_0 = arith.constant 0 : i32
    %c0_i32_1 = arith.constant 0 : i32
    return %c0_i32, %c0_i32_0 : i32, i32
  }
  func.func @transform_3(%arg0: i32) -> (i32, i32) {
    %c0_i32 = arith.constant 0 : i32
    %c0_i32_0 = arith.constant 0 : i32
    %c0_i32_1 = arith.constant 0 : i32
    return %c0_i32, %c0_i32_0 : i32, i32
  }
  func.func @transform_4(%arg0: i32) -> (i32, i32) {
    %c0_i32 = arith.constant 0 : i32
    %c0_i32_0 = arith.constant 0 : i32
    return %arg0, %c0_i32 : i32, i32
  }
  func.func @transform_5(%arg0: i32) -> (i32, i32) {
    %c0_i32 = arith.constant 0 : i32
    %c0_i32_0 = arith.constant 0 : i32
    %c0_i32_1 = arith.constant 0 : i32
    return %c0_i32, %c0_i32_0 : i32, i32
  }
  func.func @transform_6(%arg0: i32) -> (i32, i32) {
    %c0_i32 = arith.constant 0 : i32
    %c0_i32_0 = arith.constant 0 : i32
    return %arg0, %c0_i32 : i32, i32
  }
  func.func @transform_7(%arg0: i32) -> (i32, i32, i32) {
    %c0_i32 = arith.constant 0 : i32
    %c0_i32_0 = arith.constant 0 : i32
    %c0_i32_1 = arith.constant 0 : i32
    return %arg0, %c0_i32, %c0_i32_0 : i32, i32, i32
  }
}

module attributes {stable_mosaic.version = 11 : i64} {
  func.func @_classifier_kernel(%arg0: memref<2x2x8xf32, #tpu.memory_space<vmem>>, %arg1: memref<8x8xf32, #tpu.memory_space<vmem>>, %arg2: memref<1x8xf32, #tpu.memory_space<vmem>>, %arg3: memref<8x4xf32, #tpu.memory_space<vmem>>, %arg4: memref<1x4xf32, #tpu.memory_space<vmem>>, %arg5: memref<2x4xf32, #tpu.memory_space<vmem>>) attributes {dimension_semantics = [], scalar_prefetch = 0 : i64, scratch_operands = 0 : i64, tpu.core_type = #tpu.core_type<tc>} {
    %c0 = arith.constant 0 : index
    %c0_0 = arith.constant 0 : index
    %c0_1 = arith.constant 0 : index
    %0 = vector.load %arg0[%c0, %c0_0, %c0_1] : memref<2x2x8xf32, #tpu.memory_space<vmem>>, vector<2x2x8xf32>
    %cst = arith.constant dense<0xFF800000> : vector<2x8xf32>
    %1 = vector.multi_reduction <maximumf>, %0, %cst [0] : vector<2x2x8xf32> to vector<2x8xf32>
    %c0_2 = arith.constant 0 : index
    %c0_3 = arith.constant 0 : index
    %2 = vector.load %arg1[%c0_2, %c0_3] : memref<8x8xf32, #tpu.memory_space<vmem>>, vector<8x8xf32>
    %cst_4 = arith.constant dense<0.000000e+00> : vector<2x8xf32>
    %3 = tpu.matmul %1, %2, %cst_4 {dimension_numbers = #tpu.dot_dimension_numbers<[1], [0], [0], [1], [0, 0, 1, 1], [], []>} : vector<2x8xf32>, vector<8x8xf32>, vector<2x8xf32> -> vector<2x8xf32>
    %c0_5 = arith.constant 0 : index
    %c0_6 = arith.constant 0 : index
    %4 = vector.load %arg2[%c0_5, %c0_6] : memref<1x8xf32, #tpu.memory_space<vmem>>, vector<1x8xf32>
    %5 = vector.broadcast %4 : vector<1x8xf32> to vector<2x8xf32>
    %6 = arith.addf %3, %5 : vector<2x8xf32>
    %cst_7 = arith.constant 0.000000e+00 : f32
    %7 = vector.broadcast %cst_7 : f32 to vector<2x8xf32>
    %8 = arith.maximumf %6, %7 : vector<2x8xf32>
    %c0_8 = arith.constant 0 : index
    %c0_9 = arith.constant 0 : index
    %9 = vector.load %arg3[%c0_8, %c0_9] : memref<8x4xf32, #tpu.memory_space<vmem>>, vector<8x4xf32>
    %cst_10 = arith.constant dense<0.000000e+00> : vector<2x4xf32>
    %10 = tpu.matmul %8, %9, %cst_10 {dimension_numbers = #tpu.dot_dimension_numbers<[1], [0], [0], [1], [0, 0, 1, 1], [], []>} : vector<2x8xf32>, vector<8x4xf32>, vector<2x4xf32> -> vector<2x4xf32>
    %c0_11 = arith.constant 0 : index
    %c0_12 = arith.constant 0 : index
    %11 = vector.load %arg4[%c0_11, %c0_12] : memref<1x4xf32, #tpu.memory_space<vmem>>, vector<1x4xf32>
    %12 = vector.broadcast %11 : vector<1x4xf32> to vector<2x4xf32>
    %13 = arith.addf %10, %12 : vector<2x4xf32>
    %c0_13 = arith.constant 0 : index
    %c0_14 = arith.constant 0 : index
    %14 = vector.load %arg5[%c0_13, %c0_14] : memref<2x4xf32, #tpu.memory_space<vmem>>, vector<2x4xf32>
    tpu.vector_store %arg5[%c0_13, %c0_14], %13 {strides = array<i32>} : memref<2x4xf32, #tpu.memory_space<vmem>>, vector<2x4xf32>,
    return
  }
}

module attributes {stable_mosaic.version = 11 : i64} {
  func.func @_gatv2_kernel(%arg0: i32, %arg1: memref<2x8xf32, #tpu.memory_space<smem>>, %arg2: memref<16x16xf32, #tpu.memory_space<vmem>>, %arg3: memref<32x16xf32, #tpu.memory_space<vmem>>, %arg4: memref<16x32xf32, #tpu.memory_space<vmem>>, %arg5: memref<16x32xbf16, #tpu.memory_space<vmem>>, %arg6: memref<1x16xf32, #tpu.memory_space<vmem>>, %arg7: memref<16x16xf32, #tpu.memory_space<vmem>>) attributes {dimension_semantics = [#tpu.dimension_semantics<parallel>], iteration_bounds = array<i64: 2>, scalar_prefetch = 0 : i64, scratch_operands = 0 : i64, tpu.core_type = #tpu.core_type<tc>, window_params = [{transform_indices = @transform_0, window_bounds = array<i64: 2, 8>}, {transform_indices = @transform_1, window_bounds = array<i64: 16, 16>}, {pipeline_mode = #tpu.pipeline_mode<synchronous>, transform_indices = @transform_2, window_bounds = array<i64: 32, 16>}, {pipeline_mode = #tpu.pipeline_mode<synchronous>, transform_indices = @transform_3, window_bounds = array<i64: 16, 32>}, {transform_indices = @transform_4, window_bounds = array<i64: 16, 32>}, {pipeline_mode = #tpu.pipeline_mode<synchronous>, transform_indices = @transform_5, window_bounds = array<i64: 1, 16>}, {transform_indices = @transform_6, window_bounds = array<i64: 16, 16>}]} {
    %c0 = arith.constant 0 : index
    %c0_0 = arith.constant 0 : index
    %0 = vector.load %arg5[%c0, %c0_0] : memref<16x32xbf16, #tpu.memory_space<vmem>>, vector<16x32xbf16>
    %1 = arith.extf %0 : vector<16x32xbf16> to vector<16x32xf32>
    %c0_1 = arith.constant 0 : index
    %c0_2 = arith.constant 0 : index
    %2 = vector.load %arg2[%c0_1, %c0_2] : memref<16x16xf32, #tpu.memory_space<vmem>>, vector<16x16xf32>
    %c0_3 = arith.constant 0 : index
    %c0_4 = arith.constant 0 : index
    %3 = vector.load %arg3[%c0_3, %c0_4] : memref<32x16xf32, #tpu.memory_space<vmem>>, vector<32x16xf32>
    %c0_5 = arith.constant 0 : index
    %c0_6 = arith.constant 0 : index
    %4 = vector.load %arg4[%c0_5, %c0_6] : memref<16x32xf32, #tpu.memory_space<vmem>>, vector<16x32xf32>
    %c0_7 = arith.constant 0 : index
    %c0_8 = arith.constant 0 : index
    %5 = memref.load %arg1[%c0_7, %c0_8] : memref<2x8xf32, #tpu.memory_space<smem>>
    %6 = vector.extract_strided_slice %2 {offsets = [0, 0], sizes = [16, 1], strides = [1, 1]} : vector<16x16xf32> to vector<16x1xf32>
    %7 = vector.extract_strided_slice %4 {offsets = [0, 0], sizes = [1, 32], strides = [1, 1]} : vector<16x32xf32> to vector<1x32xf32>
    %cst = arith.constant 2.000000e-01 : f32
    %8 = arith.mulf %cst, %5 : f32
    %9 = vector.broadcast %8 : f32 to vector<16x1xf32>
    %10 = arith.mulf %9, %6 : vector<16x1xf32>
    %cst_9 = arith.constant 2.000000e-01 : f32
    %11 = arith.mulf %cst_9, %5 : f32
    %12 = vector.broadcast %11 : f32 to vector<1x32xf32>
    %13 = arith.mulf %12, %7 : vector<1x32xf32>
    %14 = vector.broadcast %6 : vector<16x1xf32> to vector<16x32xf32>
    %15 = vector.broadcast %7 : vector<1x32xf32> to vector<16x32xf32>
    %16 = arith.addf %14, %15 : vector<16x32xf32>
    %cst_10 = arith.constant 0.000000e+00 : f32
    %17 = vector.broadcast %cst_10 : f32 to vector<16x32xf32>
    %18 = arith.maximumf %16, %17 : vector<16x32xf32>
    %cst_11 = arith.constant 8.000000e-01 : f32
    %19 = arith.mulf %cst_11, %5 : f32
    %20 = vector.broadcast %19 : f32 to vector<16x32xf32>
    %21 = arith.mulf %20, %18 : vector<16x32xf32>
    %c0_12 = arith.constant 0 : index
    %c1 = arith.constant 1 : index
    %22 = memref.load %arg1[%c0_12, %c1] : memref<2x8xf32, #tpu.memory_space<smem>>
    %23 = vector.extract_strided_slice %2 {offsets = [0, 1], sizes = [16, 1], strides = [1, 1]} : vector<16x16xf32> to vector<16x1xf32>
    %24 = vector.extract_strided_slice %4 {offsets = [1, 0], sizes = [1, 32], strides = [1, 1]} : vector<16x32xf32> to vector<1x32xf32>
    %cst_13 = arith.constant 2.000000e-01 : f32
    %25 = arith.mulf %cst_13, %22 : f32
    %26 = vector.broadcast %25 : f32 to vector<16x1xf32>
    %27 = arith.mulf %26, %23 : vector<16x1xf32>
    %cst_14 = arith.constant 2.000000e-01 : f32
    %28 = arith.mulf %cst_14, %22 : f32
    %29 = vector.broadcast %28 : f32 to vector<1x32xf32>
    %30 = arith.mulf %29, %24 : vector<1x32xf32>
    %31 = arith.addf %10, %27 : vector<16x1xf32>
    %32 = arith.addf %13, %30 : vector<1x32xf32>
    %33 = vector.broadcast %23 : vector<16x1xf32> to vector<16x32xf32>
    %34 = vector.broadcast %24 : vector<1x32xf32> to vector<16x32xf32>
    %35 = arith.addf %33, %34 : vector<16x32xf32>
    %cst_15 = arith.constant 0.000000e+00 : f32
    %36 = vector.broadcast %cst_15 : f32 to vector<16x32xf32>
    %37 = arith.maximumf %35, %36 : vector<16x32xf32>
    %cst_16 = arith.constant 8.000000e-01 : f32
    %38 = arith.mulf %cst_16, %22 : f32
    %39 = vector.broadcast %38 : f32 to vector<16x32xf32>
    %40 = arith.mulf %39, %37 : vector<16x32xf32>
    %41 = arith.addf %21, %40 : vector<16x32xf32>
    %c0_17 = arith.constant 0 : index
    %c2 = arith.constant 2 : index
    %42 = memref.load %arg1[%c0_17, %c2] : memref<2x8xf32, #tpu.memory_space<smem>>
    %43 = vector.extract_strided_slice %2 {offsets = [0, 2], sizes = [16, 1], strides = [1, 1]} : vector<16x16xf32> to vector<16x1xf32>
    %44 = vector.extract_strided_slice %4 {offsets = [2, 0], sizes = [1, 32], strides = [1, 1]} : vector<16x32xf32> to vector<1x32xf32>
    %cst_18 = arith.constant 2.000000e-01 : f32
    %45 = arith.mulf %cst_18, %42 : f32
    %46 = vector.broadcast %45 : f32 to vector<16x1xf32>
    %47 = arith.mulf %46, %43 : vector<16x1xf32>
    %cst_19 = arith.constant 2.000000e-01 : f32
    %48 = arith.mulf %cst_19, %42 : f32
    %49 = vector.broadcast %48 : f32 to vector<1x32xf32>
    %50 = arith.mulf %49, %44 : vector<1x32xf32>
    %51 = arith.addf %31, %47 : vector<16x1xf32>
    %52 = arith.addf %32, %50 : vector<1x32xf32>
    %53 = vector.broadcast %43 : vector<16x1xf32> to vector<16x32xf32>
    %54 = vector.broadcast %44 : vector<1x32xf32> to vector<16x32xf32>
    %55 = arith.addf %53, %54 : vector<16x32xf32>
    %cst_20 = arith.constant 0.000000e+00 : f32
    %56 = vector.broadcast %cst_20 : f32 to vector<16x32xf32>
    %57 = arith.maximumf %55, %56 : vector<16x32xf32>
    %cst_21 = arith.constant 8.000000e-01 : f32
    %58 = arith.mulf %cst_21, %42 : f32
    %59 = vector.broadcast %58 : f32 to vector<16x32xf32>
    %60 = arith.mulf %59, %57 : vector<16x32xf32>
    %61 = arith.addf %41, %60 : vector<16x32xf32>
    %c0_22 = arith.constant 0 : index
    %c3 = arith.constant 3 : index
    %62 = memref.load %arg1[%c0_22, %c3] : memref<2x8xf32, #tpu.memory_space<smem>>
    %63 = vector.extract_strided_slice %2 {offsets = [0, 3], sizes = [16, 1], strides = [1, 1]} : vector<16x16xf32> to vector<16x1xf32>
    %64 = vector.extract_strided_slice %4 {offsets = [3, 0], sizes = [1, 32], strides = [1, 1]} : vector<16x32xf32> to vector<1x32xf32>
    %cst_23 = arith.constant 2.000000e-01 : f32
    %65 = arith.mulf %cst_23, %62 : f32
    %66 = vector.broadcast %65 : f32 to vector<16x1xf32>
    %67 = arith.mulf %66, %63 : vector<16x1xf32>
    %cst_24 = arith.constant 2.000000e-01 : f32
    %68 = arith.mulf %cst_24, %62 : f32
    %69 = vector.broadcast %68 : f32 to vector<1x32xf32>
    %70 = arith.mulf %69, %64 : vector<1x32xf32>
    %71 = arith.addf %51, %67 : vector<16x1xf32>
    %72 = arith.addf %52, %70 : vector<1x32xf32>
    %73 = vector.broadcast %63 : vector<16x1xf32> to vector<16x32xf32>
    %74 = vector.broadcast %64 : vector<1x32xf32> to vector<16x32xf32>
    %75 = arith.addf %73, %74 : vector<16x32xf32>
    %cst_25 = arith.constant 0.000000e+00 : f32
    %76 = vector.broadcast %cst_25 : f32 to vector<16x32xf32>
    %77 = arith.maximumf %75, %76 : vector<16x32xf32>
    %cst_26 = arith.constant 8.000000e-01 : f32
    %78 = arith.mulf %cst_26, %62 : f32
    %79 = vector.broadcast %78 : f32 to vector<16x32xf32>
    %80 = arith.mulf %79, %77 : vector<16x32xf32>
    %81 = arith.addf %61, %80 : vector<16x32xf32>
    %c0_27 = arith.constant 0 : index
    %c4 = arith.constant 4 : index
    %82 = memref.load %arg1[%c0_27, %c4] : memref<2x8xf32, #tpu.memory_space<smem>>
    %83 = vector.extract_strided_slice %2 {offsets = [0, 4], sizes = [16, 1], strides = [1, 1]} : vector<16x16xf32> to vector<16x1xf32>
    %84 = vector.extract_strided_slice %4 {offsets = [4, 0], sizes = [1, 32], strides = [1, 1]} : vector<16x32xf32> to vector<1x32xf32>
    %cst_28 = arith.constant 2.000000e-01 : f32
    %85 = arith.mulf %cst_28, %82 : f32
    %86 = vector.broadcast %85 : f32 to vector<16x1xf32>
    %87 = arith.mulf %86, %83 : vector<16x1xf32>
    %cst_29 = arith.constant 2.000000e-01 : f32
    %88 = arith.mulf %cst_29, %82 : f32
    %89 = vector.broadcast %88 : f32 to vector<1x32xf32>
    %90 = arith.mulf %89, %84 : vector<1x32xf32>
    %91 = arith.addf %71, %87 : vector<16x1xf32>
    %92 = arith.addf %72, %90 : vector<1x32xf32>
    %93 = vector.broadcast %83 : vector<16x1xf32> to vector<16x32xf32>
    %94 = vector.broadcast %84 : vector<1x32xf32> to vector<16x32xf32>
    %95 = arith.addf %93, %94 : vector<16x32xf32>
    %cst_30 = arith.constant 0.000000e+00 : f32
    %96 = vector.broadcast %cst_30 : f32 to vector<16x32xf32>
    %97 = arith.maximumf %95, %96 : vector<16x32xf32>
    %cst_31 = arith.constant 8.000000e-01 : f32
    %98 = arith.mulf %cst_31, %82 : f32
    %99 = vector.broadcast %98 : f32 to vector<16x32xf32>
    %100 = arith.mulf %99, %97 : vector<16x32xf32>
    %101 = arith.addf %81, %100 : vector<16x32xf32>
    %c0_32 = arith.constant 0 : index
    %c5 = arith.constant 5 : index
    %102 = memref.load %arg1[%c0_32, %c5] : memref<2x8xf32, #tpu.memory_space<smem>>
    %103 = vector.extract_strided_slice %2 {offsets = [0, 5], sizes = [16, 1], strides = [1, 1]} : vector<16x16xf32> to vector<16x1xf32>
    %104 = vector.extract_strided_slice %4 {offsets = [5, 0], sizes = [1, 32], strides = [1, 1]} : vector<16x32xf32> to vector<1x32xf32>
    %cst_33 = arith.constant 2.000000e-01 : f32
    %105 = arith.mulf %cst_33, %102 : f32
    %106 = vector.broadcast %105 : f32 to vector<16x1xf32>
    %107 = arith.mulf %106, %103 : vector<16x1xf32>
    %cst_34 = arith.constant 2.000000e-01 : f32
    %108 = arith.mulf %cst_34, %102 : f32
    %109 = vector.broadcast %108 : f32 to vector<1x32xf32>
    %110 = arith.mulf %109, %104 : vector<1x32xf32>
    %111 = arith.addf %91, %107 : vector<16x1xf32>
    %112 = arith.addf %92, %110 : vector<1x32xf32>
    %113 = vector.broadcast %103 : vector<16x1xf32> to vector<16x32xf32>
    %114 = vector.broadcast %104 : vector<1x32xf32> to vector<16x32xf32>
    %115 = arith.addf %113, %114 : vector<16x32xf32>
    %cst_35 = arith.constant 0.000000e+00 : f32
    %116 = vector.broadcast %cst_35 : f32 to vector<16x32xf32>
    %117 = arith.maximumf %115, %116 : vector<16x32xf32>
    %cst_36 = arith.constant 8.000000e-01 : f32
    %118 = arith.mulf %cst_36, %102 : f32
    %119 = vector.broadcast %118 : f32 to vector<16x32xf32>
    %120 = arith.mulf %119, %117 : vector<16x32xf32>
    %121 = arith.addf %101, %120 : vector<16x32xf32>
    %c0_37 = arith.constant 0 : index
    %c6 = arith.constant 6 : index
    %122 = memref.load %arg1[%c0_37, %c6] : memref<2x8xf32, #tpu.memory_space<smem>>
    %123 = vector.extract_strided_slice %2 {offsets = [0, 6], sizes = [16, 1], strides = [1, 1]} : vector<16x16xf32> to vector<16x1xf32>
    %124 = vector.extract_strided_slice %4 {offsets = [6, 0], sizes = [1, 32], strides = [1, 1]} : vector<16x32xf32> to vector<1x32xf32>
    %cst_38 = arith.constant 2.000000e-01 : f32
    %125 = arith.mulf %cst_38, %122 : f32
    %126 = vector.broadcast %125 : f32 to vector<16x1xf32>
    %127 = arith.mulf %126, %123 : vector<16x1xf32>
    %cst_39 = arith.constant 2.000000e-01 : f32
    %128 = arith.mulf %cst_39, %122 : f32
    %129 = vector.broadcast %128 : f32 to vector<1x32xf32>
    %130 = arith.mulf %129, %124 : vector<1x32xf32>
    %131 = arith.addf %111, %127 : vector<16x1xf32>
    %132 = arith.addf %112, %130 : vector<1x32xf32>
    %133 = vector.broadcast %123 : vector<16x1xf32> to vector<16x32xf32>
    %134 = vector.broadcast %124 : vector<1x32xf32> to vector<16x32xf32>
    %135 = arith.addf %133, %134 : vector<16x32xf32>
    %cst_40 = arith.constant 0.000000e+00 : f32
    %136 = vector.broadcast %cst_40 : f32 to vector<16x32xf32>
    %137 = arith.maximumf %135, %136 : vector<16x32xf32>
    %cst_41 = arith.constant 8.000000e-01 : f32
    %138 = arith.mulf %cst_41, %122 : f32
    %139 = vector.broadcast %138 : f32 to vector<16x32xf32>
    %140 = arith.mulf %139, %137 : vector<16x32xf32>
    %141 = arith.addf %121, %140 : vector<16x32xf32>
    %c0_42 = arith.constant 0 : index
    %c7 = arith.constant 7 : index
    %142 = memref.load %arg1[%c0_42, %c7] : memref<2x8xf32, #tpu.memory_space<smem>>
    %143 = vector.extract_strided_slice %2 {offsets = [0, 7], sizes = [16, 1], strides = [1, 1]} : vector<16x16xf32> to vector<16x1xf32>
    %144 = vector.extract_strided_slice %4 {offsets = [7, 0], sizes = [1, 32], strides = [1, 1]} : vector<16x32xf32> to vector<1x32xf32>
    %cst_43 = arith.constant 2.000000e-01 : f32
    %145 = arith.mulf %cst_43, %142 : f32
    %146 = vector.broadcast %145 : f32 to vector<16x1xf32>
    %147 = arith.mulf %146, %143 : vector<16x1xf32>
    %cst_44 = arith.constant 2.000000e-01 : f32
    %148 = arith.mulf %cst_44, %142 : f32
    %149 = vector.broadcast %148 : f32 to vector<1x32xf32>
    %150 = arith.mulf %149, %144 : vector<1x32xf32>
    %151 = arith.addf %131, %147 : vector<16x1xf32>
    %152 = arith.addf %132, %150 : vector<1x32xf32>
    %153 = vector.broadcast %143 : vector<16x1xf32> to vector<16x32xf32>
    %154 = vector.broadcast %144 : vector<1x32xf32> to vector<16x32xf32>
    %155 = arith.addf %153, %154 : vector<16x32xf32>
    %cst_45 = arith.constant 0.000000e+00 : f32
    %156 = vector.broadcast %cst_45 : f32 to vector<16x32xf32>
    %157 = arith.maximumf %155, %156 : vector<16x32xf32>
    %cst_46 = arith.constant 8.000000e-01 : f32
    %158 = arith.mulf %cst_46, %142 : f32
    %159 = vector.broadcast %158 : f32 to vector<16x32xf32>
    %160 = arith.mulf %159, %157 : vector<16x32xf32>
    %161 = arith.addf %141, %160 : vector<16x32xf32>
    %162 = vector.broadcast %151 : vector<16x1xf32> to vector<16x32xf32>
    %163 = vector.broadcast %152 : vector<1x32xf32> to vector<16x32xf32>
    %164 = arith.addf %162, %163 : vector<16x32xf32>
    %165 = arith.addf %164, %1 : vector<16x32xf32>
    %166 = arith.addf %165, %161 : vector<16x32xf32>
    %cst_47 = arith.constant dense<0xFF800000> : vector<16xf32>
    %167 = vector.multi_reduction <maximumf>, %166, %cst_47 [1] : vector<16x32xf32> to vector<16xf32>
    %168 = vector.shape_cast %167 : vector<16xf32> to vector<16x1xf32>
    %169 = vector.broadcast %168 : vector<16x1xf32> to vector<16x32xf32>
    %170 = arith.subf %166, %169 : vector<16x32xf32>
    %171 = math.exp %170 : vector<16x32xf32>
    %cst_48 = arith.constant dense<0.000000e+00> : vector<16xf32>
    %172 = vector.multi_reduction <add>, %171, %cst_48 [1] : vector<16x32xf32> to vector<16xf32>
    %173 = vector.shape_cast %172 : vector<16xf32> to vector<16x1xf32>
    %cst_49 = arith.constant 9.99999968E-21 : f32
    %174 = vector.broadcast %cst_49 : f32 to vector<16x1xf32>
    %175 = arith.maximumf %173, %174 : vector<16x1xf32>
    %176 = vector.extract_strided_slice %3 {offsets = [0, 0], sizes = [32, 8], strides = [1, 1]} : vector<32x16xf32> to vector<32x8xf32>
    %cst_50 = arith.constant dense<0.000000e+00> : vector<16x8xf32>
    %177 = tpu.matmul %171, %176, %cst_50 {dimension_numbers = #tpu.dot_dimension_numbers<[1], [0], [0], [1], [0, 0, 1, 1], [], []>} : vector<16x32xf32>, vector<32x8xf32>, vector<16x8xf32> -> vector<16x8xf32>
    %cst_51 = arith.constant 1.000000e+00 : f32
    %178 = vector.broadcast %cst_51 : f32 to vector<16x1xf32>
    %179 = arith.divf %178, %175 : vector<16x1xf32>
    %180 = vector.broadcast %179 : vector<16x1xf32> to vector<16x8xf32>
    %181 = arith.mulf %177, %180 : vector<16x8xf32>
    %c1_52 = arith.constant 1 : index
    %c0_53 = arith.constant 0 : index
    %182 = memref.load %arg1[%c1_52, %c0_53] : memref<2x8xf32, #tpu.memory_space<smem>>
    %183 = vector.extract_strided_slice %2 {offsets = [0, 8], sizes = [16, 1], strides = [1, 1]} : vector<16x16xf32> to vector<16x1xf32>
    %184 = vector.extract_strided_slice %4 {offsets = [8, 0], sizes = [1, 32], strides = [1, 1]} : vector<16x32xf32> to vector<1x32xf32>
    %cst_54 = arith.constant 2.000000e-01 : f32
    %185 = arith.mulf %cst_54, %182 : f32
    %186 = vector.broadcast %185 : f32 to vector<16x1xf32>
    %187 = arith.mulf %186, %183 : vector<16x1xf32>
    %cst_55 = arith.constant 2.000000e-01 : f32
    %188 = arith.mulf %cst_55, %182 : f32
    %189 = vector.broadcast %188 : f32 to vector<1x32xf32>
    %190 = arith.mulf %189, %184 : vector<1x32xf32>
    %191 = vector.broadcast %183 : vector<16x1xf32> to vector<16x32xf32>
    %192 = vector.broadcast %184 : vector<1x32xf32> to vector<16x32xf32>
    %193 = arith.addf %191, %192 : vector<16x32xf32>
    %cst_56 = arith.constant 0.000000e+00 : f32
    %194 = vector.broadcast %cst_56 : f32 to vector<16x32xf32>
    %195 = arith.maximumf %193, %194 : vector<16x32xf32>
    %cst_57 = arith.constant 8.000000e-01 : f32
    %196 = arith.mulf %cst_57, %182 : f32
    %197 = vector.broadcast %196 : f32 to vector<16x32xf32>
    %198 = arith.mulf %197, %195 : vector<16x32xf32>
    %c1_58 = arith.constant 1 : index
    %c1_59 = arith.constant 1 : index
    %199 = memref.load %arg1[%c1_58, %c1_59] : memref<2x8xf32, #tpu.memory_space<smem>>
    %200 = vector.extract_strided_slice %2 {offsets = [0, 9], sizes = [16, 1], strides = [1, 1]} : vector<16x16xf32> to vector<16x1xf32>
    %201 = vector.extract_strided_slice %4 {offsets = [9, 0], sizes = [1, 32], strides = [1, 1]} : vector<16x32xf32> to vector<1x32xf32>
    %cst_60 = arith.constant 2.000000e-01 : f32
    %202 = arith.mulf %cst_60, %199 : f32
    %203 = vector.broadcast %202 : f32 to vector<16x1xf32>
    %204 = arith.mulf %203, %200 : vector<16x1xf32>
    %cst_61 = arith.constant 2.000000e-01 : f32
    %205 = arith.mulf %cst_61, %199 : f32
    %206 = vector.broadcast %205 : f32 to vector<1x32xf32>
    %207 = arith.mulf %206, %201 : vector<1x32xf32>
    %208 = arith.addf %187, %204 : vector<16x1xf32>
    %209 = arith.addf %190, %207 : vector<1x32xf32>
    %210 = vector.broadcast %200 : vector<16x1xf32> to vector<16x32xf32>
    %211 = vector.broadcast %201 : vector<1x32xf32> to vector<16x32xf32>
    %212 = arith.addf %210, %211 : vector<16x32xf32>
    %cst_62 = arith.constant 0.000000e+00 : f32
    %213 = vector.broadcast %cst_62 : f32 to vector<16x32xf32>
    %214 = arith.maximumf %212, %213 : vector<16x32xf32>
    %cst_63 = arith.constant 8.000000e-01 : f32
    %215 = arith.mulf %cst_63, %199 : f32
    %216 = vector.broadcast %215 : f32 to vector<16x32xf32>
    %217 = arith.mulf %216, %214 : vector<16x32xf32>
    %218 = arith.addf %198, %217 : vector<16x32xf32>
    %c1_64 = arith.constant 1 : index
    %c2_65 = arith.constant 2 : index
    %219 = memref.load %arg1[%c1_64, %c2_65] : memref<2x8xf32, #tpu.memory_space<smem>>
    %220 = vector.extract_strided_slice %2 {offsets = [0, 10], sizes = [16, 1], strides = [1, 1]} : vector<16x16xf32> to vector<16x1xf32>
    %221 = vector.extract_strided_slice %4 {offsets = [10, 0], sizes = [1, 32], strides = [1, 1]} : vector<16x32xf32> to vector<1x32xf32>
    %cst_66 = arith.constant 2.000000e-01 : f32
    %222 = arith.mulf %cst_66, %219 : f32
    %223 = vector.broadcast %222 : f32 to vector<16x1xf32>
    %224 = arith.mulf %223, %220 : vector<16x1xf32>
    %cst_67 = arith.constant 2.000000e-01 : f32
    %225 = arith.mulf %cst_67, %219 : f32
    %226 = vector.broadcast %225 : f32 to vector<1x32xf32>
    %227 = arith.mulf %226, %221 : vector<1x32xf32>
    %228 = arith.addf %208, %224 : vector<16x1xf32>
    %229 = arith.addf %209, %227 : vector<1x32xf32>
    %230 = vector.broadcast %220 : vector<16x1xf32> to vector<16x32xf32>
    %231 = vector.broadcast %221 : vector<1x32xf32> to vector<16x32xf32>
    %232 = arith.addf %230, %231 : vector<16x32xf32>
    %cst_68 = arith.constant 0.000000e+00 : f32
    %233 = vector.broadcast %cst_68 : f32 to vector<16x32xf32>
    %234 = arith.maximumf %232, %233 : vector<16x32xf32>
    %cst_69 = arith.constant 8.000000e-01 : f32
    %235 = arith.mulf %cst_69, %219 : f32
    %236 = vector.broadcast %235 : f32 to vector<16x32xf32>
    %237 = arith.mulf %236, %234 : vector<16x32xf32>
    %238 = arith.addf %218, %237 : vector<16x32xf32>
    %c1_70 = arith.constant 1 : index
    %c3_71 = arith.constant 3 : index
    %239 = memref.load %arg1[%c1_70, %c3_71] : memref<2x8xf32, #tpu.memory_space<smem>>
    %240 = vector.extract_strided_slice %2 {offsets = [0, 11], sizes = [16, 1], strides = [1, 1]} : vector<16x16xf32> to vector<16x1xf32>
    %241 = vector.extract_strided_slice %4 {offsets = [11, 0], sizes = [1, 32], strides = [1, 1]} : vector<16x32xf32> to vector<1x32xf32>
    %cst_72 = arith.constant 2.000000e-01 : f32
    %242 = arith.mulf %cst_72, %239 : f32
    %243 = vector.broadcast %242 : f32 to vector<16x1xf32>
    %244 = arith.mulf %243, %240 : vector<16x1xf32>
    %cst_73 = arith.constant 2.000000e-01 : f32
    %245 = arith.mulf %cst_73, %239 : f32
    %246 = vector.broadcast %245 : f32 to vector<1x32xf32>
    %247 = arith.mulf %246, %241 : vector<1x32xf32>
    %248 = arith.addf %228, %244 : vector<16x1xf32>
    %249 = arith.addf %229, %247 : vector<1x32xf32>
    %250 = vector.broadcast %240 : vector<16x1xf32> to vector<16x32xf32>
    %251 = vector.broadcast %241 : vector<1x32xf32> to vector<16x32xf32>
    %252 = arith.addf %250, %251 : vector<16x32xf32>
    %cst_74 = arith.constant 0.000000e+00 : f32
    %253 = vector.broadcast %cst_74 : f32 to vector<16x32xf32>
    %254 = arith.maximumf %252, %253 : vector<16x32xf32>
    %cst_75 = arith.constant 8.000000e-01 : f32
    %255 = arith.mulf %cst_75, %239 : f32
    %256 = vector.broadcast %255 : f32 to vector<16x32xf32>
    %257 = arith.mulf %256, %254 : vector<16x32xf32>
    %258 = arith.addf %238, %257 : vector<16x32xf32>
    %c1_76 = arith.constant 1 : index
    %c4_77 = arith.constant 4 : index
    %259 = memref.load %arg1[%c1_76, %c4_77] : memref<2x8xf32, #tpu.memory_space<smem>>
    %260 = vector.extract_strided_slice %2 {offsets = [0, 12], sizes = [16, 1], strides = [1, 1]} : vector<16x16xf32> to vector<16x1xf32>
    %261 = vector.extract_strided_slice %4 {offsets = [12, 0], sizes = [1, 32], strides = [1, 1]} : vector<16x32xf32> to vector<1x32xf32>
    %cst_78 = arith.constant 2.000000e-01 : f32
    %262 = arith.mulf %cst_78, %259 : f32
    %263 = vector.broadcast %262 : f32 to vector<16x1xf32>
    %264 = arith.mulf %263, %260 : vector<16x1xf32>
    %cst_79 = arith.constant 2.000000e-01 : f32
    %265 = arith.mulf %cst_79, %259 : f32
    %266 = vector.broadcast %265 : f32 to vector<1x32xf32>
    %267 = arith.mulf %266, %261 : vector<1x32xf32>
    %268 = arith.addf %248, %264 : vector<16x1xf32>
    %269 = arith.addf %249, %267 : vector<1x32xf32>
    %270 = vector.broadcast %260 : vector<16x1xf32> to vector<16x32xf32>
    %271 = vector.broadcast %261 : vector<1x32xf32> to vector<16x32xf32>
    %272 = arith.addf %270, %271 : vector<16x32xf32>
    %cst_80 = arith.constant 0.000000e+00 : f32
    %273 = vector.broadcast %cst_80 : f32 to vector<16x32xf32>
    %274 = arith.maximumf %272, %273 : vector<16x32xf32>
    %cst_81 = arith.constant 8.000000e-01 : f32
    %275 = arith.mulf %cst_81, %259 : f32
    %276 = vector.broadcast %275 : f32 to vector<16x32xf32>
    %277 = arith.mulf %276, %274 : vector<16x32xf32>
    %278 = arith.addf %258, %277 : vector<16x32xf32>
    %c1_82 = arith.constant 1 : index
    %c5_83 = arith.constant 5 : index
    %279 = memref.load %arg1[%c1_82, %c5_83] : memref<2x8xf32, #tpu.memory_space<smem>>
    %280 = vector.extract_strided_slice %2 {offsets = [0, 13], sizes = [16, 1], strides = [1, 1]} : vector<16x16xf32> to vector<16x1xf32>
    %281 = vector.extract_strided_slice %4 {offsets = [13, 0], sizes = [1, 32], strides = [1, 1]} : vector<16x32xf32> to vector<1x32xf32>
    %cst_84 = arith.constant 2.000000e-01 : f32
    %282 = arith.mulf %cst_84, %279 : f32
    %283 = vector.broadcast %282 : f32 to vector<16x1xf32>
    %284 = arith.mulf %283, %280 : vector<16x1xf32>
    %cst_85 = arith.constant 2.000000e-01 : f32
    %285 = arith.mulf %cst_85, %279 : f32
    %286 = vector.broadcast %285 : f32 to vector<1x32xf32>
    %287 = arith.mulf %286, %281 : vector<1x32xf32>
    %288 = arith.addf %268, %284 : vector<16x1xf32>
    %289 = arith.addf %269, %287 : vector<1x32xf32>
    %290 = vector.broadcast %280 : vector<16x1xf32> to vector<16x32xf32>
    %291 = vector.broadcast %281 : vector<1x32xf32> to vector<16x32xf32>
    %292 = arith.addf %290, %291 : vector<16x32xf32>
    %cst_86 = arith.constant 0.000000e+00 : f32
    %293 = vector.broadcast %cst_86 : f32 to vector<16x32xf32>
    %294 = arith.maximumf %292, %293 : vector<16x32xf32>
    %cst_87 = arith.constant 8.000000e-01 : f32
    %295 = arith.mulf %cst_87, %279 : f32
    %296 = vector.broadcast %295 : f32 to vector<16x32xf32>
    %297 = arith.mulf %296, %294 : vector<16x32xf32>
    %298 = arith.addf %278, %297 : vector<16x32xf32>
    %c1_88 = arith.constant 1 : index
    %c6_89 = arith.constant 6 : index
    %299 = memref.load %arg1[%c1_88, %c6_89] : memref<2x8xf32, #tpu.memory_space<smem>>
    %300 = vector.extract_strided_slice %2 {offsets = [0, 14], sizes = [16, 1], strides = [1, 1]} : vector<16x16xf32> to vector<16x1xf32>
    %301 = vector.extract_strided_slice %4 {offsets = [14, 0], sizes = [1, 32], strides = [1, 1]} : vector<16x32xf32> to vector<1x32xf32>
    %cst_90 = arith.constant 2.000000e-01 : f32
    %302 = arith.mulf %cst_90, %299 : f32
    %303 = vector.broadcast %302 : f32 to vector<16x1xf32>
    %304 = arith.mulf %303, %300 : vector<16x1xf32>
    %cst_91 = arith.constant 2.000000e-01 : f32
    %305 = arith.mulf %cst_91, %299 : f32
    %306 = vector.broadcast %305 : f32 to vector<1x32xf32>
    %307 = arith.mulf %306, %301 : vector<1x32xf32>
    %308 = arith.addf %288, %304 : vector<16x1xf32>
    %309 = arith.addf %289, %307 : vector<1x32xf32>
    %310 = vector.broadcast %300 : vector<16x1xf32> to vector<16x32xf32>
    %311 = vector.broadcast %301 : vector<1x32xf32> to vector<16x32xf32>
    %312 = arith.addf %310, %311 : vector<16x32xf32>
    %cst_92 = arith.constant 0.000000e+00 : f32
    %313 = vector.broadcast %cst_92 : f32 to vector<16x32xf32>
    %314 = arith.maximumf %312, %313 : vector<16x32xf32>
    %cst_93 = arith.constant 8.000000e-01 : f32
    %315 = arith.mulf %cst_93, %299 : f32
    %316 = vector.broadcast %315 : f32 to vector<16x32xf32>
    %317 = arith.mulf %316, %314 : vector<16x32xf32>
    %318 = arith.addf %298, %317 : vector<16x32xf32>
    %c1_94 = arith.constant 1 : index
    %c7_95 = arith.constant 7 : index
    %319 = memref.load %arg1[%c1_94, %c7_95] : memref<2x8xf32, #tpu.memory_space<smem>>
    %320 = vector.extract_strided_slice %2 {offsets = [0, 15], sizes = [16, 1], strides = [1, 1]} : vector<16x16xf32> to vector<16x1xf32>
    %321 = vector.extract_strided_slice %4 {offsets = [15, 0], sizes = [1, 32], strides = [1, 1]} : vector<16x32xf32> to vector<1x32xf32>
    %cst_96 = arith.constant 2.000000e-01 : f32
    %322 = arith.mulf %cst_96, %319 : f32
    %323 = vector.broadcast %322 : f32 to vector<16x1xf32>
    %324 = arith.mulf %323, %320 : vector<16x1xf32>
    %cst_97 = arith.constant 2.000000e-01 : f32
    %325 = arith.mulf %cst_97, %319 : f32
    %326 = vector.broadcast %325 : f32 to vector<1x32xf32>
    %327 = arith.mulf %326, %321 : vector<1x32xf32>
    %328 = arith.addf %308, %324 : vector<16x1xf32>
    %329 = arith.addf %309, %327 : vector<1x32xf32>
    %330 = vector.broadcast %320 : vector<16x1xf32> to vector<16x32xf32>
    %331 = vector.broadcast %321 : vector<1x32xf32> to vector<16x32xf32>
    %332 = arith.addf %330, %331 : vector<16x32xf32>
    %cst_98 = arith.constant 0.000000e+00 : f32
    %333 = vector.broadcast %cst_98 : f32 to vector<16x32xf32>
    %334 = arith.maximumf %332, %333 : vector<16x32xf32>
    %cst_99 = arith.constant 8.000000e-01 : f32
    %335 = arith.mulf %cst_99, %319 : f32
    %336 = vector.broadcast %335 : f32 to vector<16x32xf32>
    %337 = arith.mulf %336, %334 : vector<16x32xf32>
    %338 = arith.addf %318, %337 : vector<16x32xf32>
    %339 = vector.broadcast %328 : vector<16x1xf32> to vector<16x32xf32>
    %340 = vector.broadcast %329 : vector<1x32xf32> to vector<16x32xf32>
    %341 = arith.addf %339, %340 : vector<16x32xf32>
    %342 = arith.addf %341, %1 : vector<16x32xf32>
    %343 = arith.addf %342, %338 : vector<16x32xf32>
    %cst_100 = arith.constant dense<0xFF800000> : vector<16xf32>
    %344 = vector.multi_reduction <maximumf>, %343, %cst_100 [1] : vector<16x32xf32> to vector<16xf32>
    %345 = vector.shape_cast %344 : vector<16xf32> to vector<16x1xf32>
    %346 = vector.broadcast %345 : vector<16x1xf32> to vector<16x32xf32>
    %347 = arith.subf %343, %346 : vector<16x32xf32>
    %348 = math.exp %347 : vector<16x32xf32>
    %cst_101 = arith.constant dense<0.000000e+00> : vector<16xf32>
    %349 = vector.multi_reduction <add>, %348, %cst_101 [1] : vector<16x32xf32> to vector<16xf32>
    %350 = vector.shape_cast %349 : vector<16xf32> to vector<16x1xf32>
    %cst_102 = arith.constant 9.99999968E-21 : f32
    %351 = vector.broadcast %cst_102 : f32 to vector<16x1xf32>
    %352 = arith.maximumf %350, %351 : vector<16x1xf32>
    %353 = vector.extract_strided_slice %3 {offsets = [0, 8], sizes = [32, 8], strides = [1, 1]} : vector<32x16xf32> to vector<32x8xf32>
    %cst_103 = arith.constant dense<0.000000e+00> : vector<16x8xf32>
    %354 = tpu.matmul %348, %353, %cst_103 {dimension_numbers = #tpu.dot_dimension_numbers<[1], [0], [0], [1], [0, 0, 1, 1], [], []>} : vector<16x32xf32>, vector<32x8xf32>, vector<16x8xf32> -> vector<16x8xf32>
    %cst_104 = arith.constant 1.000000e+00 : f32
    %355 = vector.broadcast %cst_104 : f32 to vector<16x1xf32>
    %356 = arith.divf %355, %352 : vector<16x1xf32>
    %357 = vector.broadcast %356 : vector<16x1xf32> to vector<16x8xf32>
    %358 = arith.mulf %354, %357 : vector<16x8xf32>
    %359 = tpu.concatenate %181, %358 in 1 : vector<16x8xf32>, vector<16x8xf32> -> vector<16x16xf32>
    %c0_105 = arith.constant 0 : index
    %c0_106 = arith.constant 0 : index
    %360 = vector.load %arg6[%c0_105, %c0_106] : memref<1x16xf32, #tpu.memory_space<vmem>>, vector<1x16xf32>
    %361 = vector.broadcast %360 : vector<1x16xf32> to vector<16x16xf32>
    %362 = arith.addf %359, %361 : vector<16x16xf32>
    %c0_107 = arith.constant 0 : index
    %c0_108 = arith.constant 0 : index
    %363 = vector.load %arg7[%c0_107, %c0_108] : memref<16x16xf32, #tpu.memory_space<vmem>>, vector<16x16xf32>
    tpu.vector_store %arg7[%c0_107, %c0_108], %362 {strides = array<i32>} : memref<16x16xf32, #tpu.memory_space<vmem>>, vector<16x16xf32>,
    return
  }
  func.func @transform_0(%arg0: i32) -> (i32, i32) {
    %c0_i32 = arith.constant 0 : i32
    %c0_i32_0 = arith.constant 0 : i32
    %c0_i32_1 = arith.constant 0 : i32
    return %c0_i32, %c0_i32_0 : i32, i32
  }
  func.func @transform_1(%arg0: i32) -> (i32, i32) {
    %c0_i32 = arith.constant 0 : i32
    %c0_i32_0 = arith.constant 0 : i32
    return %arg0, %c0_i32 : i32, i32
  }
  func.func @transform_2(%arg0: i32) -> (i32, i32) {
    %c0_i32 = arith.constant 0 : i32
    %c0_i32_0 = arith.constant 0 : i32
    %c0_i32_1 = arith.constant 0 : i32
    return %c0_i32, %c0_i32_0 : i32, i32
  }
  func.func @transform_3(%arg0: i32) -> (i32, i32) {
    %c0_i32 = arith.constant 0 : i32
    %c0_i32_0 = arith.constant 0 : i32
    %c0_i32_1 = arith.constant 0 : i32
    return %c0_i32, %c0_i32_0 : i32, i32
  }
  func.func @transform_4(%arg0: i32) -> (i32, i32) {
    %c0_i32 = arith.constant 0 : i32
    %c0_i32_0 = arith.constant 0 : i32
    return %arg0, %c0_i32 : i32, i32
  }
  func.func @transform_5(%arg0: i32) -> (i32, i32) {
    %c0_i32 = arith.constant 0 : i32
    %c0_i32_0 = arith.constant 0 : i32
    %c0_i32_1 = arith.constant 0 : i32
    return %c0_i32, %c0_i32_0 : i32, i32
  }
  func.func @transform_6(%arg0: i32) -> (i32, i32) {
    %c0_i32 = arith.constant 0 : i32
    %c0_i32_0 = arith.constant 0 : i32
    return %arg0, %c0_i32 : i32, i32
  }
}

</mosaic_0001>

<llo_original>
// kernel: gat_forward.5
$region0: #{gat_forward.5}
  #allocation0 [shape = 'u32[]', space=smem, size = 0x4, offset = 0x4, fixed_abs, tag = 'smem constant byte address 0x4 - core index']
  #allocation1 [shape = 'u32[144,128]{1,0:T(1,128)}', space=vmem, size = 0x12000, scoped, tag = 'internal scratch']
  %s0 = inlined_call_operand.vmem [shape: f32[2,2,8], index: 0, kind: input, shape index: {}]
  %s1 = inlined_call_operand.vmem [shape: f32[8,8], index: 1, kind: input, shape index: {}]
  %s2 = inlined_call_operand.vmem [shape: f32[1,8], index: 2, kind: input, shape index: {}]
  %s3 = inlined_call_operand.vmem [shape: f32[8,4], index: 3, kind: input, shape index: {}]
  %s4 = inlined_call_operand.vmem [shape: f32[1,4], index: 4, kind: input, shape index: {}]
  %s5 = inlined_call_operand.hbm [shape: f32[2,4], index: 5, kind: output, shape index: {}]
  %s6 = sld [smem:[#allocation0]]
  $region30: #{gat_forward.5} parent=0
    _
  %s8 = ssub.s32 1, %s6
  %s9 = scalar_select 0, %s8, %s6
  $region1: #{gat_forward.5} parent=0
    #allocation2 [shape = 'u8[1024]{0}', space=vmem, size = 0x400, scoped, tag = 'output window, operand 0, single buffered']
    #allocation3 [shape = 's32[1]{0}', space=sflag, size = 0x4, scoped, tag = 'scoped memory for gat_forward.5']
    %10 = vsyncpa [#allocation3], 0
    // Predicated region
    $region2: #{gat_forward.5} parent=1 // pred_check
      _
    $region3: #{gat_forward.5} parent=1 // pred_check_branch
      %12 = sbr.rel (0) target = $region5
    $region4: #{gat_forward.5} parent=1 // pred_region
      _
    $region5: #{gat_forward.5} parent=1 // pred_fallthru
      _
    // Predicated region
    $region6: #{gat_forward.5} parent=1 // pred_check
      _
    $region7: #{gat_forward.5} parent=1 // pred_check_branch
      %14 = sbr.rel (0) target = $region9
    $region8: #{gat_forward.5} parent=1 // pred_region
      _
    $region9: #{gat_forward.5} parent=1 // pred_fallthru
      _
    // Predicated region
    $region10: #{gat_forward.5} parent=1 // pred_check
      _
    $region11: #{gat_forward.5} parent=1 // pred_check_branch
      %16 = sbr.rel (0) target = $region13
    $region12: #{gat_forward.5} parent=1 // pred_region
      _
    $region13: #{gat_forward.5} parent=1 // pred_fallthru
      _
    // Predicated region
    $region14: #{gat_forward.5} parent=1 // pred_check
      _
    $region15: #{gat_forward.5} parent=1 // pred_check_branch
      %18 = sbr.rel (0) target = $region17
    $region16: #{gat_forward.5} parent=1 // pred_region
      _
    $region17: #{gat_forward.5} parent=1 // pred_fallthru
      _
    // Predicated region
    $region18: #{gat_forward.5} parent=1 // pred_check
      _
    $region19: #{gat_forward.5} parent=1 // pred_check_branch
      %20 = sbr.rel (0) target = $region21
    $region20: #{gat_forward.5} parent=1 // pred_region
      _
    $region21: #{gat_forward.5} parent=1 // pred_fallthru
      _
    %v21 = vld [vmem:[%s0] sm:$0x3]
    %v22 = vld [vmem:[%s0 + $0x2] sm:$0x3]
    %vm23 = vcmask 58368
    %v24 = vsel %vm23, %v21, -inf
    %v25 = vsel %vm23, %v22, -inf
    %v26 = vmax.f32 %v24, %v25
    %v27 = vld [vmem:[%s1] sm:$0xff]
    %v28 = vld [vmem:[%s2] sm:$0x1]
    %v30 = vlaneseq
    %v31 = vshrl.u32 %v30, 7
    %v32 = vsub.s32 0, %v31
    %v33 = vrot.slane %v28, %v32
    %vm35 = vcmask 64512
    %v37 = vsel %vm35, %v26, 0
    %39 = vmatprep.subr.mxu0 0.0
    %40 = vmatpush1.msra.mxu0 %v27
    %41 = vmatprep.subr.mxu0 0.0
    %42 = vmatpush1.msra.mxu0 0.0
    %43 = vmatprep.subr.mxu0 0.0
    %44 = vmatpush1.msra.mxu0 0.0
    %45 = vmatprep.subr.mxu0 0.0
    %46 = vmatpush1.msra.mxu0 0.0
    %47 = vmatprep.subr.mxu0 0.0
    %48 = vmatpush1.msra.mxu0 0.0
    %49 = vmatprep.subr.mxu0 0.0
    %50 = vmatpush1.msra.mxu0 0.0
    %51 = vmatprep.subr.mxu0 0.0
    %52 = vmatpush1.msra.mxu0 0.0
    %53 = vmatprep.subr.mxu0 0.0
    %54 = vmatpush1.msra.mxu0 0.0
    %55 = vmatprep.subr.mxu0 0.0
    %56 = vmatpush1.msra.mxu0 0.0
    %57 = vmatprep.subr.mxu0 0.0
    %58 = vmatpush1.msra.mxu0 0.0
    %59 = vmatprep.subr.mxu0 0.0
    %60 = vmatpush1.msra.mxu0 0.0
    %61 = vmatprep.subr.mxu0 0.0
    %62 = vmatpush1.msra.mxu0 0.0
    %63 = vmatprep.subr.mxu0 0.0
    %64 = vmatpush1.msra.mxu0 0.0
    %65 = vmatprep.subr.mxu0 0.0
    %66 = vmatpush1.msra.mxu0 0.0
    %67 = vmatprep.subr.mxu0 0.0
    %68 = vmatpush1.msra.mxu0 0.0
    %69 = vmatprep.subr.mxu0 0.0
    %70 = vmatpush1.msra.mxu0 0.0
    %71 = vmatprep.subr.mxu0 0.0
    %72 = vmatpush1.msra.mxu0 0.0
    %73 = vmatprep.subr.mxu0 0.0
    %74 = vmatpush1.msra.mxu0 0.0
    %75 = vmatprep.subr.mxu0 0.0
    %76 = vmatpush1.msra.mxu0 0.0
    %77 = vmatprep.subr.mxu0 0.0
    %78 = vmatpush1.msra.mxu0 0.0
    %79 = vmatprep.subr.mxu0 0.0
    %80 = vmatpush1.msra.mxu0 0.0
    %81 = vmatprep.subr.mxu0 0.0
    %82 = vmatpush1.msra.mxu0 0.0
    %83 = vmatprep.subr.mxu0 0.0
    %84 = vmatpush1.msra.mxu0 0.0
    %85 = vmatprep.subr.mxu0 0.0
    %86 = vmatpush1.msra.mxu0 0.0
    %87 = vmatprep.subr.mxu0 0.0
    %88 = vmatpush1.msra.mxu0 0.0
    %89 = vmatprep.subr.mxu0 0.0
    %90 = vmatpush1.msra.mxu0 0.0
    %91 = vmatprep.subr.mxu0 0.0
    %92 = vmatpush1.msra.mxu0 0.0
    %93 = vmatprep.subr.mxu0 0.0
    %94 = vmatpush1.msra.mxu0 0.0
    %95 = vmatprep.subr.mxu0 0.0
    %96 = vmatpush1.msra.mxu0 0.0
    %97 = vmatprep.subr.mxu0 0.0
    %98 = vmatpush1.msra.mxu0 0.0
    %99 = vmatprep.subr.mxu0 0.0
    %100 = vmatpush1.msra.mxu0 0.0
    %101 = vmatprep.subr.mxu0 0.0
    %102 = vmatpush1.msra.mxu0 0.0
    %103 = vmatprep.mubr.f32.mxu0 0.0
    %104 = vmatmul.mubr.f32.gmra.mrb[0].mxu0 %v37
    %v105 = vpop.f32.mrb[0].mxu0
    %v106 = vadd.f32 %v33, %v105
    %v107 = vpop.f32.mrb[0].mxu0
    %108 = vdwg.mxu0
    %v109 = vmax.f32 %v106, 0.0
    %v110 = vld [vmem:[%s3] sm:$0xff]
    %v111 = vld [vmem:[%s4] sm:$0x1]
    %v113 = vlaneseq
    %v114 = vshrl.u32 %v113, 7
    %v115 = vsub.s32 0, %v114
    %v116 = vrot.slane %v111, %v115
    %v119 = vsel %vm35, %v109, 0
    %121 = vmatprep.subr.mxu0 0.0
    %122 = vmatpush1.msra.mxu0 %v110
    %123 = vmatprep.subr.mxu0 0.0
    %124 = vmatpush1.msra.mxu0 0.0
    %125 = vmatprep.subr.mxu0 0.0
    %126 = vmatpush1.msra.mxu0 0.0
    %127 = vmatprep.subr.mxu0 0.0
    %128 = vmatpush1.msra.mxu0 0.0
    %129 = vmatprep.subr.mxu0 0.0
    %130 = vmatpush1.msra.mxu0 0.0
    %131 = vmatprep.subr.mxu0 0.0
    %132 = vmatpush1.msra.mxu0 0.0
    %133 = vmatprep.subr.mxu0 0.0
    %134 = vmatpush1.msra.mxu0 0.0
    %135 = vmatprep.subr.mxu0 0.0
    %136 = vmatpush1.msra.mxu0 0.0
    %137 = vmatprep.subr.mxu0 0.0
    %138 = vmatpush1.msra.mxu0 0.0
    %139 = vmatprep.subr.mxu0 0.0
    %140 = vmatpush1.msra.mxu0 0.0
    %141 = vmatprep.subr.mxu0 0.0
    %142 = vmatpush1.msra.mxu0 0.0
    %143 = vmatprep.subr.mxu0 0.0
    %144 = vmatpush1.msra.mxu0 0.0
    %145 = vmatprep.subr.mxu0 0.0
    %146 = vmatpush1.msra.mxu0 0.0
    %147 = vmatprep.subr.mxu0 0.0
    %148 = vmatpush1.msra.mxu0 0.0
    %149 = vmatprep.subr.mxu0 0.0
    %150 = vmatpush1.msra.mxu0 0.0
    %151 = vmatprep.subr.mxu0 0.0
    %152 = vmatpush1.msra.mxu0 0.0
    %153 = vmatprep.subr.mxu0 0.0
    %154 = vmatpush1.msra.mxu0 0.0
    %155 = vmatprep.subr.mxu0 0.0
    %156 = vmatpush1.msra.mxu0 0.0
    %157 = vmatprep.subr.mxu0 0.0
    %158 = vmatpush1.msra.mxu0 0.0
    %159 = vmatprep.subr.mxu0 0.0
    %160 = vmatpush1.msra.mxu0 0.0
    %161 = vmatprep.subr.mxu0 0.0
    %162 = vmatpush1.msra.mxu0 0.0
    %163 = vmatprep.subr.mxu0 0.0
    %164 = vmatpush1.msra.mxu0 0.0
    %165 = vmatprep.subr.mxu0 0.0
    %166 = vmatpush1.msra.mxu0 0.0
    %167 = vmatprep.subr.mxu0 0.0
    %168 = vmatpush1.msra.mxu0 0.0
    %169 = vmatprep.subr.mxu0 0.0
    %170 = vmatpush1.msra.mxu0 0.0
    %171 = vmatprep.subr.mxu0 0.0
    %172 = vmatpush1.msra.mxu0 0.0
    %173 = vmatprep.subr.mxu0 0.0
    %174 = vmatpush1.msra.mxu0 0.0
    %175 = vmatprep.subr.mxu0 0.0
    %176 = vmatpush1.msra.mxu0 0.0
    %177 = vmatprep.subr.mxu0 0.0
    %178 = vmatpush1.msra.mxu0 0.0
    %179 = vmatprep.subr.mxu0 0.0
    %180 = vmatpush1.msra.mxu0 0.0
    %181 = vmatprep.subr.mxu0 0.0
    %182 = vmatpush1.msra.mxu0 0.0
    %183 = vmatprep.subr.mxu0 0.0
    %184 = vmatpush1.msra.mxu0 0.0
    %185 = vmatprep.mubr.f32.mxu0 0.0
    %186 = vmatmul.mubr.f32.gmra.mrb[0].mxu0 %v119
    %v187 = vpop.f32.mrb[0].mxu0
    %v188 = vadd.f32 %v116, %v187
    %v189 = vpop.f32.mrb[0].mxu0
    %190 = vdwg.mxu0
    %vm191 = vcmask 25600
    %192 = vst.msk [vmem:[#allocation2] sm:$0x3] %vm191, %v188
    // Predicated region
    $region22: #{gat_forward.5} parent=1 // pred_check
      _
    $region23: #{gat_forward.5} parent=1 // pred_check_branch
      %194 = sbr.rel (0) target = $region25
    $region24: #{gat_forward.5} parent=1 // pred_region
      %s196 = ssub.s32 32, 32
      %197 = vsyncadd [#allocation3], %s196
      %s199 = sshll.u32 [#allocation2], 4
      %s200 = int_to_ptr.vmem [resolvable:$true] %s199
      %202 = dma.vmem_to_hbm [thread:$0]  %s200, 32, %s5, [#allocation3]
    $region25: #{gat_forward.5} parent=1 // pred_fallthru
      _
    // Predicated region
    $region26: #{gat_forward.5} parent=1 // pred_check
      _
    $region27: #{gat_forward.5} parent=1 // pred_check_branch
      %204 = sbr.rel (0) target = $region29
    $region28: #{gat_forward.5} parent=1 // pred_region
      %205 = dma.done [#allocation3], 32
    $region29: #{gat_forward.5} parent=1 // pred_fallthru
      _
    %206 = vsyncpa [#allocation3], 1

// kernel: gat_forward.4
$region0: #{gat_forward.4}
  #allocation0 [shape = 'u32[]', space=smem, size = 0x4, offset = 0x4, fixed_abs, tag = 'smem constant byte address 0x4 - core index']
  #allocation1 [shape = 'u32[144,128]{1,0:T(1,128)}', space=vmem, size = 0x12000, scoped, tag = 'internal scratch']
  %s0 = inlined_call_operand.vmem [shape: f32[2,8], index: 0, kind: input, shape index: {}]
  %s1 = inlined_call_operand.vmem [shape: f32[32,16], index: 1, kind: input, shape index: {}]
  %s2 = inlined_call_operand.vmem [shape: f32[32,16], index: 2, kind: input, shape index: {}]
  %s3 = inlined_call_operand.vmem [shape: f32[16,32], index: 3, kind: input, shape index: {}]
  %s4 = inlined_call_operand.vmem [shape: bf16[32,32], index: 4, kind: input, shape index: {}]
  %s5 = inlined_call_operand.vmem [shape: f32[1,8], index: 5, kind: input, shape index: {}]
  %s6 = inlined_call_operand.vmem [shape: s32[32,1], index: 6, kind: input, shape index: {}]
  %s7 = inlined_call_operand.vmem [shape: f32[2,2,8], index: 7, kind: output, shape index: {}]
  %s8 = sld [smem:[#allocation0]]
  $region65: #{gat_forward.4} parent=0
    _
  %s10 = ssub.s32 1, %s8
  %s11 = scalar_select 0, %s10, %s8
  $region1: #{gat_forward.4} parent=0
    #allocation2 [shape = 'u8[1024]{0}', space=smem, size = 0x400, scoped, tag = 'input window, operand 0, single buffered']
    #allocation3 [shape = 's32[2]{0}', space=sflag, size = 0x8, scoped, tag = 'scoped memory for gat_forward.4']
    %12 = vsyncpa [#allocation3], 0
    loop: start=0, step=1, limit=4
    $region2: #{gat_forward.4} parent=1 // loop_pre_header
      _
    $region3: #{gat_forward.4} parent=1 // loop_header
      %s14 = sphi 0, %s18
      %p15 = scmp.ge.s32.totalorder %s14, 4
      %s22 = sphi 0, %s22
      %s24 = sphi 0, %s22
      %s25 = sphi 0, %s24
      %s39 = sphi 0, %s25
      %s45 = sphi 0, %s47
      %s48 = sphi 0, %s45
      %s49 = sphi 0, %s48
      %s65 = sphi 0, %s49
      %s69 = sphi 0, %s69
      %s71 = sphi 0, %s69
      %s72 = sphi 0, %s71
      %s86 = sphi 0, %s72
      %s90 = sphi 0, %s90
      %s92 = sphi 0, %s90
      %s93 = sphi 0, %s92
      %s107 = sphi 0, %s93
      %s113 = sphi 0, %s115
      %s116 = sphi 0, %s113
      %s117 = sphi 0, %s116
      %s133 = sphi 0, %s117
      %s137 = sphi 0, %s137
      %s139 = sphi 0, %s137
      %s140 = sphi 0, %s139
      %s154 = sphi 0, %s140
      %s160 = sphi 0, %s162
      %s163 = sphi 0, %s160
      %s164 = sphi 0, %s163
      %s180 = sphi 0, %s164
      %s186 = sphi 0, %s188
      %s189 = sphi 0, %s186
      %s190 = sphi 0, %s189
      %s206 = sphi 0, %s190
    $region4: #{gat_forward.4} parent=1 // loop_header_branch
      %17 = sbr.rel (%p15) target = $region8
    $region5: #{gat_forward.4} parent=1 // loop_body
      %s19 = ssub.s32 %s14, 1
      %s20 = ssub.s32 %s14, 2
      %s21 = sadd.s32 %s14, 1
      %s23 = sadd.s32 %s22, 1
      %p26 = scmp.eq.s32.totalorder %s14, 1
      %p27 = scmp.ne.s32.totalorder %s22, %s24
      %p28 = scmp.eq.s32.totalorder %s14, 0
      %p29 = por %p27, %p28
      %p30 = scmp.ne.s32.totalorder %s22, %s24
      %p31 = scmp.eq.s32.totalorder %s19, 1
      %p32 = por %p30, %p31
      %p33 = scmp.ne.s32.totalorder %s24, %s25
      %p34 = scmp.eq.s32.totalorder %s19, 0
      %p35 = por %p33, %p34
      %p36 = scmp.ne.s32.totalorder %s24, %s25
      %p37 = scmp.eq.s32.totalorder %s20, 1
      %p38 = por %p36, %p37
      %p40 = scmp.ne.s32.totalorder %s25, %s39
      %p41 = scmp.eq.s32.totalorder %s20, 0
      %p42 = por %p40, %p41
      %s43 = ssub.s32 %s14, %s21
      %p44 = scmp.eq.s32.totalorder %s43, 0
      %s46 = sadd.s32 %s45, 1
      %s47 = scalar_select %p44, %s45, %s46
      %p50 = pneg %p44
      %p51 = scmp.eq.s32.totalorder %s14, 1
      %p52 = por %p50, %p51
      %p53 = scmp.ne.s32.totalorder %s45, %s48
      %p54 = scmp.eq.s32.totalorder %s14, 0
      %p55 = por %p53, %p54
      %p56 = scmp.ne.s32.totalorder %s45, %s48
      %p57 = scmp.eq.s32.totalorder %s19, 1
      %p58 = por %p56, %p57
      %p59 = scmp.ne.s32.totalorder %s48, %s49
      %p60 = scmp.eq.s32.totalorder %s19, 0
      %p61 = por %p59, %p60
      %p62 = scmp.ne.s32.totalorder %s48, %s49
      %p63 = scmp.eq.s32.totalorder %s20, 1
      %p64 = por %p62, %p63
      %p66 = scmp.ne.s32.totalorder %s49, %s65
      %p67 = scmp.eq.s32.totalorder %s20, 0
      %p68 = por %p66, %p67
      %s70 = sadd.s32 %s69, 1
      %p73 = scmp.eq.s32.totalorder %s14, 1
      %p74 = scmp.ne.s32.totalorder %s69, %s71
      %p75 = scmp.eq.s32.totalorder %s14, 0
      %p76 = por %p74, %p75
      %p77 = scmp.ne.s32.totalorder %s69, %s71
      %p78 = scmp.eq.s32.totalorder %s19, 1
      %p79 = por %p77, %p78
      %p80 = scmp.ne.s32.totalorder %s71, %s72
      %p81 = scmp.eq.s32.totalorder %s19, 0
      %p82 = por %p80, %p81
      %p83 = scmp.ne.s32.totalorder %s71, %s72
      %p84 = scmp.eq.s32.totalorder %s20, 1
      %p85 = por %p83, %p84
      %p87 = scmp.ne.s32.totalorder %s72, %s86
      %p88 = scmp.eq.s32.totalorder %s20, 0
      %p89 = por %p87, %p88
      %s91 = sadd.s32 %s90, 1
      %p94 = scmp.eq.s32.totalorder %s14, 1
      %p95 = scmp.ne.s32.totalorder %s90, %s92
      %p96 = scmp.eq.s32.totalorder %s14, 0
      %p97 = por %p95, %p96
      %p98 = scmp.ne.s32.totalorder %s90, %s92
      %p99 = scmp.eq.s32.totalorder %s19, 1
      %p100 = por %p98, %p99
      %p101 = scmp.ne.s32.totalorder %s92, %s93
      %p102 = scmp.eq.s32.totalorder %s19, 0
      %p103 = por %p101, %p102
      %p104 = scmp.ne.s32.totalorder %s92, %s93
      %p105 = scmp.eq.s32.totalorder %s20, 1
      %p106 = por %p104, %p105
      %p108 = scmp.ne.s32.totalorder %s93, %s107
      %p109 = scmp.eq.s32.totalorder %s20, 0
      %p110 = por %p108, %p109
      %s111 = ssub.s32 %s14, %s21
      %p112 = scmp.eq.s32.totalorder %s111, 0
      %s114 = sadd.s32 %s113, 1
      %s115 = scalar_select %p112, %s113, %s114
      %p118 = pneg %p112
      %p119 = scmp.eq.s32.totalorder %s14, 1
      %p120 = por %p118, %p119
      %p121 = scmp.ne.s32.totalorder %s113, %s116
      %p122 = scmp.eq.s32.totalorder %s14, 0
      %p123 = por %p121, %p122
      %p124 = scmp.ne.s32.totalorder %s113, %s116
      %p125 = scmp.eq.s32.totalorder %s19, 1
      %p126 = por %p124, %p125
      %p127 = scmp.ne.s32.totalorder %s116, %s117
      %p128 = scmp.eq.s32.totalorder %s19, 0
      %p129 = por %p127, %p128
      %p130 = scmp.ne.s32.totalorder %s116, %s117
      %p131 = scmp.eq.s32.totalorder %s20, 1
      %p132 = por %p130, %p131
      %p134 = scmp.ne.s32.totalorder %s117, %s133
      %p135 = scmp.eq.s32.totalorder %s20, 0
      %p136 = por %p134, %p135
      %s138 = sadd.s32 %s137, 1
      %p141 = scmp.eq.s32.totalorder %s14, 1
      %p142 = scmp.ne.s32.totalorder %s137, %s139
      %p143 = scmp.eq.s32.totalorder %s14, 0
      %p144 = por %p142, %p143
      %p145 = scmp.ne.s32.totalorder %s137, %s139
      %p146 = scmp.eq.s32.totalorder %s19, 1
      %p147 = por %p145, %p146
      %p148 = scmp.ne.s32.totalorder %s139, %s140
      %p149 = scmp.eq.s32.totalorder %s19, 0
      %p150 = por %p148, %p149
      %p151 = scmp.ne.s32.totalorder %s139, %s140
      %p152 = scmp.eq.s32.totalorder %s20, 1
      %p153 = por %p151, %p152
      %p155 = scmp.ne.s32.totalorder %s140, %s154
      %p156 = scmp.eq.s32.totalorder %s20, 0
      %p157 = por %p155, %p156
      %s158 = ssub.s32 %s14, %s21
      %p159 = scmp.eq.s32.totalorder %s158, 0
      %s161 = sadd.s32 %s160, 1
      %s162 = scalar_select %p159, %s160, %s161
      %p165 = pneg %p159
      %p166 = scmp.eq.s32.totalorder %s14, 1
      %p167 = por %p165, %p166
      %p168 = scmp.ne.s32.totalorder %s160, %s163
      %p169 = scmp.eq.s32.totalorder %s14, 0
      %p170 = por %p168, %p169
      %p171 = scmp.ne.s32.totalorder %s160, %s163
      %p172 = scmp.eq.s32.totalorder %s19, 1
      %p173 = por %p171, %p172
      %p174 = scmp.ne.s32.totalorder %s163, %s164
      %p175 = scmp.eq.s32.totalorder %s19, 0
      %p176 = por %p174, %p175
      %p177 = scmp.ne.s32.totalorder %s163, %s164
      %p178 = scmp.eq.s32.totalorder %s20, 1
      %p179 = por %p177, %p178
      %p181 = scmp.ne.s32.totalorder %s164, %s180
      %p182 = scmp.eq.s32.totalorder %s20, 0
      %p183 = por %p181, %p182
      %s184 = ssub.s32 %s14, %s21
      %p185 = scmp.eq.s32.totalorder %s184, 0
      %s187 = sadd.s32 %s186, 1
      %s188 = scalar_select %p185, %s186, %s187
      %p191 = pneg %p185
      %p192 = scmp.eq.s32.totalorder %s14, 1
      %p193 = por %p191, %p192
      %p194 = scmp.ne.s32.totalorder %s186, %s189
      %p195 = scmp.eq.s32.totalorder %s14, 0
      %p196 = por %p194, %p195
      %p197 = scmp.ne.s32.totalorder %s186, %s189
      %p198 = scmp.eq.s32.totalorder %s19, 1
      %p199 = por %p197, %p198
      %p200 = scmp.ne.s32.totalorder %s189, %s190
      %p201 = scmp.eq.s32.totalorder %s19, 0
      %p202 = por %p200, %p201
      %p203 = scmp.ne.s32.totalorder %s189, %s190
      %p204 = scmp.eq.s32.totalorder %s20, 1
      %p205 = por %p203, %p204
      %p207 = scmp.ne.s32.totalorder %s190, %s206
      %p208 = scmp.eq.s32.totalorder %s20, 0
      %p209 = por %p207, %p208
      %p210 = scmp.le.s32.totalorder 1, %s14
      %p211 = scmp.lt.s32.totalorder %s14, 3
      %p212 = pnand %p210, %p211
      %p213 = pneg %p212
      // Predicated region
      $region9: #{gat_forward.4} parent=5 // pred_check
        _
      $region10: #{gat_forward.4} parent=5 // pred_check_branch
        %215 = sbr.rel (%p212) target = $region12
      $region11: #{gat_forward.4} parent=5 // pred_region
        %s216 = ssub.s32 %s14, 1
        // Predicated region
        $region13: #{gat_forward.4} parent=11 // pred_check
          %p217 = pneg %p35
        $region14: #{gat_forward.4} parent=11 // pred_check_branch
          %219 = sbr.rel (%p217) target = $region16
        $region15: #{gat_forward.4} parent=11 // pred_region
          %s221 = ssub.s32 32, 32
          %222 = vsyncadd [#allocation3], %s221
          %s224 = sshll.u32 %s0, 4
          %s225 = int_to_ptr.vmem [resolvable:$true] %s224
          %227 = dma.vmem_to_smem %s225, 32, [#allocation2], [#allocation3]
        $region16: #{gat_forward.4} parent=11 // pred_fallthru
          _
        // Predicated region
        $region17: #{gat_forward.4} parent=11 // pred_check
          %p228 = pneg %p82
        $region18: #{gat_forward.4} parent=11 // pred_check_branch
          %230 = sbr.rel (%p228) target = $region20
        $region19: #{gat_forward.4} parent=11 // pred_region
          _
        $region20: #{gat_forward.4} parent=11 // pred_fallthru
          _
        // Predicated region
        $region21: #{gat_forward.4} parent=11 // pred_check
          %p231 = pneg %p103
        $region22: #{gat_forward.4} parent=11 // pred_check_branch
          %233 = sbr.rel (%p231) target = $region24
        $region23: #{gat_forward.4} parent=11 // pred_region
          _
        $region24: #{gat_forward.4} parent=11 // pred_fallthru
          _
        // Predicated region
        $region25: #{gat_forward.4} parent=11 // pred_check
          %p234 = pneg %p150
        $region26: #{gat_forward.4} parent=11 // pred_check_branch
          %236 = sbr.rel (%p234) target = $region28
        $region27: #{gat_forward.4} parent=11 // pred_region
          _
        $region28: #{gat_forward.4} parent=11 // pred_fallthru
          _
      $region12: #{gat_forward.4} parent=5 // pred_fallthru
        _
      %p237 = scmp.lt.s32.totalorder %s14, 2
      // Predicated region
      $region29: #{gat_forward.4} parent=5 // pred_check
        %p238 = pneg %p237
      $region30: #{gat_forward.4} parent=5 // pred_check_branch
        %240 = sbr.rel (%p238) target = $region32
      $region31: #{gat_forward.4} parent=5 // pred_region
        // Predicated region
        $region33: #{gat_forward.4} parent=31 // pred_check
          %p241 = pneg %p55
        $region34: #{gat_forward.4} parent=31 // pred_check_branch
          %243 = sbr.rel (%p241) target = $region36
        $region35: #{gat_forward.4} parent=31 // pred_region
          %s244 = smul.u32 2, %s14
          %p245 = scmp.lt.s32.totalorder %s244, 3
          %s246 = scalar_select %p245, %s244, 3
          %s247 = smul.addr %s246, 8
          %s248 = scalar_lea.vmem %s1, %s247
          %s249 = smul.u32 2, %s14
        $region36: #{gat_forward.4} parent=31 // pred_fallthru
          _
        // Predicated region
        $region37: #{gat_forward.4} parent=31 // pred_check
          %p250 = pneg %p123
        $region38: #{gat_forward.4} parent=31 // pred_check_branch
          %252 = sbr.rel (%p250) target = $region40
        $region39: #{gat_forward.4} parent=31 // pred_region
          %s253 = smul.u32 2, %s14
          %p254 = scmp.lt.s32.totalorder %s253, 3
          %s255 = scalar_select %p254, %s253, 3
          %s256 = smul.addr %s255, 4
          %s257 = scalar_lea.vmem %s4, %s256
          %s258 = smul.u32 2, %s14
        $region40: #{gat_forward.4} parent=31 // pred_fallthru
          _
        // Predicated region
        $region41: #{gat_forward.4} parent=31 // pred_check
          %p259 = pneg %p170
        $region42: #{gat_forward.4} parent=31 // pred_check_branch
          %261 = sbr.rel (%p259) target = $region44
        $region43: #{gat_forward.4} parent=31 // pred_region
          %s262 = smul.u32 2, %s14
          %p263 = scmp.lt.s32.totalorder %s262, 3
          %s264 = scalar_select %p263, %s262, 3
          %s265 = smul.addr %s264, 8
          %s266 = scalar_lea.vmem %s6, %s265
          %s267 = smul.u32 2, %s14
        $region44: #{gat_forward.4} parent=31 // pred_fallthru
          _
      $region32: #{gat_forward.4} parent=5 // pred_fallthru
        _
      %p268 = scmp.le.s32.totalorder 1, %s14
      %p269 = scmp.lt.s32.totalorder %s14, 3
      %p270 = pnand %p268, %p269
      %p271 = pneg %p270
      // Predicated region
      $region45: #{gat_forward.4} parent=5 // pred_check
        _
      $region46: #{gat_forward.4} parent=5 // pred_check_branch
        %273 = sbr.rel (%p270) target = $region48
      $region47: #{gat_forward.4} parent=5 // pred_region
        %s274 = ssub.s32 %s14, 1
        // Predicated region
        $region49: #{gat_forward.4} parent=47 // pred_check
          %p275 = pneg %p35
        $region50: #{gat_forward.4} parent=47 // pred_check_branch
          %277 = sbr.rel (%p275) target = $region52
        $region51: #{gat_forward.4} parent=47 // pred_region
          %278 = dma.done [#allocation3], 32
        $region52: #{gat_forward.4} parent=47 // pred_fallthru
          _
        %279 = sfence
        %p280 = pneg %p35
        %p281 = pneg %p32
        %s282 = smul.u32 2, %s19
        %p283 = scmp.lt.s32.totalorder %s282, 3
        %s284 = scalar_select %p283, %s282, 3
        %s285 = smul.addr %s284, 8
        %s286 = scalar_lea.vmem %s1, %s285
        %p287 = pneg %p61
        %p288 = pneg %p58
        %p289 = pneg %p82
        %p290 = pneg %p79
        %p291 = pneg %p103
        %p292 = pneg %p100
        %s293 = smul.u32 2, %s19
        %p294 = scmp.lt.s32.totalorder %s293, 3
        %s295 = scalar_select %p294, %s293, 3
        %s296 = smul.addr %s295, 4
        %s297 = scalar_lea.vmem %s4, %s296
        %p298 = pneg %p129
        %p299 = pneg %p126
        %p300 = pneg %p150
        %p301 = pneg %p147
        %s302 = smul.u32 2, %s19
        %p303 = scmp.lt.s32.totalorder %s302, 3
        %s304 = scalar_select %p303, %s302, 3
        %s305 = smul.addr %s304, 8
        %s306 = scalar_lea.vmem %s6, %s305
        %p307 = pneg %p176
        %p308 = pneg %p173
        %p309 = pneg %p202
        %p310 = pneg %p199
        %p311 = scmp.lt.s32.totalorder %s19, 1
        %s312 = scalar_select %p311, %s19, 1
        %s313 = smul.addr %s312, 2
        %s314 = scalar_lea.vmem %s7, %s313
        %s315 = smul.u32 2, %s19
        %p316 = scmp.lt.s32.totalorder %s315, 3
        %s317 = scalar_select %p316, %s315, 3
        %s318 = smul.addr %s317, 8
        %s319 = scalar_lea.vmem %s1, %s318
        %s320 = smul.u32 2, %s19
        %s321 = smul.u32 2, %s19
        %p322 = scmp.lt.s32.totalorder %s321, 3
        %s323 = scalar_select %p322, %s321, 3
        %s324 = smul.addr %s323, 4
        %s325 = scalar_lea.vmem %s4, %s324
        %s326 = smul.u32 2, %s19
        %s327 = smul.u32 2, %s19
        %p328 = scmp.lt.s32.totalorder %s327, 3
        %s329 = scalar_select %p328, %s327, 3
        %s330 = smul.addr %s329, 8
        %s331 = scalar_lea.vmem %s6, %s330
        %s332 = smul.u32 2, %s19
        %p333 = scmp.lt.s32.totalorder %s19, 1
        %s334 = scalar_select %p333, %s19, 1
        %s335 = smul.addr %s334, 2
        %s336 = scalar_lea.vmem %s7, %s335
        %v337 = vld [vmem:[%s325] sm:$0xf]
        %v338 = vld [vmem:[%s325 + $0x4] sm:$0xf]
        %v339 = vunpack.c.l.bf16 %v337
        %v340 = vunpack.c.l.bf16 %v338
        %v341 = vld [vmem:[%s319] sm:$0xff]
        %v342 = vld [vmem:[%s319 + $0x8] sm:$0xff]
        %v343 = vld [vmem:[%s2] sm:$0xff]
        %v344 = vld [vmem:[%s2 + $0x8] sm:$0xff]
        %v345 = vld [vmem:[%s2 + $0x10] sm:$0xff]
        %v346 = vld [vmem:[%s2 + $0x18] sm:$0xff]
        %v347 = vld [vmem:[%s3] sm:$0xff]
        %v348 = vld [vmem:[%s3 + $0x8] sm:$0xff]
        %s349 = sld [smem:[#allocation2]]
        %s350 = smul.f32 %s349, 0.2
        %v351 = vstv %s350
        %v352 = vmul.f32 %v351, %v341
        %v353 = vmul.f32 %v351, %v342
        %v354 = vmul.f32 %v351, %v347
        %356 = vset.pattern.permute.xlu0 0
        %357 = vperm.xlu0 %356, %v341
        %v358 = vpop.permute.xlu0 %357
        %361 = vset.pattern.permute.xlu0 0
        %362 = vperm.xlu0 %361, %v342
        %v363 = vpop.permute.xlu0 %362
        %v365 = vlaneseq
        %v366 = vshrl.u32 %v365, 7
        %v367 = vsub.s32 0, %v366
        %v368 = vrot.slane %v347, %v367
        %v369 = vadd.f32 %v358, %v368
        %v370 = vadd.f32 %v363, %v368
        %v371 = vmax.f32 %v369, 0.0
        %v372 = vmax.f32 %v370, 0.0
        %s373 = smul.f32 %s349, 0.8
        %v374 = vstv %s373
        %v375 = vmul.f32 %v374, %v371
        %v376 = vmul.f32 %v374, %v372
        %s377 = sld [smem:[#allocation2 + $0x1]]
        %s378 = smul.f32 %s377, 0.2
        %v379 = vstv %s378
        %v380 = vmul.f32 %v379, %v341
        %v381 = vmul.f32 %v379, %v342
        %v382 = vmul.f32 %v379, %v347
        %385 = vrot.lane.b32.xlu0 %v380, 127
        %v386 = vpop.permute.xlu0 %385
        %387 = vrot.lane.b32.xlu0 %v381, 127
        %v388 = vpop.permute.xlu0 %387
        %v391 = vadd.f32 %v352, %v386
        %v392 = vadd.f32 %v353, %v388
        %v394 = vrot.slane %v382, 1
        %v396 = vadd.f32 %v354, %v394
        %397 = vset.pattern.permute.xlu0 1
        %398 = vperm.xlu0 %397, %v341
        %v399 = vpop.permute.xlu0 %398
        %401 = vset.pattern.permute.xlu0 1
        %402 = vperm.xlu0 %401, %v342
        %v403 = vpop.permute.xlu0 %402
        %v405 = vlaneseq
        %v406 = vshrl.u32 %v405, 7
        %v407 = vsub.s32 1, %v406
        %v408 = vrot.slane %v347, %v407
        %v409 = vadd.f32 %v399, %v408
        %v410 = vadd.f32 %v403, %v408
        %v411 = vmax.f32 %v409, 0.0
        %v412 = vmax.f32 %v410, 0.0
        %s413 = smul.f32 %s377, 0.8
        %v414 = vstv %s413
        %v415 = vmul.f32 %v414, %v411
        %v416 = vmul.f32 %v414, %v412
        %v417 = vadd.f32 %v375, %v415
        %v418 = vadd.f32 %v376, %v416
        %s419 = sld [smem:[#allocation2 + $0x2]]
        %s420 = smul.f32 %s419, 0.2
        %v421 = vstv %s420
        %v422 = vmul.f32 %v421, %v341
        %v423 = vmul.f32 %v421, %v342
        %v424 = vmul.f32 %v421, %v347
        %427 = vrot.lane.b32.xlu0 %v422, 126
        %v428 = vpop.permute.xlu0 %427
        %429 = vrot.lane.b32.xlu0 %v423, 126
        %v430 = vpop.permute.xlu0 %429
        %v433 = vadd.f32 %v391, %v428
        %v434 = vadd.f32 %v392, %v430
        %v436 = vrot.slane %v424, 2
        %v438 = vadd.f32 %v396, %v436
        %439 = vset.pattern.permute.xlu0 2
        %440 = vperm.xlu0 %439, %v341
        %v441 = vpop.permute.xlu0 %440
        %443 = vset.pattern.permute.xlu0 2
        %444 = vperm.xlu0 %443, %v342
        %v445 = vpop.permute.xlu0 %444
        %v447 = vlaneseq
        %v448 = vshrl.u32 %v447, 7
        %v449 = vsub.s32 2, %v448
        %v450 = vrot.slane %v347, %v449
        %v451 = vadd.f32 %v441, %v450
        %v452 = vadd.f32 %v445, %v450
        %v453 = vmax.f32 %v451, 0.0
        %v454 = vmax.f32 %v452, 0.0
        %s455 = smul.f32 %s419, 0.8
        %v456 = vstv %s455
        %v457 = vmul.f32 %v456, %v453
        %v458 = vmul.f32 %v456, %v454
        %v459 = vadd.f32 %v417, %v457
        %v460 = vadd.f32 %v418, %v458
        %s461 = sld [smem:[#allocation2 + $0x3]]
        %s462 = smul.f32 %s461, 0.2
        %v463 = vstv %s462
        %v464 = vmul.f32 %v463, %v341
        %v465 = vmul.f32 %v463, %v342
        %v466 = vmul.f32 %v463, %v347
        %469 = vrot.lane.b32.xlu0 %v464, 125
        %v470 = vpop.permute.xlu0 %469
        %471 = vrot.lane.b32.xlu0 %v465, 125
        %v472 = vpop.permute.xlu0 %471
        %v475 = vadd.f32 %v433, %v470
        %v476 = vadd.f32 %v434, %v472
        %v478 = vrot.slane %v466, 3
        %v480 = vadd.f32 %v438, %v478
        %481 = vset.pattern.permute.xlu0 3
        %482 = vperm.xlu0 %481, %v341
        %v483 = vpop.permute.xlu0 %482
        %485 = vset.pattern.permute.xlu0 3
        %486 = vperm.xlu0 %485, %v342
        %v487 = vpop.permute.xlu0 %486
        %v489 = vlaneseq
        %v490 = vshrl.u32 %v489, 7
        %v491 = vsub.s32 3, %v490
        %v492 = vrot.slane %v347, %v491
        %v493 = vadd.f32 %v483, %v492
        %v494 = vadd.f32 %v487, %v492
        %v495 = vmax.f32 %v493, 0.0
        %v496 = vmax.f32 %v494, 0.0
        %s497 = smul.f32 %s461, 0.8
        %v498 = vstv %s497
        %v499 = vmul.f32 %v498, %v495
        %v500 = vmul.f32 %v498, %v496
        %v501 = vadd.f32 %v459, %v499
        %v502 = vadd.f32 %v460, %v500
        %s503 = sld [smem:[#allocation2 + $0x4]]
        %s504 = smul.f32 %s503, 0.2
        %v505 = vstv %s504
        %v506 = vmul.f32 %v505, %v341
        %v507 = vmul.f32 %v505, %v342
        %v508 = vmul.f32 %v505, %v347
        %511 = vrot.lane.b32.xlu0 %v506, 124
        %v512 = vpop.permute.xlu0 %511
        %513 = vrot.lane.b32.xlu0 %v507, 124
        %v514 = vpop.permute.xlu0 %513
        %v517 = vadd.f32 %v475, %v512
        %v518 = vadd.f32 %v476, %v514
        %v520 = vrot.slane %v508, 4
        %v522 = vadd.f32 %v480, %v520
        %523 = vset.pattern.permute.xlu0 4
        %524 = vperm.xlu0 %523, %v341
        %v525 = vpop.permute.xlu0 %524
        %527 = vset.pattern.permute.xlu0 4
        %528 = vperm.xlu0 %527, %v342
        %v529 = vpop.permute.xlu0 %528
        %v531 = vlaneseq
        %v532 = vshrl.u32 %v531, 7
        %v533 = vsub.s32 4, %v532
        %v534 = vrot.slane %v347, %v533
        %v535 = vadd.f32 %v525, %v534
        %v536 = vadd.f32 %v529, %v534
        %v537 = vmax.f32 %v535, 0.0
        %v538 = vmax.f32 %v536, 0.0
        %s539 = smul.f32 %s503, 0.8
        %v540 = vstv %s539
        %v541 = vmul.f32 %v540, %v537
        %v542 = vmul.f32 %v540, %v538
        %v543 = vadd.f32 %v501, %v541
        %v544 = vadd.f32 %v502, %v542
        %s545 = sld [smem:[#allocation2 + $0x5]]
        %s546 = smul.f32 %s545, 0.2
        %v547 = vstv %s546
        %v548 = vmul.f32 %v547, %v341
        %v549 = vmul.f32 %v547, %v342
        %v550 = vmul.f32 %v547, %v347
        %553 = vrot.lane.b32.xlu0 %v548, 123
        %v554 = vpop.permute.xlu0 %553
        %555 = vrot.lane.b32.xlu0 %v549, 123
        %v556 = vpop.permute.xlu0 %555
        %v559 = vadd.f32 %v517, %v554
        %v560 = vadd.f32 %v518, %v556
        %v562 = vrot.slane %v550, 5
        %v564 = vadd.f32 %v522, %v562
        %565 = vset.pattern.permute.xlu0 5
        %566 = vperm.xlu0 %565, %v341
        %v567 = vpop.permute.xlu0 %566
        %569 = vset.pattern.permute.xlu0 5
        %570 = vperm.xlu0 %569, %v342
        %v571 = vpop.permute.xlu0 %570
        %v573 = vlaneseq
        %v574 = vshrl.u32 %v573, 7
        %v575 = vsub.s32 5, %v574
        %v576 = vrot.slane %v347, %v575
        %v577 = vadd.f32 %v567, %v576
        %v578 = vadd.f32 %v571, %v576
        %v579 = vmax.f32 %v577, 0.0
        %v580 = vmax.f32 %v578, 0.0
        %s581 = smul.f32 %s545, 0.8
        %v582 = vstv %s581
        %v583 = vmul.f32 %v582, %v579
        %v584 = vmul.f32 %v582, %v580
        %v585 = vadd.f32 %v543, %v583
        %v586 = vadd.f32 %v544, %v584
        %s587 = sld [smem:[#allocation2 + $0x6]]
        %s588 = smul.f32 %s587, 0.2
        %v589 = vstv %s588
        %v590 = vmul.f32 %v589, %v341
        %v591 = vmul.f32 %v589, %v342
        %v592 = vmul.f32 %v589, %v347
        %595 = vrot.lane.b32.xlu0 %v590, 122
        %v596 = vpop.permute.xlu0 %595
        %597 = vrot.lane.b32.xlu0 %v591, 122
        %v598 = vpop.permute.xlu0 %597
        %v601 = vadd.f32 %v559, %v596
        %v602 = vadd.f32 %v560, %v598
        %v604 = vrot.slane %v592, 6
        %v606 = vadd.f32 %v564, %v604
        %607 = vset.pattern.permute.xlu0 6
        %608 = vperm.xlu0 %607, %v341
        %v609 = vpop.permute.xlu0 %608
        %611 = vset.pattern.permute.xlu0 6
        %612 = vperm.xlu0 %611, %v342
        %v613 = vpop.permute.xlu0 %612
        %v615 = vlaneseq
        %v616 = vshrl.u32 %v615, 7
        %v617 = vsub.s32 6, %v616
        %v618 = vrot.slane %v347, %v617
        %v619 = vadd.f32 %v609, %v618
        %v620 = vadd.f32 %v613, %v618
        %v621 = vmax.f32 %v619, 0.0
        %v622 = vmax.f32 %v620, 0.0
        %s623 = smul.f32 %s587, 0.8
        %v624 = vstv %s623
        %v625 = vmul.f32 %v624, %v621
        %v626 = vmul.f32 %v624, %v622
        %v627 = vadd.f32 %v585, %v625
        %v628 = vadd.f32 %v586, %v626
        %s629 = sld [smem:[#allocation2 + $0x7]]
        %s630 = smul.f32 %s629, 0.2
        %v631 = vstv %s630
        %v632 = vmul.f32 %v631, %v341
        %v633 = vmul.f32 %v631, %v342
        %v634 = vmul.f32 %v631, %v347
        %637 = vrot.lane.b32.xlu0 %v632, 121
        %v638 = vpop.permute.xlu0 %637
        %639 = vrot.lane.b32.xlu0 %v633, 121
        %v640 = vpop.permute.xlu0 %639
        %v643 = vadd.f32 %v601, %v638
        %v644 = vadd.f32 %v602, %v640
        %v646 = vrot.slane %v634, 7
        %v648 = vadd.f32 %v606, %v646
        %649 = vset.pattern.permute.xlu0 7
        %650 = vperm.xlu0 %649, %v341
        %v651 = vpop.permute.xlu0 %650
        %653 = vset.pattern.permute.xlu0 7
        %654 = vperm.xlu0 %653, %v342
        %v655 = vpop.permute.xlu0 %654
        %v657 = vlaneseq
        %v658 = vshrl.u32 %v657, 7
        %v659 = vsub.s32 7, %v658
        %v660 = vrot.slane %v347, %v659
        %v661 = vadd.f32 %v651, %v660
        %v662 = vadd.f32 %v655, %v660
        %v663 = vmax.f32 %v661, 0.0
        %v664 = vmax.f32 %v662, 0.0
        %s665 = smul.f32 %s629, 0.8
        %v666 = vstv %s665
        %v667 = vmul.f32 %v666, %v663
        %v668 = vmul.f32 %v666, %v664
        %v669 = vadd.f32 %v627, %v667
        %v670 = vadd.f32 %v628, %v668
        %672 = vset.pattern.permute.xlu0 0
        %673 = vperm.xlu0 %672, %v643
        %v674 = vpop.permute.xlu0 %673
        %677 = vset.pattern.permute.xlu0 0
        %678 = vperm.xlu0 %677, %v644
        %v679 = vpop.permute.xlu0 %678
        %v681 = vlaneseq
        %v682 = vshrl.u32 %v681, 7
        %v683 = vsub.s32 0, %v682
        %v684 = vrot.slane %v648, %v683
        %v685 = vadd.f32 %v674, %v684
        %v686 = vadd.f32 %v679, %v684
        %v687 = vadd.f32 %v685, %v339
        %v688 = vadd.f32 %v686, %v340
        %v689 = vadd.f32 %v687, %v669
        %v690 = vadd.f32 %v688, %v670
        %vm691 = vcmask 261120
        %v692 = vsel %vm691, %v689, -inf
        %693 = vmax.xlane.f32.xlu0 %v692
        %v694 = vpop.xlane.xlu0 %693
        %v695 = vsel %vm691, %v690, -inf
        %696 = vmax.xlane.f32.xlu0 %v695
        %v697 = vpop.xlane.xlu0 %696
        %v698 = vsub.f32 %v689, %v694
        %v699 = vsub.f32 %v690, %v697
        %v700 = vmul.f32 %v698, 1.442695
        %v701 = vpow.pop %v700
        %v702 = vmul.f32 %v699, 1.442695
        %v703 = vpow.pop %v702
        %v704 = vsel %vm691, %v701, 0.0
        %705 = vadd.xlane.f32.xlu0 %v704
        %v706 = vpop.xlane.xlu0 %705
        %v707 = vsel %vm691, %v703, 0.0
        %708 = vadd.xlane.f32.xlu0 %v707
        %v709 = vpop.xlane.xlu0 %708
        %v710 = vmax.f32 %v706, 1e-20
        %v711 = vmax.f32 %v709, 1e-20
        %v713 = vsel %vm691, %v701, 0
        %v716 = vsel %vm691, %v703, 0
        %718 = vmatprep.subr.mxu0 0.0
        %719 = vmatpush1.msra.mxu0 %v343
        %720 = vmatprep.subr.mxu0 0.0
        %721 = vmatpush1.msra.mxu0 %v344
        %722 = vmatprep.subr.mxu0 0.0
        %723 = vmatpush1.msra.mxu0 %v345
        %724 = vmatprep.subr.mxu0 0.0
        %725 = vmatpush1.msra.mxu0 %v346
        %726 = vmatprep.subr.mxu0 0.0
        %727 = vmatpush1.msra.mxu0 0.0
        %728 = vmatprep.subr.mxu0 0.0
        %729 = vmatpush1.msra.mxu0 0.0
        %730 = vmatprep.subr.mxu0 0.0
        %731 = vmatpush1.msra.mxu0 0.0
        %732 = vmatprep.subr.mxu0 0.0
        %733 = vmatpush1.msra.mxu0 0.0
        %734 = vmatprep.subr.mxu0 0.0
        %735 = vmatpush1.msra.mxu0 0.0
        %736 = vmatprep.subr.mxu0 0.0
        %737 = vmatpush1.msra.mxu0 0.0
        %738 = vmatprep.subr.mxu0 0.0
        %739 = vmatpush1.msra.mxu0 0.0
        %740 = vmatprep.subr.mxu0 0.0
        %741 = vmatpush1.msra.mxu0 0.0
        %742 = vmatprep.subr.mxu0 0.0
        %743 = vmatpush1.msra.mxu0 0.0
        %744 = vmatprep.subr.mxu0 0.0
        %745 = vmatpush1.msra.mxu0 0.0
        %746 = vmatprep.subr.mxu0 0.0
        %747 = vmatpush1.msra.mxu0 0.0
        %748 = vmatprep.subr.mxu0 0.0
        %749 = vmatpush1.msra.mxu0 0.0
        %750 = vmatprep.subr.mxu0 0.0
        %751 = vmatpush1.msra.mxu0 0.0
        %752 = vmatprep.subr.mxu0 0.0
        %753 = vmatpush1.msra.mxu0 0.0
        %754 = vmatprep.subr.mxu0 0.0
        %755 = vmatpush1.msra.mxu0 0.0
        %756 = vmatprep.subr.mxu0 0.0
        %757 = vmatpush1.msra.mxu0 0.0
        %758 = vmatprep.subr.mxu0 0.0
        %759 = vmatpush1.msra.mxu0 0.0
        %760 = vmatprep.subr.mxu0 0.0
        %761 = vmatpush1.msra.mxu0 0.0
        %762 = vmatprep.subr.mxu0 0.0
        %763 = vmatpush1.msra.mxu0 0.0
        %764 = vmatprep.subr.mxu0 0.0
        %765 = vmatpush1.msra.mxu0 0.0
        %766 = vmatprep.subr.mxu0 0.0
        %767 = vmatpush1.msra.mxu0 0.0
        %768 = vmatprep.subr.mxu0 0.0
        %769 = vmatpush1.msra.mxu0 0.0
        %770 = vmatprep.subr.mxu0 0.0
        %771 = vmatpush1.msra.mxu0 0.0
        %772 = vmatprep.subr.mxu0 0.0
        %773 = vmatpush1.msra.mxu0 0.0
        %774 = vmatprep.subr.mxu0 0.0
        %775 = vmatpush1.msra.mxu0 0.0
        %776 = vmatprep.subr.mxu0 0.0
        %777 = vmatpush1.msra.mxu0 0.0
        %778 = vmatprep.subr.mxu0 0.0
        %779 = vmatpush1.msra.mxu0 0.0
        %780 = vmatprep.subr.mxu0 0.0
        %781 = vmatpush1.msra.mxu0 0.0
        %782 = vmatprep.mubr.f32.mxu0 0.0
        %783 = vmatmul.mubr.f32.gmra.mrb[0].mxu0 %v713
        %v784 = vpop.f32.mrb[0].mxu0
        %v785 = vadd.f32 0.0, %v784
        %v786 = vpop.f32.mrb[0].mxu0
        %787 = vmatprep.mubr.f32.mxu0 0.0
        %788 = vmatmul.mubr.f32.gmra.mrb[0].mxu0 %v716
        %v789 = vpop.f32.mrb[0].mxu0
        %v790 = vadd.f32 0.0, %v789
        %v791 = vpop.f32.mrb[0].mxu0
        %792 = vdwg.mxu0
        %v793 = vrcp.pop %v710
        %v794 = vmul.f32 1.0, %v793
        %v795 = vrcp.pop %v711
        %v796 = vmul.f32 1.0, %v795
        %v797 = vmul.f32 %v785, %v794
        %v798 = vmul.f32 %v790, %v796
        %s799 = sld [smem:[#allocation2 + $0x80]]
        %s800 = smul.f32 %s799, 0.2
        %v801 = vstv %s800
        %v802 = vmul.f32 %v801, %v341
        %v803 = vmul.f32 %v801, %v342
        %v804 = vmul.f32 %v801, %v348
        %805 = vset.pattern.permute.xlu0 8
        %806 = vperm.xlu0 %805, %v341
        %v807 = vpop.permute.xlu0 %806
        %809 = vset.pattern.permute.xlu0 8
        %810 = vperm.xlu0 %809, %v342
        %v811 = vpop.permute.xlu0 %810
        %v813 = vlaneseq
        %v814 = vshrl.u32 %v813, 7
        %v815 = vsub.s32 0, %v814
        %v816 = vrot.slane %v348, %v815
        %v817 = vadd.f32 %v807, %v816
        %v818 = vadd.f32 %v811, %v816
        %v819 = vmax.f32 %v817, 0.0
        %v820 = vmax.f32 %v818, 0.0
        %s821 = smul.f32 %s799, 0.8
        %v822 = vstv %s821
        %v823 = vmul.f32 %v822, %v819
        %v824 = vmul.f32 %v822, %v820
        %s825 = sld [smem:[#allocation2 + $0x81]]
        %s826 = smul.f32 %s825, 0.2
        %v827 = vstv %s826
        %v828 = vmul.f32 %v827, %v341
        %v829 = vmul.f32 %v827, %v342
        %v830 = vmul.f32 %v827, %v348
        %833 = vrot.lane.b32.xlu0 %v828, 127
        %v834 = vpop.permute.xlu0 %833
        %835 = vrot.lane.b32.xlu0 %v829, 127
        %v836 = vpop.permute.xlu0 %835
        %v839 = vadd.f32 %v802, %v834
        %v840 = vadd.f32 %v803, %v836
        %v842 = vrot.slane %v830, 1
        %v844 = vadd.f32 %v804, %v842
        %845 = vset.pattern.permute.xlu0 9
        %846 = vperm.xlu0 %845, %v341
        %v847 = vpop.permute.xlu0 %846
        %849 = vset.pattern.permute.xlu0 9
        %850 = vperm.xlu0 %849, %v342
        %v851 = vpop.permute.xlu0 %850
        %v853 = vlaneseq
        %v854 = vshrl.u32 %v853, 7
        %v855 = vsub.s32 1, %v854
        %v856 = vrot.slane %v348, %v855
        %v857 = vadd.f32 %v847, %v856
        %v858 = vadd.f32 %v851, %v856
        %v859 = vmax.f32 %v857, 0.0
        %v860 = vmax.f32 %v858, 0.0
        %s861 = smul.f32 %s825, 0.8
        %v862 = vstv %s861
        %v863 = vmul.f32 %v862, %v859
        %v864 = vmul.f32 %v862, %v860
        %v865 = vadd.f32 %v823, %v863
        %v866 = vadd.f32 %v824, %v864
        %s867 = sld [smem:[#allocation2 + $0x82]]
        %s868 = smul.f32 %s867, 0.2
        %v869 = vstv %s868
        %v870 = vmul.f32 %v869, %v341
        %v871 = vmul.f32 %v869, %v342
        %v872 = vmul.f32 %v869, %v348
        %875 = vrot.lane.b32.xlu0 %v870, 126
        %v876 = vpop.permute.xlu0 %875
        %877 = vrot.lane.b32.xlu0 %v871, 126
        %v878 = vpop.permute.xlu0 %877
        %v881 = vadd.f32 %v839, %v876
        %v882 = vadd.f32 %v840, %v878
        %v884 = vrot.slane %v872, 2
        %v886 = vadd.f32 %v844, %v884
        %887 = vset.pattern.permute.xlu0 10
        %888 = vperm.xlu0 %887, %v341
        %v889 = vpop.permute.xlu0 %888
        %891 = vset.pattern.permute.xlu0 10
        %892 = vperm.xlu0 %891, %v342
        %v893 = vpop.permute.xlu0 %892
        %v895 = vlaneseq
        %v896 = vshrl.u32 %v895, 7
        %v897 = vsub.s32 2, %v896
        %v898 = vrot.slane %v348, %v897
        %v899 = vadd.f32 %v889, %v898
        %v900 = vadd.f32 %v893, %v898
        %v901 = vmax.f32 %v899, 0.0
        %v902 = vmax.f32 %v900, 0.0
        %s903 = smul.f32 %s867, 0.8
        %v904 = vstv %s903
        %v905 = vmul.f32 %v904, %v901
        %v906 = vmul.f32 %v904, %v902
        %v907 = vadd.f32 %v865, %v905
        %v908 = vadd.f32 %v866, %v906
        %s909 = sld [smem:[#allocation2 + $0x83]]
        %s910 = smul.f32 %s909, 0.2
        %v911 = vstv %s910
        %v912 = vmul.f32 %v911, %v341
        %v913 = vmul.f32 %v911, %v342
        %v914 = vmul.f32 %v911, %v348
        %917 = vrot.lane.b32.xlu0 %v912, 125
        %v918 = vpop.permute.xlu0 %917
        %919 = vrot.lane.b32.xlu0 %v913, 125
        %v920 = vpop.permute.xlu0 %919
        %v923 = vadd.f32 %v881, %v918
        %v924 = vadd.f32 %v882, %v920
        %v926 = vrot.slane %v914, 3
        %v928 = vadd.f32 %v886, %v926
        %929 = vset.pattern.permute.xlu0 11
        %930 = vperm.xlu0 %929, %v341
        %v931 = vpop.permute.xlu0 %930
        %933 = vset.pattern.permute.xlu0 11
        %934 = vperm.xlu0 %933, %v342
        %v935 = vpop.permute.xlu0 %934
        %v937 = vlaneseq
        %v938 = vshrl.u32 %v937, 7
        %v939 = vsub.s32 3, %v938
        %v940 = vrot.slane %v348, %v939
        %v941 = vadd.f32 %v931, %v940
        %v942 = vadd.f32 %v935, %v940
        %v943 = vmax.f32 %v941, 0.0
        %v944 = vmax.f32 %v942, 0.0
        %s945 = smul.f32 %s909, 0.8
        %v946 = vstv %s945
        %v947 = vmul.f32 %v946, %v943
        %v948 = vmul.f32 %v946, %v944
        %v949 = vadd.f32 %v907, %v947
        %v950 = vadd.f32 %v908, %v948
        %s951 = sld [smem:[#allocation2 + $0x84]]
        %s952 = smul.f32 %s951, 0.2
        %v953 = vstv %s952
        %v954 = vmul.f32 %v953, %v341
        %v955 = vmul.f32 %v953, %v342
        %v956 = vmul.f32 %v953, %v348
        %959 = vrot.lane.b32.xlu0 %v954, 124
        %v960 = vpop.permute.xlu0 %959
        %961 = vrot.lane.b32.xlu0 %v955, 124
        %v962 = vpop.permute.xlu0 %961
        %v965 = vadd.f32 %v923, %v960
        %v966 = vadd.f32 %v924, %v962
        %v968 = vrot.slane %v956, 4
        %v970 = vadd.f32 %v928, %v968
        %971 = vset.pattern.permute.xlu0 12
        %972 = vperm.xlu0 %971, %v341
        %v973 = vpop.permute.xlu0 %972
        %975 = vset.pattern.permute.xlu0 12
        %976 = vperm.xlu0 %975, %v342
        %v977 = vpop.permute.xlu0 %976
        %v979 = vlaneseq
        %v980 = vshrl.u32 %v979, 7
        %v981 = vsub.s32 4, %v980
        %v982 = vrot.slane %v348, %v981
        %v983 = vadd.f32 %v973, %v982
        %v984 = vadd.f32 %v977, %v982
        %v985 = vmax.f32 %v983, 0.0
        %v986 = vmax.f32 %v984, 0.0
        %s987 = smul.f32 %s951, 0.8
        %v988 = vstv %s987
        %v989 = vmul.f32 %v988, %v985
        %v990 = vmul.f32 %v988, %v986
        %v991 = vadd.f32 %v949, %v989
        %v992 = vadd.f32 %v950, %v990
        %s993 = sld [smem:[#allocation2 + $0x85]]
        %s994 = smul.f32 %s993, 0.2
        %v995 = vstv %s994
        %v996 = vmul.f32 %v995, %v341
        %v997 = vmul.f32 %v995, %v342
        %v998 = vmul.f32 %v995, %v348
        %1001 = vrot.lane.b32.xlu0 %v996, 123
        %v1002 = vpop.permute.xlu0 %1001
        %1003 = vrot.lane.b32.xlu0 %v997, 123
        %v1004 = vpop.permute.xlu0 %1003
        %v1007 = vadd.f32 %v965, %v1002
        %v1008 = vadd.f32 %v966, %v1004
        %v1010 = vrot.slane %v998, 5
        %v1012 = vadd.f32 %v970, %v1010
        %1013 = vset.pattern.permute.xlu0 13
        %1014 = vperm.xlu0 %1013, %v341
        %v1015 = vpop.permute.xlu0 %1014
        %1017 = vset.pattern.permute.xlu0 13
        %1018 = vperm.xlu0 %1017, %v342
        %v1019 = vpop.permute.xlu0 %1018
        %v1021 = vlaneseq
        %v1022 = vshrl.u32 %v1021, 7
        %v1023 = vsub.s32 5, %v1022
        %v1024 = vrot.slane %v348, %v1023
        %v1025 = vadd.f32 %v1015, %v1024
        %v1026 = vadd.f32 %v1019, %v1024
        %v1027 = vmax.f32 %v1025, 0.0
        %v1028 = vmax.f32 %v1026, 0.0
        %s1029 = smul.f32 %s993, 0.8
        %v1030 = vstv %s1029
        %v1031 = vmul.f32 %v1030, %v1027
        %v1032 = vmul.f32 %v1030, %v1028
        %v1033 = vadd.f32 %v991, %v1031
        %v1034 = vadd.f32 %v992, %v1032
        %s1035 = sld [smem:[#allocation2 + $0x86]]
        %s1036 = smul.f32 %s1035, 0.2
        %v1037 = vstv %s1036
        %v1038 = vmul.f32 %v1037, %v341
        %v1039 = vmul.f32 %v1037, %v342
        %v1040 = vmul.f32 %v1037, %v348
        %1043 = vrot.lane.b32.xlu0 %v1038, 122
        %v1044 = vpop.permute.xlu0 %1043
        %1045 = vrot.lane.b32.xlu0 %v1039, 122
        %v1046 = vpop.permute.xlu0 %1045
        %v1049 = vadd.f32 %v1007, %v1044
        %v1050 = vadd.f32 %v1008, %v1046
        %v1052 = vrot.slane %v1040, 6
        %v1054 = vadd.f32 %v1012, %v1052
        %1055 = vset.pattern.permute.xlu0 14
        %1056 = vperm.xlu0 %1055, %v341
        %v1057 = vpop.permute.xlu0 %1056
        %1059 = vset.pattern.permute.xlu0 14
        %1060 = vperm.xlu0 %1059, %v342
        %v1061 = vpop.permute.xlu0 %1060
        %v1063 = vlaneseq
        %v1064 = vshrl.u32 %v1063, 7
        %v1065 = vsub.s32 6, %v1064
        %v1066 = vrot.slane %v348, %v1065
        %v1067 = vadd.f32 %v1057, %v1066
        %v1068 = vadd.f32 %v1061, %v1066
        %v1069 = vmax.f32 %v1067, 0.0
        %v1070 = vmax.f32 %v1068, 0.0
        %s1071 = smul.f32 %s1035, 0.8
        %v1072 = vstv %s1071
        %v1073 = vmul.f32 %v1072, %v1069
        %v1074 = vmul.f32 %v1072, %v1070
        %v1075 = vadd.f32 %v1033, %v1073
        %v1076 = vadd.f32 %v1034, %v1074
        %s1077 = sld [smem:[#allocation2 + $0x87]]
        %s1078 = smul.f32 %s1077, 0.2
        %v1079 = vstv %s1078
        %v1080 = vmul.f32 %v1079, %v341
        %v1081 = vmul.f32 %v1079, %v342
        %v1082 = vmul.f32 %v1079, %v348
        %1085 = vrot.lane.b32.xlu0 %v1080, 121
        %v1086 = vpop.permute.xlu0 %1085
        %1087 = vrot.lane.b32.xlu0 %v1081, 121
        %v1088 = vpop.permute.xlu0 %1087
        %v1091 = vadd.f32 %v1049, %v1086
        %v1092 = vadd.f32 %v1050, %v1088
        %v1094 = vrot.slane %v1082, 7
        %v1096 = vadd.f32 %v1054, %v1094
        %1097 = vset.pattern.permute.xlu0 15
        %1098 = vperm.xlu0 %1097, %v341
        %v1099 = vpop.permute.xlu0 %1098
        %1101 = vset.pattern.permute.xlu0 15
        %1102 = vperm.xlu0 %1101, %v342
        %v1103 = vpop.permute.xlu0 %1102
        %v1105 = vlaneseq
        %v1106 = vshrl.u32 %v1105, 7
        %v1107 = vsub.s32 7, %v1106
        %v1108 = vrot.slane %v348, %v1107
        %v1109 = vadd.f32 %v1099, %v1108
        %v1110 = vadd.f32 %v1103, %v1108
        %v1111 = vmax.f32 %v1109, 0.0
        %v1112 = vmax.f32 %v1110, 0.0
        %s1113 = smul.f32 %s1077, 0.8
        %v1114 = vstv %s1113
        %v1115 = vmul.f32 %v1114, %v1111
        %v1116 = vmul.f32 %v1114, %v1112
        %v1117 = vadd.f32 %v1075, %v1115
        %v1118 = vadd.f32 %v1076, %v1116
        %1120 = vset.pattern.permute.xlu0 8
        %1121 = vperm.xlu0 %1120, %v1091
        %v1122 = vpop.permute.xlu0 %1121
        %1125 = vset.pattern.permute.xlu0 8
        %1126 = vperm.xlu0 %1125, %v1092
        %v1127 = vpop.permute.xlu0 %1126
        %v1129 = vlaneseq
        %v1130 = vshrl.u32 %v1129, 7
        %v1131 = vsub.s32 0, %v1130
        %v1132 = vrot.slane %v1096, %v1131
        %v1133 = vadd.f32 %v1122, %v1132
        %v1134 = vadd.f32 %v1127, %v1132
        %v1135 = vadd.f32 %v1133, %v339
        %v1136 = vadd.f32 %v1134, %v340
        %v1137 = vadd.f32 %v1135, %v1117
        %v1138 = vadd.f32 %v1136, %v1118
        %v1139 = vsel %vm691, %v1137, -inf
        %1140 = vmax.xlane.f32.xlu0 %v1139
        %v1141 = vpop.xlane.xlu0 %1140
        %v1142 = vsel %vm691, %v1138, -inf
        %1143 = vmax.xlane.f32.xlu0 %v1142
        %v1144 = vpop.xlane.xlu0 %1143
        %v1145 = vsub.f32 %v1137, %v1141
        %v1146 = vsub.f32 %v1138, %v1144
        %v1147 = vmul.f32 %v1145, 1.442695
        %v1148 = vpow.pop %v1147
        %v1149 = vmul.f32 %v1146, 1.442695
        %v1150 = vpow.pop %v1149
        %v1151 = vsel %vm691, %v1148, 0.0
        %1152 = vadd.xlane.f32.xlu0 %v1151
        %v1153 = vpop.xlane.xlu0 %1152
        %v1154 = vsel %vm691, %v1150, 0.0
        %1155 = vadd.xlane.f32.xlu0 %v1154
        %v1156 = vpop.xlane.xlu0 %1155
        %v1157 = vmax.f32 %v1153, 1e-20
        %v1158 = vmax.f32 %v1156, 1e-20
        %1163 = vrot.lane.b32.xlu0 %v343, 120
        %v1164 = vpop.permute.xlu0 %1163
        %1165 = vrot.lane.b32.xlu0 %v344, 120
        %v1166 = vpop.permute.xlu0 %1165
        %1167 = vrot.lane.b32.xlu0 %v345, 120
        %v1168 = vpop.permute.xlu0 %1167
        %1169 = vrot.lane.b32.xlu0 %v346, 120
        %v1170 = vpop.permute.xlu0 %1169
        %v1176 = vsel %vm691, %v1148, 0
        %v1179 = vsel %vm691, %v1150, 0
        %1181 = vmatprep.subr.mxu0 0.0
        %1182 = vmatpush1.msra.mxu0 %v1164
        %1183 = vmatprep.subr.mxu0 0.0
        %1184 = vmatpush1.msra.mxu0 %v1166
        %1185 = vmatprep.subr.mxu0 0.0
        %1186 = vmatpush1.msra.mxu0 %v1168
        %1187 = vmatprep.subr.mxu0 0.0
        %1188 = vmatpush1.msra.mxu0 %v1170
        %1189 = vmatprep.subr.mxu0 0.0
        %1190 = vmatpush1.msra.mxu0 0.0
        %1191 = vmatprep.subr.mxu0 0.0
        %1192 = vmatpush1.msra.mxu0 0.0
        %1193 = vmatprep.subr.mxu0 0.0
        %1194 = vmatpush1.msra.mxu0 0.0
        %1195 = vmatprep.subr.mxu0 0.0
        %1196 = vmatpush1.msra.mxu0 0.0
        %1197 = vmatprep.subr.mxu0 0.0
        %1198 = vmatpush1.msra.mxu0 0.0
        %1199 = vmatprep.subr.mxu0 0.0
        %1200 = vmatpush1.msra.mxu0 0.0
        %1201 = vmatprep.subr.mxu0 0.0
        %1202 = vmatpush1.msra.mxu0 0.0
        %1203 = vmatprep.subr.mxu0 0.0
        %1204 = vmatpush1.msra.mxu0 0.0
        %1205 = vmatprep.subr.mxu0 0.0
        %1206 = vmatpush1.msra.mxu0 0.0
        %1207 = vmatprep.subr.mxu0 0.0
        %1208 = vmatpush1.msra.mxu0 0.0
        %1209 = vmatprep.subr.mxu0 0.0
        %1210 = vmatpush1.msra.mxu0 0.0
        %1211 = vmatprep.subr.mxu0 0.0
        %1212 = vmatpush1.msra.mxu0 0.0
        %1213 = vmatprep.subr.mxu0 0.0
        %1214 = vmatpush1.msra.mxu0 0.0
        %1215 = vmatprep.subr.mxu0 0.0
        %1216 = vmatpush1.msra.mxu0 0.0
        %1217 = vmatprep.subr.mxu0 0.0
        %1218 = vmatpush1.msra.mxu0 0.0
        %1219 = vmatprep.subr.mxu0 0.0
        %1220 = vmatpush1.msra.mxu0 0.0
        %1221 = vmatprep.subr.mxu0 0.0
        %1222 = vmatpush1.msra.mxu0 0.0
        %1223 = vmatprep.subr.mxu0 0.0
        %1224 = vmatpush1.msra.mxu0 0.0
        %1225 = vmatprep.subr.mxu0 0.0
        %1226 = vmatpush1.msra.mxu0 0.0
        %1227 = vmatprep.subr.mxu0 0.0
        %1228 = vmatpush1.msra.mxu0 0.0
        %1229 = vmatprep.subr.mxu0 0.0
        %1230 = vmatpush1.msra.mxu0 0.0
        %1231 = vmatprep.subr.mxu0 0.0
        %1232 = vmatpush1.msra.mxu0 0.0
        %1233 = vmatprep.subr.mxu0 0.0
        %1234 = vmatpush1.msra.mxu0 0.0
        %1235 = vmatprep.subr.mxu0 0.0
        %1236 = vmatpush1.msra.mxu0 0.0
        %1237 = vmatprep.subr.mxu0 0.0
        %1238 = vmatpush1.msra.mxu0 0.0
        %1239 = vmatprep.subr.mxu0 0.0
        %1240 = vmatpush1.msra.mxu0 0.0
        %1241 = vmatprep.subr.mxu0 0.0
        %1242 = vmatpush1.msra.mxu0 0.0
        %1243 = vmatprep.subr.mxu0 0.0
        %1244 = vmatpush1.msra.mxu0 0.0
        %1245 = vmatprep.mubr.f32.mxu0 0.0
        %1246 = vmatmul.mubr.f32.gmra.mrb[0].mxu0 %v1176
        %v1247 = vpop.f32.mrb[0].mxu0
        %v1248 = vadd.f32 0.0, %v1247
        %v1249 = vpop.f32.mrb[0].mxu0
        %1250 = vmatprep.mubr.f32.mxu0 0.0
        %1251 = vmatmul.mubr.f32.gmra.mrb[0].mxu0 %v1179
        %v1252 = vpop.f32.mrb[0].mxu0
        %v1253 = vadd.f32 0.0, %v1252
        %v1254 = vpop.f32.mrb[0].mxu0
        %1255 = vdwg.mxu0
        %v1256 = vrcp.pop %v1157
        %v1257 = vmul.f32 1.0, %v1256
        %v1258 = vrcp.pop %v1158
        %v1259 = vmul.f32 1.0, %v1258
        %v1260 = vmul.f32 %v1248, %v1257
        %v1261 = vmul.f32 %v1253, %v1259
        %v1262 = vadd.f32 %v797, %v1260
        %v1263 = vadd.f32 %v798, %v1261
        %v1264 = vmul.f32 %v1262, 0.5
        %v1265 = vmul.f32 %v1263, 0.5
        %v1266 = vld [vmem:[%s5] sm:$0x1]
        %v1268 = vlaneseq
        %v1269 = vshrl.u32 %v1268, 7
        %v1270 = vsub.s32 0, %v1269
        %v1271 = vrot.slane %v1266, %v1270
        %v1273 = vadd.f32 %v1264, %v1271
        %v1274 = vadd.f32 %v1265, %v1271
        %v1275 = vld [vmem:[%s331] sm:$0xff]
        %v1276 = vld [vmem:[%s331 + $0x8] sm:$0xff]
        %vm1277 = vcmp.eq.s32.totalorder %v1275, 0
        %vm1278 = vcmp.eq.s32.totalorder %v1276, 0
        %v1279 = vsel %vm1277, 1, 0
        %v1280 = vsel %vm1278, 1, 0
        %1281 = vset.pattern.permute.xlu0 0
        %1282 = vperm.xlu0 %1281, %v1279
        %v1283 = vpop.permute.xlu0 %1282
        %1284 = vset.pattern.permute.xlu0 0
        %1285 = vperm.xlu0 %1284, %v1280
        %v1286 = vpop.permute.xlu0 %1285
        %vm1287 = vcmp.eq.s32.totalorder %v1283, 1
        %vm1288 = vcmp.eq.s32.totalorder %v1286, 1
        %v1289 = vsel %vm1287, %v1273, -1e+30
        %v1290 = vsel %vm1288, %v1274, -1e+30
        %vm1291 = vcmask 64512
        %v1292 = vsel %vm1291, %v1289, -inf
        %v1293 = vsel %vm1291, %v1290, -inf
        %v1294 = vmax.f32 %v1292, %v1293
        %v1295 = vrot.slane %v1294, 4
        %v1296 = vmax.f32 %v1294, %v1295
        %v1297 = vrot.slane %v1296, 2
        %v1298 = vmax.f32 %v1296, %v1297
        %v1299 = vrot.slane %v1298, 1
        %v1300 = vmax.f32 %v1298, %v1299
        %vm1301 = vcmp.eq.s32.totalorder %v1275, 1
        %vm1302 = vcmp.eq.s32.totalorder %v1276, 1
        %v1303 = vsel %vm1301, 1, 0
        %v1304 = vsel %vm1302, 1, 0
        %1305 = vset.pattern.permute.xlu0 0
        %1306 = vperm.xlu0 %1305, %v1303
        %v1307 = vpop.permute.xlu0 %1306
        %1308 = vset.pattern.permute.xlu0 0
        %1309 = vperm.xlu0 %1308, %v1304
        %v1310 = vpop.permute.xlu0 %1309
        %vm1311 = vcmp.eq.s32.totalorder %v1307, 1
        %vm1312 = vcmp.eq.s32.totalorder %v1310, 1
        %v1313 = vsel %vm1311, %v1273, -1e+30
        %v1314 = vsel %vm1312, %v1274, -1e+30
        %v1315 = vsel %vm1291, %v1313, -inf
        %v1316 = vsel %vm1291, %v1314, -inf
        %v1317 = vmax.f32 %v1315, %v1316
        %v1318 = vrot.slane %v1317, 4
        %v1319 = vmax.f32 %v1317, %v1318
        %v1320 = vrot.slane %v1319, 2
        %v1321 = vmax.f32 %v1319, %v1320
        %v1322 = vrot.slane %v1321, 1
        %v1323 = vmax.f32 %v1321, %v1322
        %vm1324 = vcmask 1040384
        %v1325 = vsel %vm1324, %v1300, %v1323
        %vm1326 = vcmask 58368
        %1327 = vst.msk [vmem:[%s336] sm:$0x3] %vm1326, %v1325
        %p1328 = scmp.lt.s32.totalorder %s19, 1
        %s1329 = scalar_select %p1328, %s19, 1
        %s1330 = smul.addr %s1329, 2
        %s1331 = scalar_lea.vmem %s7, %s1330
        // Predicated region
        $region53: #{gat_forward.4} parent=47 // pred_check
          %p1332 = pneg %p199
        $region54: #{gat_forward.4} parent=47 // pred_check_branch
          %1334 = sbr.rel (%p1332) target = $region56
        $region55: #{gat_forward.4} parent=47 // pred_region
          _
        $region56: #{gat_forward.4} parent=47 // pred_fallthru
          _
      $region48: #{gat_forward.4} parent=5 // pred_fallthru
        _
      %p1335 = scmp.le.s32.totalorder 2, %s14
      // Predicated region
      $region57: #{gat_forward.4} parent=5 // pred_check
        %p1336 = pneg %p1335
      $region58: #{gat_forward.4} parent=5 // pred_check_branch
        %1338 = sbr.rel (%p1336) target = $region60
      $region59: #{gat_forward.4} parent=5 // pred_region
        %s1339 = ssub.s32 %s14, 2
        // Predicated region
        $region61: #{gat_forward.4} parent=59 // pred_check
          %p1340 = pneg %p205
        $region62: #{gat_forward.4} parent=59 // pred_check_branch
          %1342 = sbr.rel (%p1340) target = $region64
        $region63: #{gat_forward.4} parent=59 // pred_region
          %p1343 = scmp.lt.s32.totalorder %s20, 1
          %s1344 = scalar_select %p1343, %s20, 1
          %s1345 = smul.addr %s1344, 2
          %s1346 = scalar_lea.vmem %s7, %s1345
        $region64: #{gat_forward.4} parent=59 // pred_fallthru
          _
      $region60: #{gat_forward.4} parent=5 // pred_fallthru
        _
    $region6: #{gat_forward.4} parent=1 // loop_footer
      %s18 = sadd.s32 1, %s14
    $region7: #{gat_forward.4} parent=1 // loop_footer_branch
      %13 = sbr.rel target = $region3
    $region8: #{gat_forward.4} parent=1 // loop_exit
      _
    %1347 = vsyncpa [#allocation3], 1
    %s1348 = scalar_lea.sflag [#allocation3], 1
    %1349 = vsyncpa %s1348, 1

// kernel: gat_forward.3
$region0: #{gat_forward.3}
  #allocation0 [shape = 'u32[]', space=smem, size = 0x4, offset = 0x4, fixed_abs, tag = 'smem constant byte address 0x4 - core index']
  #allocation1 [shape = 'u32[144,128]{1,0:T(1,128)}', space=vmem, size = 0x12000, scoped, tag = 'internal scratch']
  %s0 = inlined_call_operand.vmem [shape: f32[2,8], index: 0, kind: input, shape index: {}]
  %s1 = inlined_call_operand.vmem [shape: f32[32,16], index: 1, kind: input, shape index: {}]
  %s2 = inlined_call_operand.vmem [shape: f32[32,16], index: 2, kind: input, shape index: {}]
  %s3 = inlined_call_operand.vmem [shape: f32[16,32], index: 3, kind: input, shape index: {}]
  %s4 = inlined_call_operand.vmem [shape: bf16[32,32], index: 4, kind: input, shape index: {}]
  %s5 = inlined_call_operand.vmem [shape: f32[1,16], index: 5, kind: input, shape index: {}]
  %s6 = inlined_call_operand.vmem [shape: f32[32,16], index: 6, kind: output, shape index: {}]
  %s7 = sld [smem:[#allocation0]]
  $region61: #{gat_forward.3} parent=0
    _
  %s9 = ssub.s32 1, %s7
  %s10 = scalar_select 0, %s9, %s7
  $region1: #{gat_forward.3} parent=0
    #allocation2 [shape = 'u8[1024]{0}', space=smem, size = 0x400, scoped, tag = 'input window, operand 0, single buffered']
    #allocation3 [shape = 's32[2]{0}', space=sflag, size = 0x8, scoped, tag = 'scoped memory for gat_forward.3']
    %11 = vsyncpa [#allocation3], 0
    loop: start=0, step=1, limit=4
    $region2: #{gat_forward.3} parent=1 // loop_pre_header
      _
    $region3: #{gat_forward.3} parent=1 // loop_header
      %s13 = sphi 0, %s17
      %p14 = scmp.ge.s32.totalorder %s13, 4
      %s21 = sphi 0, %s21
      %s23 = sphi 0, %s21
      %s24 = sphi 0, %s23
      %s38 = sphi 0, %s24
      %s44 = sphi 0, %s46
      %s47 = sphi 0, %s44
      %s48 = sphi 0, %s47
      %s64 = sphi 0, %s48
      %s68 = sphi 0, %s68
      %s70 = sphi 0, %s68
      %s71 = sphi 0, %s70
      %s85 = sphi 0, %s71
      %s89 = sphi 0, %s89
      %s91 = sphi 0, %s89
      %s92 = sphi 0, %s91
      %s106 = sphi 0, %s92
      %s112 = sphi 0, %s114
      %s115 = sphi 0, %s112
      %s116 = sphi 0, %s115
      %s132 = sphi 0, %s116
      %s136 = sphi 0, %s136
      %s138 = sphi 0, %s136
      %s139 = sphi 0, %s138
      %s153 = sphi 0, %s139
      %s159 = sphi 0, %s161
      %s162 = sphi 0, %s159
      %s163 = sphi 0, %s162
      %s179 = sphi 0, %s163
    $region4: #{gat_forward.3} parent=1 // loop_header_branch
      %16 = sbr.rel (%p14) target = $region8
    $region5: #{gat_forward.3} parent=1 // loop_body
      %s18 = ssub.s32 %s13, 1
      %s19 = ssub.s32 %s13, 2
      %s20 = sadd.s32 %s13, 1
      %s22 = sadd.s32 %s21, 1
      %p25 = scmp.eq.s32.totalorder %s13, 1
      %p26 = scmp.ne.s32.totalorder %s21, %s23
      %p27 = scmp.eq.s32.totalorder %s13, 0
      %p28 = por %p26, %p27
      %p29 = scmp.ne.s32.totalorder %s21, %s23
      %p30 = scmp.eq.s32.totalorder %s18, 1
      %p31 = por %p29, %p30
      %p32 = scmp.ne.s32.totalorder %s23, %s24
      %p33 = scmp.eq.s32.totalorder %s18, 0
      %p34 = por %p32, %p33
      %p35 = scmp.ne.s32.totalorder %s23, %s24
      %p36 = scmp.eq.s32.totalorder %s19, 1
      %p37 = por %p35, %p36
      %p39 = scmp.ne.s32.totalorder %s24, %s38
      %p40 = scmp.eq.s32.totalorder %s19, 0
      %p41 = por %p39, %p40
      %s42 = ssub.s32 %s13, %s20
      %p43 = scmp.eq.s32.totalorder %s42, 0
      %s45 = sadd.s32 %s44, 1
      %s46 = scalar_select %p43, %s44, %s45
      %p49 = pneg %p43
      %p50 = scmp.eq.s32.totalorder %s13, 1
      %p51 = por %p49, %p50
      %p52 = scmp.ne.s32.totalorder %s44, %s47
      %p53 = scmp.eq.s32.totalorder %s13, 0
      %p54 = por %p52, %p53
      %p55 = scmp.ne.s32.totalorder %s44, %s47
      %p56 = scmp.eq.s32.totalorder %s18, 1
      %p57 = por %p55, %p56
      %p58 = scmp.ne.s32.totalorder %s47, %s48
      %p59 = scmp.eq.s32.totalorder %s18, 0
      %p60 = por %p58, %p59
      %p61 = scmp.ne.s32.totalorder %s47, %s48
      %p62 = scmp.eq.s32.totalorder %s19, 1
      %p63 = por %p61, %p62
      %p65 = scmp.ne.s32.totalorder %s48, %s64
      %p66 = scmp.eq.s32.totalorder %s19, 0
      %p67 = por %p65, %p66
      %s69 = sadd.s32 %s68, 1
      %p72 = scmp.eq.s32.totalorder %s13, 1
      %p73 = scmp.ne.s32.totalorder %s68, %s70
      %p74 = scmp.eq.s32.totalorder %s13, 0
      %p75 = por %p73, %p74
      %p76 = scmp.ne.s32.totalorder %s68, %s70
      %p77 = scmp.eq.s32.totalorder %s18, 1
      %p78 = por %p76, %p77
      %p79 = scmp.ne.s32.totalorder %s70, %s71
      %p80 = scmp.eq.s32.totalorder %s18, 0
      %p81 = por %p79, %p80
      %p82 = scmp.ne.s32.totalorder %s70, %s71
      %p83 = scmp.eq.s32.totalorder %s19, 1
      %p84 = por %p82, %p83
      %p86 = scmp.ne.s32.totalorder %s71, %s85
      %p87 = scmp.eq.s32.totalorder %s19, 0
      %p88 = por %p86, %p87
      %s90 = sadd.s32 %s89, 1
      %p93 = scmp.eq.s32.totalorder %s13, 1
      %p94 = scmp.ne.s32.totalorder %s89, %s91
      %p95 = scmp.eq.s32.totalorder %s13, 0
      %p96 = por %p94, %p95
      %p97 = scmp.ne.s32.totalorder %s89, %s91
      %p98 = scmp.eq.s32.totalorder %s18, 1
      %p99 = por %p97, %p98
      %p100 = scmp.ne.s32.totalorder %s91, %s92
      %p101 = scmp.eq.s32.totalorder %s18, 0
      %p102 = por %p100, %p101
      %p103 = scmp.ne.s32.totalorder %s91, %s92
      %p104 = scmp.eq.s32.totalorder %s19, 1
      %p105 = por %p103, %p104
      %p107 = scmp.ne.s32.totalorder %s92, %s106
      %p108 = scmp.eq.s32.totalorder %s19, 0
      %p109 = por %p107, %p108
      %s110 = ssub.s32 %s13, %s20
      %p111 = scmp.eq.s32.totalorder %s110, 0
      %s113 = sadd.s32 %s112, 1
      %s114 = scalar_select %p111, %s112, %s113
      %p117 = pneg %p111
      %p118 = scmp.eq.s32.totalorder %s13, 1
      %p119 = por %p117, %p118
      %p120 = scmp.ne.s32.totalorder %s112, %s115
      %p121 = scmp.eq.s32.totalorder %s13, 0
      %p122 = por %p120, %p121
      %p123 = scmp.ne.s32.totalorder %s112, %s115
      %p124 = scmp.eq.s32.totalorder %s18, 1
      %p125 = por %p123, %p124
      %p126 = scmp.ne.s32.totalorder %s115, %s116
      %p127 = scmp.eq.s32.totalorder %s18, 0
      %p128 = por %p126, %p127
      %p129 = scmp.ne.s32.totalorder %s115, %s116
      %p130 = scmp.eq.s32.totalorder %s19, 1
      %p131 = por %p129, %p130
      %p133 = scmp.ne.s32.totalorder %s116, %s132
      %p134 = scmp.eq.s32.totalorder %s19, 0
      %p135 = por %p133, %p134
      %s137 = sadd.s32 %s136, 1
      %p140 = scmp.eq.s32.totalorder %s13, 1
      %p141 = scmp.ne.s32.totalorder %s136, %s138
      %p142 = scmp.eq.s32.totalorder %s13, 0
      %p143 = por %p141, %p142
      %p144 = scmp.ne.s32.totalorder %s136, %s138
      %p145 = scmp.eq.s32.totalorder %s18, 1
      %p146 = por %p144, %p145
      %p147 = scmp.ne.s32.totalorder %s138, %s139
      %p148 = scmp.eq.s32.totalorder %s18, 0
      %p149 = por %p147, %p148
      %p150 = scmp.ne.s32.totalorder %s138, %s139
      %p151 = scmp.eq.s32.totalorder %s19, 1
      %p152 = por %p150, %p151
      %p154 = scmp.ne.s32.totalorder %s139, %s153
      %p155 = scmp.eq.s32.totalorder %s19, 0
      %p156 = por %p154, %p155
      %s157 = ssub.s32 %s13, %s20
      %p158 = scmp.eq.s32.totalorder %s157, 0
      %s160 = sadd.s32 %s159, 1
      %s161 = scalar_select %p158, %s159, %s160
      %p164 = pneg %p158
      %p165 = scmp.eq.s32.totalorder %s13, 1
      %p166 = por %p164, %p165
      %p167 = scmp.ne.s32.totalorder %s159, %s162
      %p168 = scmp.eq.s32.totalorder %s13, 0
      %p169 = por %p167, %p168
      %p170 = scmp.ne.s32.totalorder %s159, %s162
      %p171 = scmp.eq.s32.totalorder %s18, 1
      %p172 = por %p170, %p171
      %p173 = scmp.ne.s32.totalorder %s162, %s163
      %p174 = scmp.eq.s32.totalorder %s18, 0
      %p175 = por %p173, %p174
      %p176 = scmp.ne.s32.totalorder %s162, %s163
      %p177 = scmp.eq.s32.totalorder %s19, 1
      %p178 = por %p176, %p177
      %p180 = scmp.ne.s32.totalorder %s163, %s179
      %p181 = scmp.eq.s32.totalorder %s19, 0
      %p182 = por %p180, %p181
      %p183 = scmp.le.s32.totalorder 1, %s13
      %p184 = scmp.lt.s32.totalorder %s13, 3
      %p185 = pnand %p183, %p184
      %p186 = pneg %p185
      // Predicated region
      $region9: #{gat_forward.3} parent=5 // pred_check
        _
      $region10: #{gat_forward.3} parent=5 // pred_check_branch
        %188 = sbr.rel (%p185) target = $region12
      $region11: #{gat_forward.3} parent=5 // pred_region
        %s189 = ssub.s32 %s13, 1
        // Predicated region
        $region13: #{gat_forward.3} parent=11 // pred_check
          %p190 = pneg %p34
        $region14: #{gat_forward.3} parent=11 // pred_check_branch
          %192 = sbr.rel (%p190) target = $region16
        $region15: #{gat_forward.3} parent=11 // pred_region
          %s194 = ssub.s32 32, 32
          %195 = vsyncadd [#allocation3], %s194
          %s197 = sshll.u32 %s0, 4
          %s198 = int_to_ptr.vmem [resolvable:$true] %s197
          %200 = dma.vmem_to_smem %s198, 32, [#allocation2], [#allocation3]
        $region16: #{gat_forward.3} parent=11 // pred_fallthru
          _
        // Predicated region
        $region17: #{gat_forward.3} parent=11 // pred_check
          %p201 = pneg %p81
        $region18: #{gat_forward.3} parent=11 // pred_check_branch
          %203 = sbr.rel (%p201) target = $region20
        $region19: #{gat_forward.3} parent=11 // pred_region
          _
        $region20: #{gat_forward.3} parent=11 // pred_fallthru
          _
        // Predicated region
        $region21: #{gat_forward.3} parent=11 // pred_check
          %p204 = pneg %p102
        $region22: #{gat_forward.3} parent=11 // pred_check_branch
          %206 = sbr.rel (%p204) target = $region24
        $region23: #{gat_forward.3} parent=11 // pred_region
          _
        $region24: #{gat_forward.3} parent=11 // pred_fallthru
          _
        // Predicated region
        $region25: #{gat_forward.3} parent=11 // pred_check
          %p207 = pneg %p149
        $region26: #{gat_forward.3} parent=11 // pred_check_branch
          %209 = sbr.rel (%p207) target = $region28
        $region27: #{gat_forward.3} parent=11 // pred_region
          _
        $region28: #{gat_forward.3} parent=11 // pred_fallthru
          _
      $region12: #{gat_forward.3} parent=5 // pred_fallthru
        _
      %p210 = scmp.lt.s32.totalorder %s13, 2
      // Predicated region
      $region29: #{gat_forward.3} parent=5 // pred_check
        %p211 = pneg %p210
      $region30: #{gat_forward.3} parent=5 // pred_check_branch
        %213 = sbr.rel (%p211) target = $region32
      $region31: #{gat_forward.3} parent=5 // pred_region
        // Predicated region
        $region33: #{gat_forward.3} parent=31 // pred_check
          %p214 = pneg %p54
        $region34: #{gat_forward.3} parent=31 // pred_check_branch
          %216 = sbr.rel (%p214) target = $region36
        $region35: #{gat_forward.3} parent=31 // pred_region
          %s217 = smul.u32 2, %s13
          %p218 = scmp.lt.s32.totalorder %s217, 3
          %s219 = scalar_select %p218, %s217, 3
          %s220 = smul.addr %s219, 8
          %s221 = scalar_lea.vmem %s1, %s220
          %s222 = smul.u32 2, %s13
        $region36: #{gat_forward.3} parent=31 // pred_fallthru
          _
        // Predicated region
        $region37: #{gat_forward.3} parent=31 // pred_check
          %p223 = pneg %p122
        $region38: #{gat_forward.3} parent=31 // pred_check_branch
          %225 = sbr.rel (%p223) target = $region40
        $region39: #{gat_forward.3} parent=31 // pred_region
          %s226 = smul.u32 2, %s13
          %p227 = scmp.lt.s32.totalorder %s226, 3
          %s228 = scalar_select %p227, %s226, 3
          %s229 = smul.addr %s228, 4
          %s230 = scalar_lea.vmem %s4, %s229
          %s231 = smul.u32 2, %s13
        $region40: #{gat_forward.3} parent=31 // pred_fallthru
          _
      $region32: #{gat_forward.3} parent=5 // pred_fallthru
        _
      %p232 = scmp.le.s32.totalorder 1, %s13
      %p233 = scmp.lt.s32.totalorder %s13, 3
      %p234 = pnand %p232, %p233
      %p235 = pneg %p234
      // Predicated region
      $region41: #{gat_forward.3} parent=5 // pred_check
        _
      $region42: #{gat_forward.3} parent=5 // pred_check_branch
        %237 = sbr.rel (%p234) target = $region44
      $region43: #{gat_forward.3} parent=5 // pred_region
        %s238 = ssub.s32 %s13, 1
        // Predicated region
        $region45: #{gat_forward.3} parent=43 // pred_check
          %p239 = pneg %p34
        $region46: #{gat_forward.3} parent=43 // pred_check_branch
          %241 = sbr.rel (%p239) target = $region48
        $region47: #{gat_forward.3} parent=43 // pred_region
          %242 = dma.done [#allocation3], 32
        $region48: #{gat_forward.3} parent=43 // pred_fallthru
          _
        %243 = sfence
        %p244 = pneg %p34
        %p245 = pneg %p31
        %s246 = smul.u32 2, %s18
        %p247 = scmp.lt.s32.totalorder %s246, 3
        %s248 = scalar_select %p247, %s246, 3
        %s249 = smul.addr %s248, 8
        %s250 = scalar_lea.vmem %s1, %s249
        %p251 = pneg %p60
        %p252 = pneg %p57
        %p253 = pneg %p81
        %p254 = pneg %p78
        %p255 = pneg %p102
        %p256 = pneg %p99
        %s257 = smul.u32 2, %s18
        %p258 = scmp.lt.s32.totalorder %s257, 3
        %s259 = scalar_select %p258, %s257, 3
        %s260 = smul.addr %s259, 4
        %s261 = scalar_lea.vmem %s4, %s260
        %p262 = pneg %p128
        %p263 = pneg %p125
        %p264 = pneg %p149
        %p265 = pneg %p146
        %p266 = pneg %p175
        %p267 = pneg %p172
        %s268 = smul.u32 2, %s18
        %p269 = scmp.lt.s32.totalorder %s268, 3
        %s270 = scalar_select %p269, %s268, 3
        %s271 = smul.addr %s270, 8
        %s272 = scalar_lea.vmem %s6, %s271
        %s273 = smul.u32 2, %s18
        %p274 = scmp.lt.s32.totalorder %s273, 3
        %s275 = scalar_select %p274, %s273, 3
        %s276 = smul.addr %s275, 8
        %s277 = scalar_lea.vmem %s1, %s276
        %s278 = smul.u32 2, %s18
        %s279 = smul.u32 2, %s18
        %p280 = scmp.lt.s32.totalorder %s279, 3
        %s281 = scalar_select %p280, %s279, 3
        %s282 = smul.addr %s281, 4
        %s283 = scalar_lea.vmem %s4, %s282
        %s284 = smul.u32 2, %s18
        %s285 = smul.u32 2, %s18
        %p286 = scmp.lt.s32.totalorder %s285, 3
        %s287 = scalar_select %p286, %s285, 3
        %s288 = smul.addr %s287, 8
        %s289 = scalar_lea.vmem %s6, %s288
        %s290 = smul.u32 2, %s18
        %v291 = vld [vmem:[%s283] sm:$0xf]
        %v292 = vld [vmem:[%s283 + $0x4] sm:$0xf]
        %v293 = vunpack.c.l.bf16 %v291
        %v294 = vunpack.c.l.bf16 %v292
        %v295 = vld [vmem:[%s277] sm:$0xff]
        %v296 = vld [vmem:[%s277 + $0x8] sm:$0xff]
        %v297 = vld [vmem:[%s2] sm:$0xff]
        %v298 = vld [vmem:[%s2 + $0x8] sm:$0xff]
        %v299 = vld [vmem:[%s2 + $0x10] sm:$0xff]
        %v300 = vld [vmem:[%s2 + $0x18] sm:$0xff]
        %v301 = vld [vmem:[%s3] sm:$0xff]
        %v302 = vld [vmem:[%s3 + $0x8] sm:$0xff]
        %s303 = sld [smem:[#allocation2]]
        %s304 = smul.f32 %s303, 0.2
        %v305 = vstv %s304
        %v306 = vmul.f32 %v305, %v295
        %v307 = vmul.f32 %v305, %v296
        %v308 = vmul.f32 %v305, %v301
        %310 = vset.pattern.permute.xlu0 0
        %311 = vperm.xlu0 %310, %v295
        %v312 = vpop.permute.xlu0 %311
        %315 = vset.pattern.permute.xlu0 0
        %316 = vperm.xlu0 %315, %v296
        %v317 = vpop.permute.xlu0 %316
        %v319 = vlaneseq
        %v320 = vshrl.u32 %v319, 7
        %v321 = vsub.s32 0, %v320
        %v322 = vrot.slane %v301, %v321
        %v323 = vadd.f32 %v312, %v322
        %v324 = vadd.f32 %v317, %v322
        %v325 = vmax.f32 %v323, 0.0
        %v326 = vmax.f32 %v324, 0.0
        %s327 = smul.f32 %s303, 0.8
        %v328 = vstv %s327
        %v329 = vmul.f32 %v328, %v325
        %v330 = vmul.f32 %v328, %v326
        %s331 = sld [smem:[#allocation2 + $0x1]]
        %s332 = smul.f32 %s331, 0.2
        %v333 = vstv %s332
        %v334 = vmul.f32 %v333, %v295
        %v335 = vmul.f32 %v333, %v296
        %v336 = vmul.f32 %v333, %v301
        %339 = vrot.lane.b32.xlu0 %v334, 127
        %v340 = vpop.permute.xlu0 %339
        %341 = vrot.lane.b32.xlu0 %v335, 127
        %v342 = vpop.permute.xlu0 %341
        %v345 = vadd.f32 %v306, %v340
        %v346 = vadd.f32 %v307, %v342
        %v348 = vrot.slane %v336, 1
        %v350 = vadd.f32 %v308, %v348
        %351 = vset.pattern.permute.xlu0 1
        %352 = vperm.xlu0 %351, %v295
        %v353 = vpop.permute.xlu0 %352
        %355 = vset.pattern.permute.xlu0 1
        %356 = vperm.xlu0 %355, %v296
        %v357 = vpop.permute.xlu0 %356
        %v359 = vlaneseq
        %v360 = vshrl.u32 %v359, 7
        %v361 = vsub.s32 1, %v360
        %v362 = vrot.slane %v301, %v361
        %v363 = vadd.f32 %v353, %v362
        %v364 = vadd.f32 %v357, %v362
        %v365 = vmax.f32 %v363, 0.0
        %v366 = vmax.f32 %v364, 0.0
        %s367 = smul.f32 %s331, 0.8
        %v368 = vstv %s367
        %v369 = vmul.f32 %v368, %v365
        %v370 = vmul.f32 %v368, %v366
        %v371 = vadd.f32 %v329, %v369
        %v372 = vadd.f32 %v330, %v370
        %s373 = sld [smem:[#allocation2 + $0x2]]
        %s374 = smul.f32 %s373, 0.2
        %v375 = vstv %s374
        %v376 = vmul.f32 %v375, %v295
        %v377 = vmul.f32 %v375, %v296
        %v378 = vmul.f32 %v375, %v301
        %381 = vrot.lane.b32.xlu0 %v376, 126
        %v382 = vpop.permute.xlu0 %381
        %383 = vrot.lane.b32.xlu0 %v377, 126
        %v384 = vpop.permute.xlu0 %383
        %v387 = vadd.f32 %v345, %v382
        %v388 = vadd.f32 %v346, %v384
        %v390 = vrot.slane %v378, 2
        %v392 = vadd.f32 %v350, %v390
        %393 = vset.pattern.permute.xlu0 2
        %394 = vperm.xlu0 %393, %v295
        %v395 = vpop.permute.xlu0 %394
        %397 = vset.pattern.permute.xlu0 2
        %398 = vperm.xlu0 %397, %v296
        %v399 = vpop.permute.xlu0 %398
        %v401 = vlaneseq
        %v402 = vshrl.u32 %v401, 7
        %v403 = vsub.s32 2, %v402
        %v404 = vrot.slane %v301, %v403
        %v405 = vadd.f32 %v395, %v404
        %v406 = vadd.f32 %v399, %v404
        %v407 = vmax.f32 %v405, 0.0
        %v408 = vmax.f32 %v406, 0.0
        %s409 = smul.f32 %s373, 0.8
        %v410 = vstv %s409
        %v411 = vmul.f32 %v410, %v407
        %v412 = vmul.f32 %v410, %v408
        %v413 = vadd.f32 %v371, %v411
        %v414 = vadd.f32 %v372, %v412
        %s415 = sld [smem:[#allocation2 + $0x3]]
        %s416 = smul.f32 %s415, 0.2
        %v417 = vstv %s416
        %v418 = vmul.f32 %v417, %v295
        %v419 = vmul.f32 %v417, %v296
        %v420 = vmul.f32 %v417, %v301
        %423 = vrot.lane.b32.xlu0 %v418, 125
        %v424 = vpop.permute.xlu0 %423
        %425 = vrot.lane.b32.xlu0 %v419, 125
        %v426 = vpop.permute.xlu0 %425
        %v429 = vadd.f32 %v387, %v424
        %v430 = vadd.f32 %v388, %v426
        %v432 = vrot.slane %v420, 3
        %v434 = vadd.f32 %v392, %v432
        %435 = vset.pattern.permute.xlu0 3
        %436 = vperm.xlu0 %435, %v295
        %v437 = vpop.permute.xlu0 %436
        %439 = vset.pattern.permute.xlu0 3
        %440 = vperm.xlu0 %439, %v296
        %v441 = vpop.permute.xlu0 %440
        %v443 = vlaneseq
        %v444 = vshrl.u32 %v443, 7
        %v445 = vsub.s32 3, %v444
        %v446 = vrot.slane %v301, %v445
        %v447 = vadd.f32 %v437, %v446
        %v448 = vadd.f32 %v441, %v446
        %v449 = vmax.f32 %v447, 0.0
        %v450 = vmax.f32 %v448, 0.0
        %s451 = smul.f32 %s415, 0.8
        %v452 = vstv %s451
        %v453 = vmul.f32 %v452, %v449
        %v454 = vmul.f32 %v452, %v450
        %v455 = vadd.f32 %v413, %v453
        %v456 = vadd.f32 %v414, %v454
        %s457 = sld [smem:[#allocation2 + $0x4]]
        %s458 = smul.f32 %s457, 0.2
        %v459 = vstv %s458
        %v460 = vmul.f32 %v459, %v295
        %v461 = vmul.f32 %v459, %v296
        %v462 = vmul.f32 %v459, %v301
        %465 = vrot.lane.b32.xlu0 %v460, 124
        %v466 = vpop.permute.xlu0 %465
        %467 = vrot.lane.b32.xlu0 %v461, 124
        %v468 = vpop.permute.xlu0 %467
        %v471 = vadd.f32 %v429, %v466
        %v472 = vadd.f32 %v430, %v468
        %v474 = vrot.slane %v462, 4
        %v476 = vadd.f32 %v434, %v474
        %477 = vset.pattern.permute.xlu0 4
        %478 = vperm.xlu0 %477, %v295
        %v479 = vpop.permute.xlu0 %478
        %481 = vset.pattern.permute.xlu0 4
        %482 = vperm.xlu0 %481, %v296
        %v483 = vpop.permute.xlu0 %482
        %v485 = vlaneseq
        %v486 = vshrl.u32 %v485, 7
        %v487 = vsub.s32 4, %v486
        %v488 = vrot.slane %v301, %v487
        %v489 = vadd.f32 %v479, %v488
        %v490 = vadd.f32 %v483, %v488
        %v491 = vmax.f32 %v489, 0.0
        %v492 = vmax.f32 %v490, 0.0
        %s493 = smul.f32 %s457, 0.8
        %v494 = vstv %s493
        %v495 = vmul.f32 %v494, %v491
        %v496 = vmul.f32 %v494, %v492
        %v497 = vadd.f32 %v455, %v495
        %v498 = vadd.f32 %v456, %v496
        %s499 = sld [smem:[#allocation2 + $0x5]]
        %s500 = smul.f32 %s499, 0.2
        %v501 = vstv %s500
        %v502 = vmul.f32 %v501, %v295
        %v503 = vmul.f32 %v501, %v296
        %v504 = vmul.f32 %v501, %v301
        %507 = vrot.lane.b32.xlu0 %v502, 123
        %v508 = vpop.permute.xlu0 %507
        %509 = vrot.lane.b32.xlu0 %v503, 123
        %v510 = vpop.permute.xlu0 %509
        %v513 = vadd.f32 %v471, %v508
        %v514 = vadd.f32 %v472, %v510
        %v516 = vrot.slane %v504, 5
        %v518 = vadd.f32 %v476, %v516
        %519 = vset.pattern.permute.xlu0 5
        %520 = vperm.xlu0 %519, %v295
        %v521 = vpop.permute.xlu0 %520
        %523 = vset.pattern.permute.xlu0 5
        %524 = vperm.xlu0 %523, %v296
        %v525 = vpop.permute.xlu0 %524
        %v527 = vlaneseq
        %v528 = vshrl.u32 %v527, 7
        %v529 = vsub.s32 5, %v528
        %v530 = vrot.slane %v301, %v529
        %v531 = vadd.f32 %v521, %v530
        %v532 = vadd.f32 %v525, %v530
        %v533 = vmax.f32 %v531, 0.0
        %v534 = vmax.f32 %v532, 0.0
        %s535 = smul.f32 %s499, 0.8
        %v536 = vstv %s535
        %v537 = vmul.f32 %v536, %v533
        %v538 = vmul.f32 %v536, %v534
        %v539 = vadd.f32 %v497, %v537
        %v540 = vadd.f32 %v498, %v538
        %s541 = sld [smem:[#allocation2 + $0x6]]
        %s542 = smul.f32 %s541, 0.2
        %v543 = vstv %s542
        %v544 = vmul.f32 %v543, %v295
        %v545 = vmul.f32 %v543, %v296
        %v546 = vmul.f32 %v543, %v301
        %549 = vrot.lane.b32.xlu0 %v544, 122
        %v550 = vpop.permute.xlu0 %549
        %551 = vrot.lane.b32.xlu0 %v545, 122
        %v552 = vpop.permute.xlu0 %551
        %v555 = vadd.f32 %v513, %v550
        %v556 = vadd.f32 %v514, %v552
        %v558 = vrot.slane %v546, 6
        %v560 = vadd.f32 %v518, %v558
        %561 = vset.pattern.permute.xlu0 6
        %562 = vperm.xlu0 %561, %v295
        %v563 = vpop.permute.xlu0 %562
        %565 = vset.pattern.permute.xlu0 6
        %566 = vperm.xlu0 %565, %v296
        %v567 = vpop.permute.xlu0 %566
        %v569 = vlaneseq
        %v570 = vshrl.u32 %v569, 7
        %v571 = vsub.s32 6, %v570
        %v572 = vrot.slane %v301, %v571
        %v573 = vadd.f32 %v563, %v572
        %v574 = vadd.f32 %v567, %v572
        %v575 = vmax.f32 %v573, 0.0
        %v576 = vmax.f32 %v574, 0.0
        %s577 = smul.f32 %s541, 0.8
        %v578 = vstv %s577
        %v579 = vmul.f32 %v578, %v575
        %v580 = vmul.f32 %v578, %v576
        %v581 = vadd.f32 %v539, %v579
        %v582 = vadd.f32 %v540, %v580
        %s583 = sld [smem:[#allocation2 + $0x7]]
        %s584 = smul.f32 %s583, 0.2
        %v585 = vstv %s584
        %v586 = vmul.f32 %v585, %v295
        %v587 = vmul.f32 %v585, %v296
        %v588 = vmul.f32 %v585, %v301
        %591 = vrot.lane.b32.xlu0 %v586, 121
        %v592 = vpop.permute.xlu0 %591
        %593 = vrot.lane.b32.xlu0 %v587, 121
        %v594 = vpop.permute.xlu0 %593
        %v597 = vadd.f32 %v555, %v592
        %v598 = vadd.f32 %v556, %v594
        %v600 = vrot.slane %v588, 7
        %v602 = vadd.f32 %v560, %v600
        %603 = vset.pattern.permute.xlu0 7
        %604 = vperm.xlu0 %603, %v295
        %v605 = vpop.permute.xlu0 %604
        %607 = vset.pattern.permute.xlu0 7
        %608 = vperm.xlu0 %607, %v296
        %v609 = vpop.permute.xlu0 %608
        %v611 = vlaneseq
        %v612 = vshrl.u32 %v611, 7
        %v613 = vsub.s32 7, %v612
        %v614 = vrot.slane %v301, %v613
        %v615 = vadd.f32 %v605, %v614
        %v616 = vadd.f32 %v609, %v614
        %v617 = vmax.f32 %v615, 0.0
        %v618 = vmax.f32 %v616, 0.0
        %s619 = smul.f32 %s583, 0.8
        %v620 = vstv %s619
        %v621 = vmul.f32 %v620, %v617
        %v622 = vmul.f32 %v620, %v618
        %v623 = vadd.f32 %v581, %v621
        %v624 = vadd.f32 %v582, %v622
        %626 = vset.pattern.permute.xlu0 0
        %627 = vperm.xlu0 %626, %v597
        %v628 = vpop.permute.xlu0 %627
        %631 = vset.pattern.permute.xlu0 0
        %632 = vperm.xlu0 %631, %v598
        %v633 = vpop.permute.xlu0 %632
        %v635 = vlaneseq
        %v636 = vshrl.u32 %v635, 7
        %v637 = vsub.s32 0, %v636
        %v638 = vrot.slane %v602, %v637
        %v639 = vadd.f32 %v628, %v638
        %v640 = vadd.f32 %v633, %v638
        %v641 = vadd.f32 %v639, %v293
        %v642 = vadd.f32 %v640, %v294
        %v643 = vadd.f32 %v641, %v623
        %v644 = vadd.f32 %v642, %v624
        %vm645 = vcmask 261120
        %v646 = vsel %vm645, %v643, -inf
        %647 = vmax.xlane.f32.xlu0 %v646
        %v648 = vpop.xlane.xlu0 %647
        %v649 = vsel %vm645, %v644, -inf
        %650 = vmax.xlane.f32.xlu0 %v649
        %v651 = vpop.xlane.xlu0 %650
        %v652 = vsub.f32 %v643, %v648
        %v653 = vsub.f32 %v644, %v651
        %v654 = vmul.f32 %v652, 1.442695
        %v655 = vpow.pop %v654
        %v656 = vmul.f32 %v653, 1.442695
        %v657 = vpow.pop %v656
        %v658 = vsel %vm645, %v655, 0.0
        %659 = vadd.xlane.f32.xlu0 %v658
        %v660 = vpop.xlane.xlu0 %659
        %v661 = vsel %vm645, %v657, 0.0
        %662 = vadd.xlane.f32.xlu0 %v661
        %v663 = vpop.xlane.xlu0 %662
        %v664 = vmax.f32 %v660, 1e-20
        %v665 = vmax.f32 %v663, 1e-20
        %v667 = vsel %vm645, %v655, 0
        %v670 = vsel %vm645, %v657, 0
        %672 = vmatprep.subr.mxu0 0.0
        %673 = vmatpush1.msra.mxu0 %v297
        %674 = vmatprep.subr.mxu0 0.0
        %675 = vmatpush1.msra.mxu0 %v298
        %676 = vmatprep.subr.mxu0 0.0
        %677 = vmatpush1.msra.mxu0 %v299
        %678 = vmatprep.subr.mxu0 0.0
        %679 = vmatpush1.msra.mxu0 %v300
        %680 = vmatprep.subr.mxu0 0.0
        %681 = vmatpush1.msra.mxu0 0.0
        %682 = vmatprep.subr.mxu0 0.0
        %683 = vmatpush1.msra.mxu0 0.0
        %684 = vmatprep.subr.mxu0 0.0
        %685 = vmatpush1.msra.mxu0 0.0
        %686 = vmatprep.subr.mxu0 0.0
        %687 = vmatpush1.msra.mxu0 0.0
        %688 = vmatprep.subr.mxu0 0.0
        %689 = vmatpush1.msra.mxu0 0.0
        %690 = vmatprep.subr.mxu0 0.0
        %691 = vmatpush1.msra.mxu0 0.0
        %692 = vmatprep.subr.mxu0 0.0
        %693 = vmatpush1.msra.mxu0 0.0
        %694 = vmatprep.subr.mxu0 0.0
        %695 = vmatpush1.msra.mxu0 0.0
        %696 = vmatprep.subr.mxu0 0.0
        %697 = vmatpush1.msra.mxu0 0.0
        %698 = vmatprep.subr.mxu0 0.0
        %699 = vmatpush1.msra.mxu0 0.0
        %700 = vmatprep.subr.mxu0 0.0
        %701 = vmatpush1.msra.mxu0 0.0
        %702 = vmatprep.subr.mxu0 0.0
        %703 = vmatpush1.msra.mxu0 0.0
        %704 = vmatprep.subr.mxu0 0.0
        %705 = vmatpush1.msra.mxu0 0.0
        %706 = vmatprep.subr.mxu0 0.0
        %707 = vmatpush1.msra.mxu0 0.0
        %708 = vmatprep.subr.mxu0 0.0
        %709 = vmatpush1.msra.mxu0 0.0
        %710 = vmatprep.subr.mxu0 0.0
        %711 = vmatpush1.msra.mxu0 0.0
        %712 = vmatprep.subr.mxu0 0.0
        %713 = vmatpush1.msra.mxu0 0.0
        %714 = vmatprep.subr.mxu0 0.0
        %715 = vmatpush1.msra.mxu0 0.0
        %716 = vmatprep.subr.mxu0 0.0
        %717 = vmatpush1.msra.mxu0 0.0
        %718 = vmatprep.subr.mxu0 0.0
        %719 = vmatpush1.msra.mxu0 0.0
        %720 = vmatprep.subr.mxu0 0.0
        %721 = vmatpush1.msra.mxu0 0.0
        %722 = vmatprep.subr.mxu0 0.0
        %723 = vmatpush1.msra.mxu0 0.0
        %724 = vmatprep.subr.mxu0 0.0
        %725 = vmatpush1.msra.mxu0 0.0
        %726 = vmatprep.subr.mxu0 0.0
        %727 = vmatpush1.msra.mxu0 0.0
        %728 = vmatprep.subr.mxu0 0.0
        %729 = vmatpush1.msra.mxu0 0.0
        %730 = vmatprep.subr.mxu0 0.0
        %731 = vmatpush1.msra.mxu0 0.0
        %732 = vmatprep.subr.mxu0 0.0
        %733 = vmatpush1.msra.mxu0 0.0
        %734 = vmatprep.subr.mxu0 0.0
        %735 = vmatpush1.msra.mxu0 0.0
        %736 = vmatprep.mubr.f32.mxu0 0.0
        %737 = vmatmul.mubr.f32.gmra.mrb[0].mxu0 %v667
        %v738 = vpop.f32.mrb[0].mxu0
        %v739 = vadd.f32 0.0, %v738
        %v740 = vpop.f32.mrb[0].mxu0
        %741 = vmatprep.mubr.f32.mxu0 0.0
        %742 = vmatmul.mubr.f32.gmra.mrb[0].mxu0 %v670
        %v743 = vpop.f32.mrb[0].mxu0
        %v744 = vadd.f32 0.0, %v743
        %v745 = vpop.f32.mrb[0].mxu0
        %746 = vdwg.mxu0
        %v747 = vrcp.pop %v664
        %v748 = vmul.f32 1.0, %v747
        %v749 = vrcp.pop %v665
        %v750 = vmul.f32 1.0, %v749
        %v751 = vmul.f32 %v739, %v748
        %v752 = vmul.f32 %v744, %v750
        %s753 = sld [smem:[#allocation2 + $0x80]]
        %s754 = smul.f32 %s753, 0.2
        %v755 = vstv %s754
        %v756 = vmul.f32 %v755, %v295
        %v757 = vmul.f32 %v755, %v296
        %v758 = vmul.f32 %v755, %v302
        %759 = vset.pattern.permute.xlu0 8
        %760 = vperm.xlu0 %759, %v295
        %v761 = vpop.permute.xlu0 %760
        %763 = vset.pattern.permute.xlu0 8
        %764 = vperm.xlu0 %763, %v296
        %v765 = vpop.permute.xlu0 %764
        %v767 = vlaneseq
        %v768 = vshrl.u32 %v767, 7
        %v769 = vsub.s32 0, %v768
        %v770 = vrot.slane %v302, %v769
        %v771 = vadd.f32 %v761, %v770
        %v772 = vadd.f32 %v765, %v770
        %v773 = vmax.f32 %v771, 0.0
        %v774 = vmax.f32 %v772, 0.0
        %s775 = smul.f32 %s753, 0.8
        %v776 = vstv %s775
        %v777 = vmul.f32 %v776, %v773
        %v778 = vmul.f32 %v776, %v774
        %s779 = sld [smem:[#allocation2 + $0x81]]
        %s780 = smul.f32 %s779, 0.2
        %v781 = vstv %s780
        %v782 = vmul.f32 %v781, %v295
        %v783 = vmul.f32 %v781, %v296
        %v784 = vmul.f32 %v781, %v302
        %787 = vrot.lane.b32.xlu0 %v782, 127
        %v788 = vpop.permute.xlu0 %787
        %789 = vrot.lane.b32.xlu0 %v783, 127
        %v790 = vpop.permute.xlu0 %789
        %v793 = vadd.f32 %v756, %v788
        %v794 = vadd.f32 %v757, %v790
        %v796 = vrot.slane %v784, 1
        %v798 = vadd.f32 %v758, %v796
        %799 = vset.pattern.permute.xlu0 9
        %800 = vperm.xlu0 %799, %v295
        %v801 = vpop.permute.xlu0 %800
        %803 = vset.pattern.permute.xlu0 9
        %804 = vperm.xlu0 %803, %v296
        %v805 = vpop.permute.xlu0 %804
        %v807 = vlaneseq
        %v808 = vshrl.u32 %v807, 7
        %v809 = vsub.s32 1, %v808
        %v810 = vrot.slane %v302, %v809
        %v811 = vadd.f32 %v801, %v810
        %v812 = vadd.f32 %v805, %v810
        %v813 = vmax.f32 %v811, 0.0
        %v814 = vmax.f32 %v812, 0.0
        %s815 = smul.f32 %s779, 0.8
        %v816 = vstv %s815
        %v817 = vmul.f32 %v816, %v813
        %v818 = vmul.f32 %v816, %v814
        %v819 = vadd.f32 %v777, %v817
        %v820 = vadd.f32 %v778, %v818
        %s821 = sld [smem:[#allocation2 + $0x82]]
        %s822 = smul.f32 %s821, 0.2
        %v823 = vstv %s822
        %v824 = vmul.f32 %v823, %v295
        %v825 = vmul.f32 %v823, %v296
        %v826 = vmul.f32 %v823, %v302
        %829 = vrot.lane.b32.xlu0 %v824, 126
        %v830 = vpop.permute.xlu0 %829
        %831 = vrot.lane.b32.xlu0 %v825, 126
        %v832 = vpop.permute.xlu0 %831
        %v835 = vadd.f32 %v793, %v830
        %v836 = vadd.f32 %v794, %v832
        %v838 = vrot.slane %v826, 2
        %v840 = vadd.f32 %v798, %v838
        %841 = vset.pattern.permute.xlu0 10
        %842 = vperm.xlu0 %841, %v295
        %v843 = vpop.permute.xlu0 %842
        %845 = vset.pattern.permute.xlu0 10
        %846 = vperm.xlu0 %845, %v296
        %v847 = vpop.permute.xlu0 %846
        %v849 = vlaneseq
        %v850 = vshrl.u32 %v849, 7
        %v851 = vsub.s32 2, %v850
        %v852 = vrot.slane %v302, %v851
        %v853 = vadd.f32 %v843, %v852
        %v854 = vadd.f32 %v847, %v852
        %v855 = vmax.f32 %v853, 0.0
        %v856 = vmax.f32 %v854, 0.0
        %s857 = smul.f32 %s821, 0.8
        %v858 = vstv %s857
        %v859 = vmul.f32 %v858, %v855
        %v860 = vmul.f32 %v858, %v856
        %v861 = vadd.f32 %v819, %v859
        %v862 = vadd.f32 %v820, %v860
        %s863 = sld [smem:[#allocation2 + $0x83]]
        %s864 = smul.f32 %s863, 0.2
        %v865 = vstv %s864
        %v866 = vmul.f32 %v865, %v295
        %v867 = vmul.f32 %v865, %v296
        %v868 = vmul.f32 %v865, %v302
        %871 = vrot.lane.b32.xlu0 %v866, 125
        %v872 = vpop.permute.xlu0 %871
        %873 = vrot.lane.b32.xlu0 %v867, 125
        %v874 = vpop.permute.xlu0 %873
        %v877 = vadd.f32 %v835, %v872
        %v878 = vadd.f32 %v836, %v874
        %v880 = vrot.slane %v868, 3
        %v882 = vadd.f32 %v840, %v880
        %883 = vset.pattern.permute.xlu0 11
        %884 = vperm.xlu0 %883, %v295
        %v885 = vpop.permute.xlu0 %884
        %887 = vset.pattern.permute.xlu0 11
        %888 = vperm.xlu0 %887, %v296
        %v889 = vpop.permute.xlu0 %888
        %v891 = vlaneseq
        %v892 = vshrl.u32 %v891, 7
        %v893 = vsub.s32 3, %v892
        %v894 = vrot.slane %v302, %v893
        %v895 = vadd.f32 %v885, %v894
        %v896 = vadd.f32 %v889, %v894
        %v897 = vmax.f32 %v895, 0.0
        %v898 = vmax.f32 %v896, 0.0
        %s899 = smul.f32 %s863, 0.8
        %v900 = vstv %s899
        %v901 = vmul.f32 %v900, %v897
        %v902 = vmul.f32 %v900, %v898
        %v903 = vadd.f32 %v861, %v901
        %v904 = vadd.f32 %v862, %v902
        %s905 = sld [smem:[#allocation2 + $0x84]]
        %s906 = smul.f32 %s905, 0.2
        %v907 = vstv %s906
        %v908 = vmul.f32 %v907, %v295
        %v909 = vmul.f32 %v907, %v296
        %v910 = vmul.f32 %v907, %v302
        %913 = vrot.lane.b32.xlu0 %v908, 124
        %v914 = vpop.permute.xlu0 %913
        %915 = vrot.lane.b32.xlu0 %v909, 124
        %v916 = vpop.permute.xlu0 %915
        %v919 = vadd.f32 %v877, %v914
        %v920 = vadd.f32 %v878, %v916
        %v922 = vrot.slane %v910, 4
        %v924 = vadd.f32 %v882, %v922
        %925 = vset.pattern.permute.xlu0 12
        %926 = vperm.xlu0 %925, %v295
        %v927 = vpop.permute.xlu0 %926
        %929 = vset.pattern.permute.xlu0 12
        %930 = vperm.xlu0 %929, %v296
        %v931 = vpop.permute.xlu0 %930
        %v933 = vlaneseq
        %v934 = vshrl.u32 %v933, 7
        %v935 = vsub.s32 4, %v934
        %v936 = vrot.slane %v302, %v935
        %v937 = vadd.f32 %v927, %v936
        %v938 = vadd.f32 %v931, %v936
        %v939 = vmax.f32 %v937, 0.0
        %v940 = vmax.f32 %v938, 0.0
        %s941 = smul.f32 %s905, 0.8
        %v942 = vstv %s941
        %v943 = vmul.f32 %v942, %v939
        %v944 = vmul.f32 %v942, %v940
        %v945 = vadd.f32 %v903, %v943
        %v946 = vadd.f32 %v904, %v944
        %s947 = sld [smem:[#allocation2 + $0x85]]
        %s948 = smul.f32 %s947, 0.2
        %v949 = vstv %s948
        %v950 = vmul.f32 %v949, %v295
        %v951 = vmul.f32 %v949, %v296
        %v952 = vmul.f32 %v949, %v302
        %955 = vrot.lane.b32.xlu0 %v950, 123
        %v956 = vpop.permute.xlu0 %955
        %957 = vrot.lane.b32.xlu0 %v951, 123
        %v958 = vpop.permute.xlu0 %957
        %v961 = vadd.f32 %v919, %v956
        %v962 = vadd.f32 %v920, %v958
        %v964 = vrot.slane %v952, 5
        %v966 = vadd.f32 %v924, %v964
        %967 = vset.pattern.permute.xlu0 13
        %968 = vperm.xlu0 %967, %v295
        %v969 = vpop.permute.xlu0 %968
        %971 = vset.pattern.permute.xlu0 13
        %972 = vperm.xlu0 %971, %v296
        %v973 = vpop.permute.xlu0 %972
        %v975 = vlaneseq
        %v976 = vshrl.u32 %v975, 7
        %v977 = vsub.s32 5, %v976
        %v978 = vrot.slane %v302, %v977
        %v979 = vadd.f32 %v969, %v978
        %v980 = vadd.f32 %v973, %v978
        %v981 = vmax.f32 %v979, 0.0
        %v982 = vmax.f32 %v980, 0.0
        %s983 = smul.f32 %s947, 0.8
        %v984 = vstv %s983
        %v985 = vmul.f32 %v984, %v981
        %v986 = vmul.f32 %v984, %v982
        %v987 = vadd.f32 %v945, %v985
        %v988 = vadd.f32 %v946, %v986
        %s989 = sld [smem:[#allocation2 + $0x86]]
        %s990 = smul.f32 %s989, 0.2
        %v991 = vstv %s990
        %v992 = vmul.f32 %v991, %v295
        %v993 = vmul.f32 %v991, %v296
        %v994 = vmul.f32 %v991, %v302
        %997 = vrot.lane.b32.xlu0 %v992, 122
        %v998 = vpop.permute.xlu0 %997
        %999 = vrot.lane.b32.xlu0 %v993, 122
        %v1000 = vpop.permute.xlu0 %999
        %v1003 = vadd.f32 %v961, %v998
        %v1004 = vadd.f32 %v962, %v1000
        %v1006 = vrot.slane %v994, 6
        %v1008 = vadd.f32 %v966, %v1006
        %1009 = vset.pattern.permute.xlu0 14
        %1010 = vperm.xlu0 %1009, %v295
        %v1011 = vpop.permute.xlu0 %1010
        %1013 = vset.pattern.permute.xlu0 14
        %1014 = vperm.xlu0 %1013, %v296
        %v1015 = vpop.permute.xlu0 %1014
        %v1017 = vlaneseq
        %v1018 = vshrl.u32 %v1017, 7
        %v1019 = vsub.s32 6, %v1018
        %v1020 = vrot.slane %v302, %v1019
        %v1021 = vadd.f32 %v1011, %v1020
        %v1022 = vadd.f32 %v1015, %v1020
        %v1023 = vmax.f32 %v1021, 0.0
        %v1024 = vmax.f32 %v1022, 0.0
        %s1025 = smul.f32 %s989, 0.8
        %v1026 = vstv %s1025
        %v1027 = vmul.f32 %v1026, %v1023
        %v1028 = vmul.f32 %v1026, %v1024
        %v1029 = vadd.f32 %v987, %v1027
        %v1030 = vadd.f32 %v988, %v1028
        %s1031 = sld [smem:[#allocation2 + $0x87]]
        %s1032 = smul.f32 %s1031, 0.2
        %v1033 = vstv %s1032
        %v1034 = vmul.f32 %v1033, %v295
        %v1035 = vmul.f32 %v1033, %v296
        %v1036 = vmul.f32 %v1033, %v302
        %1039 = vrot.lane.b32.xlu0 %v1034, 121
        %v1040 = vpop.permute.xlu0 %1039
        %1041 = vrot.lane.b32.xlu0 %v1035, 121
        %v1042 = vpop.permute.xlu0 %1041
        %v1045 = vadd.f32 %v1003, %v1040
        %v1046 = vadd.f32 %v1004, %v1042
        %v1048 = vrot.slane %v1036, 7
        %v1050 = vadd.f32 %v1008, %v1048
        %1051 = vset.pattern.permute.xlu0 15
        %1052 = vperm.xlu0 %1051, %v295
        %v1053 = vpop.permute.xlu0 %1052
        %1055 = vset.pattern.permute.xlu0 15
        %1056 = vperm.xlu0 %1055, %v296
        %v1057 = vpop.permute.xlu0 %1056
        %v1059 = vlaneseq
        %v1060 = vshrl.u32 %v1059, 7
        %v1061 = vsub.s32 7, %v1060
        %v1062 = vrot.slane %v302, %v1061
        %v1063 = vadd.f32 %v1053, %v1062
        %v1064 = vadd.f32 %v1057, %v1062
        %v1065 = vmax.f32 %v1063, 0.0
        %v1066 = vmax.f32 %v1064, 0.0
        %s1067 = smul.f32 %s1031, 0.8
        %v1068 = vstv %s1067
        %v1069 = vmul.f32 %v1068, %v1065
        %v1070 = vmul.f32 %v1068, %v1066
        %v1071 = vadd.f32 %v1029, %v1069
        %v1072 = vadd.f32 %v1030, %v1070
        %1074 = vset.pattern.permute.xlu0 8
        %1075 = vperm.xlu0 %1074, %v1045
        %v1076 = vpop.permute.xlu0 %1075
        %1079 = vset.pattern.permute.xlu0 8
        %1080 = vperm.xlu0 %1079, %v1046
        %v1081 = vpop.permute.xlu0 %1080
        %v1083 = vlaneseq
        %v1084 = vshrl.u32 %v1083, 7
        %v1085 = vsub.s32 0, %v1084
        %v1086 = vrot.slane %v1050, %v1085
        %v1087 = vadd.f32 %v1076, %v1086
        %v1088 = vadd.f32 %v1081, %v1086
        %v1089 = vadd.f32 %v1087, %v293
        %v1090 = vadd.f32 %v1088, %v294
        %v1091 = vadd.f32 %v1089, %v1071
        %v1092 = vadd.f32 %v1090, %v1072
        %v1093 = vsel %vm645, %v1091, -inf
        %1094 = vmax.xlane.f32.xlu0 %v1093
        %v1095 = vpop.xlane.xlu0 %1094
        %v1096 = vsel %vm645, %v1092, -inf
        %1097 = vmax.xlane.f32.xlu0 %v1096
        %v1098 = vpop.xlane.xlu0 %1097
        %v1099 = vsub.f32 %v1091, %v1095
        %v1100 = vsub.f32 %v1092, %v1098
        %v1101 = vmul.f32 %v1099, 1.442695
        %v1102 = vpow.pop %v1101
        %v1103 = vmul.f32 %v1100, 1.442695
        %v1104 = vpow.pop %v1103
        %v1105 = vsel %vm645, %v1102, 0.0
        %1106 = vadd.xlane.f32.xlu0 %v1105
        %v1107 = vpop.xlane.xlu0 %1106
        %v1108 = vsel %vm645, %v1104, 0.0
        %1109 = vadd.xlane.f32.xlu0 %v1108
        %v1110 = vpop.xlane.xlu0 %1109
        %v1111 = vmax.f32 %v1107, 1e-20
        %v1112 = vmax.f32 %v1110, 1e-20
        %1117 = vrot.lane.b32.xlu0 %v297, 120
        %v1118 = vpop.permute.xlu0 %1117
        %1119 = vrot.lane.b32.xlu0 %v298, 120
        %v1120 = vpop.permute.xlu0 %1119
        %1121 = vrot.lane.b32.xlu0 %v299, 120
        %v1122 = vpop.permute.xlu0 %1121
        %1123 = vrot.lane.b32.xlu0 %v300, 120
        %v1124 = vpop.permute.xlu0 %1123
        %v1130 = vsel %vm645, %v1102, 0
        %v1133 = vsel %vm645, %v1104, 0
        %1135 = vmatprep.subr.mxu0 0.0
        %1136 = vmatpush1.msra.mxu0 %v1118
        %1137 = vmatprep.subr.mxu0 0.0
        %1138 = vmatpush1.msra.mxu0 %v1120
        %1139 = vmatprep.subr.mxu0 0.0
        %1140 = vmatpush1.msra.mxu0 %v1122
        %1141 = vmatprep.subr.mxu0 0.0
        %1142 = vmatpush1.msra.mxu0 %v1124
        %1143 = vmatprep.subr.mxu0 0.0
        %1144 = vmatpush1.msra.mxu0 0.0
        %1145 = vmatprep.subr.mxu0 0.0
        %1146 = vmatpush1.msra.mxu0 0.0
        %1147 = vmatprep.subr.mxu0 0.0
        %1148 = vmatpush1.msra.mxu0 0.0
        %1149 = vmatprep.subr.mxu0 0.0
        %1150 = vmatpush1.msra.mxu0 0.0
        %1151 = vmatprep.subr.mxu0 0.0
        %1152 = vmatpush1.msra.mxu0 0.0
        %1153 = vmatprep.subr.mxu0 0.0
        %1154 = vmatpush1.msra.mxu0 0.0
        %1155 = vmatprep.subr.mxu0 0.0
        %1156 = vmatpush1.msra.mxu0 0.0
        %1157 = vmatprep.subr.mxu0 0.0
        %1158 = vmatpush1.msra.mxu0 0.0
        %1159 = vmatprep.subr.mxu0 0.0
        %1160 = vmatpush1.msra.mxu0 0.0
        %1161 = vmatprep.subr.mxu0 0.0
        %1162 = vmatpush1.msra.mxu0 0.0
        %1163 = vmatprep.subr.mxu0 0.0
        %1164 = vmatpush1.msra.mxu0 0.0
        %1165 = vmatprep.subr.mxu0 0.0
        %1166 = vmatpush1.msra.mxu0 0.0
        %1167 = vmatprep.subr.mxu0 0.0
        %1168 = vmatpush1.msra.mxu0 0.0
        %1169 = vmatprep.subr.mxu0 0.0
        %1170 = vmatpush1.msra.mxu0 0.0
        %1171 = vmatprep.subr.mxu0 0.0
        %1172 = vmatpush1.msra.mxu0 0.0
        %1173 = vmatprep.subr.mxu0 0.0
        %1174 = vmatpush1.msra.mxu0 0.0
        %1175 = vmatprep.subr.mxu0 0.0
        %1176 = vmatpush1.msra.mxu0 0.0
        %1177 = vmatprep.subr.mxu0 0.0
        %1178 = vmatpush1.msra.mxu0 0.0
        %1179 = vmatprep.subr.mxu0 0.0
        %1180 = vmatpush1.msra.mxu0 0.0
        %1181 = vmatprep.subr.mxu0 0.0
        %1182 = vmatpush1.msra.mxu0 0.0
        %1183 = vmatprep.subr.mxu0 0.0
        %1184 = vmatpush1.msra.mxu0 0.0
        %1185 = vmatprep.subr.mxu0 0.0
        %1186 = vmatpush1.msra.mxu0 0.0
        %1187 = vmatprep.subr.mxu0 0.0
        %1188 = vmatpush1.msra.mxu0 0.0
        %1189 = vmatprep.subr.mxu0 0.0
        %1190 = vmatpush1.msra.mxu0 0.0
        %1191 = vmatprep.subr.mxu0 0.0
        %1192 = vmatpush1.msra.mxu0 0.0
        %1193 = vmatprep.subr.mxu0 0.0
        %1194 = vmatpush1.msra.mxu0 0.0
        %1195 = vmatprep.subr.mxu0 0.0
        %1196 = vmatpush1.msra.mxu0 0.0
        %1197 = vmatprep.subr.mxu0 0.0
        %1198 = vmatpush1.msra.mxu0 0.0
        %1199 = vmatprep.mubr.f32.mxu0 0.0
        %1200 = vmatmul.mubr.f32.gmra.mrb[0].mxu0 %v1130
        %v1201 = vpop.f32.mrb[0].mxu0
        %v1202 = vadd.f32 0.0, %v1201
        %v1203 = vpop.f32.mrb[0].mxu0
        %1204 = vmatprep.mubr.f32.mxu0 0.0
        %1205 = vmatmul.mubr.f32.gmra.mrb[0].mxu0 %v1133
        %v1206 = vpop.f32.mrb[0].mxu0
        %v1207 = vadd.f32 0.0, %v1206
        %v1208 = vpop.f32.mrb[0].mxu0
        %1209 = vdwg.mxu0
        %v1210 = vrcp.pop %v1111
        %v1211 = vmul.f32 1.0, %v1210
        %v1212 = vrcp.pop %v1112
        %v1213 = vmul.f32 1.0, %v1212
        %v1214 = vmul.f32 %v1202, %v1211
        %v1215 = vmul.f32 %v1207, %v1213
        %1218 = vrot.lane.b32.xlu0 %v1214, 8
        %v1219 = vpop.permute.xlu0 %1218
        %1220 = vrot.lane.b32.xlu0 %v1215, 8
        %v1221 = vpop.permute.xlu0 %1220
        %vm1224 = vcmask 64512
        %v1225 = vsel %vm1224, %v751, %v1219
        %v1226 = vsel %vm1224, %v752, %v1221
        %v1227 = vld [vmem:[%s5] sm:$0x1]
        %v1229 = vlaneseq
        %v1230 = vshrl.u32 %v1229, 7
        %v1231 = vsub.s32 0, %v1230
        %v1232 = vrot.slane %v1227, %v1231
        %v1234 = vadd.f32 %v1225, %v1232
        %v1235 = vadd.f32 %v1226, %v1232
        %vm1236 = vcmask 130048
        %1237 = vst.msk [vmem:[%s289] sm:$0xff] %vm1236, %v1234
        %1238 = vst.msk [vmem:[%s289 + $0x8] sm:$0xff] %vm1236, %v1235
        %s1239 = smul.u32 2, %s18
        %p1240 = scmp.lt.s32.totalorder %s1239, 3
        %s1241 = scalar_select %p1240, %s1239, 3
        %s1242 = smul.addr %s1241, 8
        %s1243 = scalar_lea.vmem %s6, %s1242
        // Predicated region
        $region49: #{gat_forward.3} parent=43 // pred_check
          %p1244 = pneg %p172
        $region50: #{gat_forward.3} parent=43 // pred_check_branch
          %1246 = sbr.rel (%p1244) target = $region52
        $region51: #{gat_forward.3} parent=43 // pred_region
          %s1247 = smul.u32 2, %s18
        $region52: #{gat_forward.3} parent=43 // pred_fallthru
          _
      $region44: #{gat_forward.3} parent=5 // pred_fallthru
        _
      %p1248 = scmp.le.s32.totalorder 2, %s13
      // Predicated region
      $region53: #{gat_forward.3} parent=5 // pred_check
        %p1249 = pneg %p1248
      $region54: #{gat_forward.3} parent=5 // pred_check_branch
        %1251 = sbr.rel (%p1249) target = $region56
      $region55: #{gat_forward.3} parent=5 // pred_region
        %s1252 = ssub.s32 %s13, 2
        // Predicated region
        $region57: #{gat_forward.3} parent=55 // pred_check
          %p1253 = pneg %p178
        $region58: #{gat_forward.3} parent=55 // pred_check_branch
          %1255 = sbr.rel (%p1253) target = $region60
        $region59: #{gat_forward.3} parent=55 // pred_region
          %s1256 = smul.u32 2, %s19
          %p1257 = scmp.lt.s32.totalorder %s1256, 3
          %s1258 = scalar_select %p1257, %s1256, 3
          %s1259 = smul.addr %s1258, 8
          %s1260 = scalar_lea.vmem %s6, %s1259
        $region60: #{gat_forward.3} parent=55 // pred_fallthru
          _
      $region56: #{gat_forward.3} parent=5 // pred_fallthru
        _
    $region6: #{gat_forward.3} parent=1 // loop_footer
      %s17 = sadd.s32 1, %s13
    $region7: #{gat_forward.3} parent=1 // loop_footer_branch
      %12 = sbr.rel target = $region3
    $region8: #{gat_forward.3} parent=1 // loop_exit
      _
    %1261 = vsyncpa [#allocation3], 1
    %s1262 = scalar_lea.sflag [#allocation3], 1
    %1263 = vsyncpa %s1262, 1

</llo_original>
